<compile_context>
chip_gen: v7x
topology: tpu7x:2x2x1
jax: 0.10.0
libtpu: 0.0.40
codegen_flags: <defaults>
</compile_context>

<pallas_src>
import math
from functools import partial

import jax
import jax.numpy as jnp
import numpy as np
from jax.experimental import pallas as pl
from jax.experimental.pallas import tpu as pltpu


# ----------------------------- Pallas kernels -----------------------------

def _proj_kernel(x_ref, w1_ref, cos_ref, sin_ref, g_ref, b_ref, w2_ref,
                 qn_ref, qr0_ref, qr1_ref, kr0_ref, kr1_ref, kn_ref, v_ref,
                 *, eps):
    # layout (inputs):  x [tm, Hs] bf16; w1 [Hs, H*dqk + kv_rank + dr] bf16
    #   (columns: q_nope | q_rope_even | q_rope_odd | kv_lat | k_rope_even | k_rope_odd)
    #   cos/sin [tm, H*dr/2] f32 (per-head tiled); g/b [1, kv_rank] f32;
    #   w2 [kv_rank, H*(dn+dv)] bf16 (columns: k_nope_all | v_all)
    # layout (outputs, head-major so the attention kernel gets leading-batch tiles):
    #   qn [H, tm, dn], qr0/qr1 [H, tm, dr/2], kr0/kr1 [tm, dr/2],
    #   kn [H, tm, dn], v [H, tm, dv]  (all bf16)
    H, _, dn = qn_ref.shape
    dr2 = kr0_ref.shape[-1]
    dv = v_ref.shape[-1]
    kv_rank = g_ref.shape[-1]
    n_qn, n_qr = H * dn, H * dr2

    # one fused q_proj + kv_proj_a matmul (bf16 MXU inputs, f32 accumulation)
    qkv = jax.lax.dot_general(
        x_ref[...], w1_ref[...],
        dimension_numbers=(((1,), (0,)), ((), ())),
        preferred_element_type=jnp.float32)                      # [tm, N1] f32

    off = n_qn + 2 * n_qr
    q_nope = qkv[:, :n_qn]
    q_x0 = qkv[:, n_qn:n_qn + n_qr]
    q_x1 = qkv[:, n_qn + n_qr:off]
    kv_lat = qkv[:, off:off + kv_rank]
    k_x0 = qkv[:, off + kv_rank:off + kv_rank + dr2]
    k_x1 = qkv[:, off + kv_rank + dr2:off + kv_rank + 2 * dr2]

    # RoPE in the half-split (de-interleaved) basis — contiguous mul-adds only.
    cos = cos_ref[...]
    sin = sin_ref[...]
    q_r0 = q_x0 * cos - q_x1 * sin
    q_r1 = q_x0 * sin + q_x1 * cos
    ck, sk = cos[:, :dr2], sin[:, :dr2]
    kr0_ref[...] = (k_x0 * ck - k_x1 * sk).astype(kr0_ref.dtype)
    kr1_ref[...] = (k_x0 * sk + k_x1 * ck).astype(kr1_ref.dtype)

    # kv LayerNorm (eps=1e-5, affine), then the kv_proj_b up-projection.
    mu = jnp.mean(kv_lat, axis=-1, keepdims=True)
    var = jnp.mean((kv_lat - mu) ** 2, axis=-1, keepdims=True)
    normed = (kv_lat - mu) * jax.lax.rsqrt(var + eps) * g_ref[...] + b_ref[...]
    kv_up = jax.lax.dot_general(
        normed.astype(w2_ref.dtype), w2_ref[...],
        dimension_numbers=(((1,), (0,)), ((), ())),
        preferred_element_type=jnp.float32)                      # [tm, H*(dn+dv)]

    # Head-major stores: the MXU contractions above are NOT per-head; only the
    # stores are unrolled over heads so the attention kernel can consume
    # leading-batch [H, T, d] tiles with no transposes anywhere.
    for h in range(H):
        qn_ref[h] = q_nope[:, h * dn:(h + 1) * dn].astype(qn_ref.dtype)
        qr0_ref[h] = q_r0[:, h * dr2:(h + 1) * dr2].astype(qr0_ref.dtype)
        qr1_ref[h] = q_r1[:, h * dr2:(h + 1) * dr2].astype(qr1_ref.dtype)
        kn_ref[h] = kv_up[:, h * dn:(h + 1) * dn].astype(kn_ref.dtype)
        v_ref[h] = kv_up[:, H * dn + h * dv:H * dn + (h + 1) * dv].astype(v_ref.dtype)


def _attn_kernel(qn_ref, qr0_ref, qr1_ref, kn_ref, kr0_ref, kr1_ref, v_ref,
                 wo_ref, o_ref, *, scale):
    # layout: qn [H,T,dn], qr0/qr1 [H,T,dr/2], kn [H,S,dn], kr0/kr1 [S,dr/2],
    #         v [H,S,dv], wo [H,dv,Hs], o [T,Hs]   (one grid step per batch)
    H = qn_ref.shape[0]
    bqk = (((2,), (2,)), ((0,), (0,)))          # 'htd,hsd->hts' (leading batch)
    bkd = (((2,), (1,)), ((0,), (0,)))          # 'hts,hsd->htd' (leading batch)

    # scores[h,t,s] = q_nope.k_nope + q_rope.k_rope (k_rope shared across heads)
    s = jax.lax.dot_general(qn_ref[...], kn_ref[...], bqk,
                            preferred_element_type=jnp.float32)  # [H,T,S] f32
    kr0 = jnp.broadcast_to(kr0_ref[...][None], (H,) + kr0_ref.shape)
    kr1 = jnp.broadcast_to(kr1_ref[...][None], (H,) + kr1_ref.shape)
    s = s + jax.lax.dot_general(qr0_ref[...], kr0, bqk,
                                preferred_element_type=jnp.float32)
    s = s + jax.lax.dot_general(qr1_ref[...], kr1, bqk,
                                preferred_element_type=jnp.float32)
    s = s * scale

    # NOTE: the reference softmaxes over dim=-1 of 'btsh' -> the HEAD axis.
    # Here that is axis 0, so the reduction is cheap elementwise work over the
    # H score slices (no cross-lane reduce, no online-softmax state needed).
    m = jnp.max(s, axis=0, keepdims=True)
    e = jnp.exp(s - m)
    w = e / jnp.sum(e, axis=0, keepdims=True)                    # f32 [H,T,S]

    # attn_output, with the out_proj folded in: out = sum_h (w_h @ v_h) @ Wout_h
    ov = jax.lax.dot_general(w.astype(v_ref.dtype), v_ref[...], bkd,
                             preferred_element_type=jnp.float32)  # [H,T,dv]
    proj = jax.lax.dot_general(ov.astype(wo_ref.dtype), wo_ref[...], bkd,
                               preferred_element_type=jnp.float32)  # [H,T,Hs]
    o_ref[...] = jnp.sum(proj, axis=0).astype(o_ref.dtype)


# ----------------------------- pallas_call wrappers -----------------------------

def _fused_proj_call(x2, w1, cos, sin, g, b, w2, *, nh, dn, dr2, dv, kv_rank, tm):
    M, Hs = x2.shape
    N1, N2 = w1.shape[1], w2.shape[1]
    n_qr = nh * dr2
    assert M % tm == 0
    grid = (M // tm,)
    row = lambda i: (i, 0)
    full2 = lambda i: (0, 0)
    hm = lambda i: (0, i, 0)      # head-major outputs [H, M, d], tiled over rows
    bf = jnp.bfloat16
    out_shape = (
        jax.ShapeDtypeStruct((nh, M, dn), bf),    # q_nope
        jax.ShapeDtypeStruct((nh, M, dr2), bf),   # q_rope (even half)
        jax.ShapeDtypeStruct((nh, M, dr2), bf),   # q_rope (odd half)
        jax.ShapeDtypeStruct((M, dr2), bf),       # k_rope (even half)
        jax.ShapeDtypeStruct((M, dr2), bf),       # k_rope (odd half)
        jax.ShapeDtypeStruct((nh, M, dn), bf),    # k_nope
        jax.ShapeDtypeStruct((nh, M, dv), bf),    # v
    )
    out_specs = (
        pl.BlockSpec((nh, tm, dn), hm),
        pl.BlockSpec((nh, tm, dr2), hm),
        pl.BlockSpec((nh, tm, dr2), hm),
        pl.BlockSpec((tm, dr2), row),
        pl.BlockSpec((tm, dr2), row),
        pl.BlockSpec((nh, tm, dn), hm),
        pl.BlockSpec((nh, tm, dv), hm),
    )
    return pl.pallas_call(
        partial(_proj_kernel, eps=1e-5),
        out_shape=out_shape,
        grid=grid,
        in_specs=[
            pl.BlockSpec((tm, Hs), row),
            pl.BlockSpec((Hs, N1), full2),
            pl.BlockSpec((tm, n_qr), row),
            pl.BlockSpec((tm, n_qr), row),
            pl.BlockSpec((1, kv_rank), full2),
            pl.BlockSpec((1, kv_rank), full2),
            pl.BlockSpec((kv_rank, N2), full2),
        ],
        out_specs=out_specs,
        compiler_params=pltpu.CompilerParams(dimension_semantics=("parallel",)),
    )(x2, w1, cos, sin, g, b, w2)


def _fused_attn_call(q_nope, q_r0, q_r1, k_nope, k_r0, k_r1, v, wo, *, scale, seq_len):
    H, M, dn = q_nope.shape
    dr2 = q_r0.shape[-1]
    dv = v.shape[-1]
    Hs = wo.shape[-1]
    T = seq_len
    assert M % T == 0
    B = M // T
    hmap = lambda bi: (0, bi, 0)
    return pl.pallas_call(
        partial(_attn_kernel, scale=scale),
        out_shape=jax.ShapeDtypeStruct((B, T, Hs), jnp.float32),
        grid=(B,),
        in_specs=[
            pl.BlockSpec((H, T, dn), hmap),
            pl.BlockSpec((H, T, dr2), hmap),
            pl.BlockSpec((H, T, dr2), hmap),
            pl.BlockSpec((H, T, dn), hmap),
            pl.BlockSpec((T, dr2), lambda bi: (bi, 0)),
            pl.BlockSpec((T, dr2), lambda bi: (bi, 0)),
            pl.BlockSpec((H, T, dv), hmap),
            pl.BlockSpec((H, dv, Hs), lambda bi: (0, 0, 0)),
        ],
        out_specs=pl.BlockSpec((None, T, Hs), lambda bi: (bi, 0, 0)),
        compiler_params=pltpu.CompilerParams(dimension_semantics=("parallel",)),
    )(q_nope, q_r0, q_r1, k_nope, k_r0, k_r1, v, wo)


# ------------------------------ forward (glue) ------------------------------

def pack_params(params, cfg):
    """One-time weight packing: concat q_proj+kv_proj_a, de-interleave RoPE
    columns (half-split basis), group kv_proj_b as [k_nope_all | v_all],
    pre-transpose to [in, out], cast to bf16."""
    nh = cfg["num_heads"]
    dn, dr, dv = cfg["qk_nope_head_dim"], cfg["qk_rope_head_dim"], cfg["v_head_dim"]
    kvr, Hs = cfg["kv_lora_rank"], cfg["hidden_size"]
    dqk, dr2 = dn + dr, dr // 2

    q_order = ([h * dqk + j for h in range(nh) for j in range(dn)]
               + [h * dqk + dn + 2 * p for h in range(nh) for p in range(dr2)]
               + [h * dqk + dn + 2 * p + 1 for h in range(nh) for p in range(dr2)])
    kva_order = (list(range(kvr))
                 + [kvr + 2 * p for p in range(dr2)]
                 + [kvr + 2 * p + 1 for p in range(dr2)])
    kvb_order = ([h * (dn + dv) + j for h in range(nh) for j in range(dn)]
                 + [h * (dn + dv) + dn + j for h in range(nh) for j in range(dv)])

    w_q = params["q_proj"][np.array(q_order)]
    w_a = params["kv_proj_a"][np.array(kva_order)]
    w1 = jnp.concatenate([w_q, w_a], axis=0).T.astype(jnp.bfloat16)        # [Hs, H*dqk+kvr+dr]
    w2 = params["kv_proj_b"][np.array(kvb_order)].T.astype(jnp.bfloat16)   # [kvr, H*(dn+dv)]
    wo = params["out_proj"].T.reshape(nh, dv, Hs).astype(jnp.bfloat16)     # [H, dv, Hs]
    return {
        "w1": w1, "w2": w2, "wo": wo,
        "g": params["kv_norm_g"].reshape(1, kvr).astype(jnp.float32),
        "b": params["kv_norm_b"].reshape(1, kvr).astype(jnp.float32),
    }


def mla_forward(packed, hidden_states, freqs_cis, *, cfg):
    B, T, Hs = hidden_states.shape
    nh = cfg["num_heads"]
    dn, dr, dv = cfg["qk_nope_head_dim"], cfg["qk_rope_head_dim"], cfg["v_head_dim"]
    kv_rank = cfg["kv_lora_rank"]
    dr2 = dr // 2
    scale = (dn + dr) ** -0.5 * cfg["attention_scale_factor"]
    M = B * T

    x2 = hidden_states.reshape(M, Hs).astype(jnp.bfloat16)
    # cos/sin tiled per head along lanes and per batch along rows (row m = b*T+t).
    cos = jnp.tile(jnp.tile(freqs_cis[..., 0], (1, nh)), (B, 1))   # [M, nh*dr/2] f32
    sin = jnp.tile(jnp.tile(freqs_cis[..., 1], (1, nh)), (B, 1))

    tm = min(T, 256)   # >=2 grid steps here -> both v7x TensorCores get work
    q_nope, q_r0, q_r1, k_r0, k_r1, k_nope, v = _fused_proj_call(
        x2, packed["w1"], cos, sin, packed["g"], packed["b"], packed["w2"],
        nh=nh, dn=dn, dr2=dr2, dv=dv, kv_rank=kv_rank, tm=tm)

    out = _fused_attn_call(q_nope, q_r0, q_r1, k_nope, k_r0, k_r1, v,
                           packed["wo"], scale=scale, seq_len=T)
    return out.astype(hidden_states.dtype)


# ------------------------------ pure-JAX reference ------------------------------

def precompute_freqs_cis(dim, seq_len, theta=10000.0):
    """Returns [seq_len, dim//2, 2] with (cos, sin) stacked on the last axis."""
    inv_freq = 1.0 / (theta ** (jnp.arange(0, dim, 2, dtype=jnp.float32) / dim))
    t = jnp.arange(seq_len, dtype=jnp.float32)
    freqs = jnp.outer(t, inv_freq)                       # [T, dim//2]
    return jnp.stack([jnp.cos(freqs), jnp.sin(freqs)], axis=-1)


def apply_rotary_emb(x, freqs_cis):
    """x: [B, T, H, D] (D even). Interleaved-pair rotation, positions 0..T-1."""
    B, T, H, D = x.shape
    cos = freqs_cis[..., 0].reshape(1, T, 1, D // 2)
    sin = freqs_cis[..., 1].reshape(1, T, 1, D // 2)
    x0 = x[..., 0::2]
    x1 = x[..., 1::2]
    r0 = x0 * cos - x1 * sin
    r1 = x0 * sin + x1 * cos
    return jnp.stack([r0, r1], axis=-1).reshape(B, T, H, D)


def mla_forward_ref(params, hidden_states, freqs_cis, cfg):
    """Pure-JAX f32 reference mirroring the PyTorch forward exactly."""
    B, T, Hs = hidden_states.shape
    nh = cfg["num_heads"]
    dn, dr, dv = cfg["qk_nope_head_dim"], cfg["qk_rope_head_dim"], cfg["v_head_dim"]
    dqk = dn + dr
    kv_rank = cfg["kv_lora_rank"]
    scale = (dqk ** -0.5) * cfg["attention_scale_factor"]

    q = (hidden_states @ params["q_proj"].T).reshape(B, T, nh, dqk)
    q_nope, q_rope = q[..., :dn], q[..., dn:]
    q_rope = apply_rotary_emb(q_rope, freqs_cis)

    kv = hidden_states @ params["kv_proj_a"].T
    kv_lat, k_rope = kv[..., :kv_rank], kv[..., kv_rank:]
    k_rope = apply_rotary_emb(k_rope[:, :, None, :], freqs_cis)

    mu = jnp.mean(kv_lat, axis=-1, keepdims=True)
    var = jnp.mean((kv_lat - mu) ** 2, axis=-1, keepdims=True)
    kv_lat = (kv_lat - mu) * jax.lax.rsqrt(var + 1e-5) * params["kv_norm_g"] + params["kv_norm_b"]

    kv_up = (kv_lat @ params["kv_proj_b"].T).reshape(B, T, nh, dn + dv)
    k_nope, v = kv_up[..., :dn], kv_up[..., dn:]
    k = jnp.concatenate([k_nope, jnp.broadcast_to(k_rope, (B, T, nh, dr))], axis=-1)
    q = jnp.concatenate([q_nope, q_rope], axis=-1)

    scores = jnp.einsum('bthd,bshd->btsh', q, k) * scale
    w = jax.nn.softmax(scores.astype(jnp.float32), axis=-1).astype(q.dtype)
    o = jnp.einsum('btsh,bshd->bthd', w, v).reshape(B, T, nh * dv)
    return (o @ params["out_proj"].T).reshape(B, T, Hs)


def xavier_uniform(key, out_f, in_f, gain=1.0):
    limit = gain * math.sqrt(6.0 / (in_f + out_f))
    return jax.random.uniform(key, (out_f, in_f), jnp.float32, -limit, limit)


# ---------------------------------- main ----------------------------------

if __name__ == "__main__":
    cfg = dict(hidden_size=64, num_heads=4, qk_nope_head_dim=16,
               qk_rope_head_dim=8, v_head_dim=16, kv_lora_rank=32,
               q_lora_rank=0, attention_scale_factor=1.0)
    B, T = 2, 16
    nh, Hs = cfg["num_heads"], cfg["hidden_size"]
    dqk = cfg["qk_nope_head_dim"] + cfg["qk_rope_head_dim"]

    key = jax.random.PRNGKey(0)
    k1, k2, k3, k4, kx = jax.random.split(key, 5)
    params = {
        "q_proj": xavier_uniform(k1, nh * dqk, Hs),
        "kv_proj_a": xavier_uniform(k2, cfg["kv_lora_rank"] + cfg["qk_rope_head_dim"], Hs),
        "kv_proj_b": xavier_uniform(k3, nh * (cfg["qk_nope_head_dim"] + cfg["v_head_dim"]),
                                    cfg["kv_lora_rank"]),
        "out_proj": xavier_uniform(k4, Hs, nh * cfg["v_head_dim"], gain=1.0 / math.sqrt(2.0)),
        "kv_norm_g": jnp.ones((cfg["kv_lora_rank"],), jnp.float32),
        "kv_norm_b": jnp.zeros((cfg["kv_lora_rank"],), jnp.float32),
    }
    packed = pack_params(params, cfg)   # one-time: fuse/permute/transpose/bf16-cast weights

    hidden_states = jax.random.normal(kx, (B, T, Hs), jnp.float32)
    freqs_cis = precompute_freqs_cis(cfg["qk_rope_head_dim"], T)

    fwd = jax.jit(partial(mla_forward, cfg=cfg))
    out = jax.block_until_ready(fwd(packed, hidden_states, freqs_cis))

    ref = mla_forward_ref(params, hidden_states, freqs_cis, cfg)
    assert out.shape == (B, T, Hs)
    assert bool(jnp.all(jnp.isfinite(out)))
    np.testing.assert_allclose(np.asarray(out), np.asarray(ref), rtol=5e-2, atol=5e-2)

    print("KERNEL_OK")
</pallas_src>

<mosaic_0001>
module attributes {stable_mosaic.version = 11 : i64} {
  func.func @_attn_kernel(%arg0: i32, %arg1: memref<4x16x16xbf16, #tpu.memory_space<vmem>>, %arg2: memref<4x16x4xbf16, #tpu.memory_space<vmem>>, %arg3: memref<4x16x4xbf16, #tpu.memory_space<vmem>>, %arg4: memref<4x16x16xbf16, #tpu.memory_space<vmem>>, %arg5: memref<16x4xbf16, #tpu.memory_space<vmem>>, %arg6: memref<16x4xbf16, #tpu.memory_space<vmem>>, %arg7: memref<4x16x16xbf16, #tpu.memory_space<vmem>>, %arg8: memref<4x16x64xbf16, #tpu.memory_space<vmem>>, %arg9: memref<1x16x64xf32, #tpu.memory_space<vmem>>) attributes {dimension_semantics = [#tpu.dimension_semantics<parallel>], iteration_bounds = array<i64: 2>, scalar_prefetch = 0 : i64, scratch_operands = 0 : i64, tpu.core_type = #tpu.core_type<tc>, window_params = [{transform_indices = @transform_0, window_bounds = array<i64: 4, 16, 16>}, {transform_indices = @transform_1, window_bounds = array<i64: 4, 16, 4>}, {transform_indices = @transform_2, window_bounds = array<i64: 4, 16, 4>}, {transform_indices = @transform_3, window_bounds = array<i64: 4, 16, 16>}, {transform_indices = @transform_4, window_bounds = array<i64: 16, 4>}, {transform_indices = @transform_5, window_bounds = array<i64: 16, 4>}, {transform_indices = @transform_6, window_bounds = array<i64: 4, 16, 16>}, {pipeline_mode = #tpu.pipeline_mode<synchronous>, transform_indices = @transform_7, window_bounds = array<i64: 4, 16, 64>}, {transform_indices = @transform_8, window_bounds = array<i64: 1, 16, 64>}]} {
    %c0 = arith.constant 0 : index
    %c0_0 = arith.constant 0 : index
    %c0_1 = arith.constant 0 : index
    %0 = vector.load %arg1[%c0, %c0_0, %c0_1] : memref<4x16x16xbf16, #tpu.memory_space<vmem>>, vector<4x16x16xbf16>
    %c0_2 = arith.constant 0 : index
    %c0_3 = arith.constant 0 : index
    %c0_4 = arith.constant 0 : index
    %1 = vector.load %arg4[%c0_2, %c0_3, %c0_4] : memref<4x16x16xbf16, #tpu.memory_space<vmem>>, vector<4x16x16xbf16>
    %cst = arith.constant dense<0.000000e+00> : vector<4x16x16xf32>
    %2 = tpu.matmul %0, %1, %cst {dimension_numbers = #tpu.dot_dimension_numbers<[2], [2], [1], [1], [0, 0, 0, 1, 1, 1], [0], [0]>} : vector<4x16x16xbf16>, vector<4x16x16xbf16>, vector<4x16x16xf32> -> vector<4x16x16xf32>
    %c0_5 = arith.constant 0 : index
    %c0_6 = arith.constant 0 : index
    %3 = vector.load %arg5[%c0_5, %c0_6] : memref<16x4xbf16, #tpu.memory_space<vmem>>, vector<16x4xbf16>
    %4 = vector.shape_cast %3 : vector<16x4xbf16> to vector<1x16x4xbf16>
    %5 = vector.shape_cast %4 : vector<1x16x4xbf16> to vector<1x16x4xbf16>
    %6 = vector.broadcast %5 : vector<1x16x4xbf16> to vector<4x16x4xbf16>
    %c0_7 = arith.constant 0 : index
    %c0_8 = arith.constant 0 : index
    %7 = vector.load %arg6[%c0_7, %c0_8] : memref<16x4xbf16, #tpu.memory_space<vmem>>, vector<16x4xbf16>
    %8 = vector.shape_cast %7 : vector<16x4xbf16> to vector<1x16x4xbf16>
    %9 = vector.shape_cast %8 : vector<1x16x4xbf16> to vector<1x16x4xbf16>
    %10 = vector.broadcast %9 : vector<1x16x4xbf16> to vector<4x16x4xbf16>
    %c0_9 = arith.constant 0 : index
    %c0_10 = arith.constant 0 : index
    %c0_11 = arith.constant 0 : index
    %11 = vector.load %arg2[%c0_9, %c0_10, %c0_11] : memref<4x16x4xbf16, #tpu.memory_space<vmem>>, vector<4x16x4xbf16>
    %cst_12 = arith.constant dense<0.000000e+00> : vector<4x16x16xf32>
    %12 = tpu.matmul %11, %6, %cst_12 {dimension_numbers = #tpu.dot_dimension_numbers<[2], [2], [1], [1], [0, 0, 0, 1, 1, 1], [0], [0]>} : vector<4x16x4xbf16>, vector<4x16x4xbf16>, vector<4x16x16xf32> -> vector<4x16x16xf32>
    %13 = arith.addf %2, %12 : vector<4x16x16xf32>
    %c0_13 = arith.constant 0 : index
    %c0_14 = arith.constant 0 : index
    %c0_15 = arith.constant 0 : index
    %14 = vector.load %arg3[%c0_13, %c0_14, %c0_15] : memref<4x16x4xbf16, #tpu.memory_space<vmem>>, vector<4x16x4xbf16>
    %cst_16 = arith.constant dense<0.000000e+00> : vector<4x16x16xf32>
    %15 = tpu.matmul %14, %10, %cst_16 {dimension_numbers = #tpu.dot_dimension_numbers<[2], [2], [1], [1], [0, 0, 0, 1, 1, 1], [0], [0]>} : vector<4x16x4xbf16>, vector<4x16x4xbf16>, vector<4x16x16xf32> -> vector<4x16x16xf32>
    %16 = arith.addf %13, %15 : vector<4x16x16xf32>
    %cst_17 = arith.constant 0.204124153 : f32
    %17 = vector.broadcast %cst_17 : f32 to vector<4x16x16xf32>
    %18 = arith.mulf %16, %17 : vector<4x16x16xf32>
    %cst_18 = arith.constant dense<0xFF800000> : vector<16x16xf32>
    %19 = vector.multi_reduction <maximumf>, %18, %cst_18 [0] : vector<4x16x16xf32> to vector<16x16xf32>
    %20 = vector.shape_cast %19 : vector<16x16xf32> to vector<1x16x16xf32>
    %21 = vector.broadcast %20 : vector<1x16x16xf32> to vector<4x16x16xf32>
    %22 = arith.subf %18, %21 : vector<4x16x16xf32>
    %23 = math.exp %22 : vector<4x16x16xf32>
    %cst_19 = arith.constant dense<0.000000e+00> : vector<16x16xf32>
    %24 = vector.multi_reduction <add>, %23, %cst_19 [0] : vector<4x16x16xf32> to vector<16x16xf32>
    %25 = vector.shape_cast %24 : vector<16x16xf32> to vector<1x16x16xf32>
    %26 = vector.broadcast %25 : vector<1x16x16xf32> to vector<4x16x16xf32>
    %27 = arith.divf %23, %26 : vector<4x16x16xf32>
    %28 = arith.truncf %27 : vector<4x16x16xf32> to vector<4x16x16xbf16>
    %c0_20 = arith.constant 0 : index
    %c0_21 = arith.constant 0 : index
    %c0_22 = arith.constant 0 : index
    %29 = vector.load %arg7[%c0_20, %c0_21, %c0_22] : memref<4x16x16xbf16, #tpu.memory_space<vmem>>, vector<4x16x16xbf16>
    %cst_23 = arith.constant dense<0.000000e+00> : vector<4x16x16xf32>
    %30 = tpu.matmul %28, %29, %cst_23 {dimension_numbers = #tpu.dot_dimension_numbers<[2], [1], [1], [2], [0, 0, 0, 1, 1, 2], [0], [0]>} : vector<4x16x16xbf16>, vector<4x16x16xbf16>, vector<4x16x16xf32> -> vector<4x16x16xf32>
    %31 = arith.truncf %30 : vector<4x16x16xf32> to vector<4x16x16xbf16>
    %c0_24 = arith.constant 0 : index
    %c0_25 = arith.constant 0 : index
    %c0_26 = arith.constant 0 : index
    %32 = vector.load %arg8[%c0_24, %c0_25, %c0_26] : memref<4x16x64xbf16, #tpu.memory_space<vmem>>, vector<4x16x64xbf16>
    %cst_27 = arith.constant dense<0.000000e+00> : vector<4x16x64xf32>
    %33 = tpu.matmul %31, %32, %cst_27 {dimension_numbers = #tpu.dot_dimension_numbers<[2], [1], [1], [2], [0, 0, 0, 1, 1, 2], [0], [0]>} : vector<4x16x16xbf16>, vector<4x16x64xbf16>, vector<4x16x64xf32> -> vector<4x16x64xf32>
    %cst_28 = arith.constant dense<0.000000e+00> : vector<16x64xf32>
    %34 = vector.multi_reduction <add>, %33, %cst_28 [0] : vector<4x16x64xf32> to vector<16x64xf32>
    %c0_29 = arith.constant 0 : index
    %c0_30 = arith.constant 0 : index
    %c0_31 = arith.constant 0 : index
    %35 = vector.load %arg9[%c0_29, %c0_30, %c0_31] : memref<1x16x64xf32, #tpu.memory_space<vmem>>, vector<1x16x64xf32>
    %36 = vector.shape_cast %35 : vector<1x16x64xf32> to vector<16x64xf32>
    %37 = vector.shape_cast %34 : vector<16x64xf32> to vector<1x16x64xf32>
    tpu.vector_store %arg9[%c0_29, %c0_30, %c0_31], %37 {strides = array<i32>} : memref<1x16x64xf32, #tpu.memory_space<vmem>>, vector<1x16x64xf32>,
    return
  }
  func.func @transform_0(%arg0: i32) -> (i32, i32, i32) {
    %c0_i32 = arith.constant 0 : i32
    %c0_i32_0 = arith.constant 0 : i32
    %c0_i32_1 = arith.constant 0 : i32
    return %c0_i32, %arg0, %c0_i32_0 : i32, i32, i32
  }
  func.func @transform_1(%arg0: i32) -> (i32, i32, i32) {
    %c0_i32 = arith.constant 0 : i32
    %c0_i32_0 = arith.constant 0 : i32
    %c0_i32_1 = arith.constant 0 : i32
    return %c0_i32, %arg0, %c0_i32_0 : i32, i32, i32
  }
  func.func @transform_2(%arg0: i32) -> (i32, i32, i32) {
    %c0_i32 = arith.constant 0 : i32
    %c0_i32_0 = arith.constant 0 : i32
    %c0_i32_1 = arith.constant 0 : i32
    return %c0_i32, %arg0, %c0_i32_0 : i32, i32, i32
  }
  func.func @transform_3(%arg0: i32) -> (i32, i32, i32) {
    %c0_i32 = arith.constant 0 : i32
    %c0_i32_0 = arith.constant 0 : i32
    %c0_i32_1 = arith.constant 0 : i32
    return %c0_i32, %arg0, %c0_i32_0 : i32, i32, i32
  }
  func.func @transform_4(%arg0: i32) -> (i32, i32) {
    %c0_i32 = arith.constant 0 : i32
    %c0_i32_0 = arith.constant 0 : i32
    return %arg0, %c0_i32 : i32, i32
  }
  func.func @transform_5(%arg0: i32) -> (i32, i32) {
    %c0_i32 = arith.constant 0 : i32
    %c0_i32_0 = arith.constant 0 : i32
    return %arg0, %c0_i32 : i32, i32
  }
  func.func @transform_6(%arg0: i32) -> (i32, i32, i32) {
    %c0_i32 = arith.constant 0 : i32
    %c0_i32_0 = arith.constant 0 : i32
    %c0_i32_1 = arith.constant 0 : i32
    return %c0_i32, %arg0, %c0_i32_0 : i32, i32, i32
  }
  func.func @transform_7(%arg0: i32) -> (i32, i32, i32) {
    %c0_i32 = arith.constant 0 : i32
    %c0_i32_0 = arith.constant 0 : i32
    %c0_i32_1 = arith.constant 0 : i32
    %c0_i32_2 = arith.constant 0 : i32
    return %c0_i32, %c0_i32_0, %c0_i32_1 : i32, i32, i32
  }
  func.func @transform_8(%arg0: i32) -> (i32, i32, i32) {
    %c0_i32 = arith.constant 0 : i32
    %c0_i32_0 = arith.constant 0 : i32
    %c0_i32_1 = arith.constant 0 : i32
    return %arg0, %c0_i32, %c0_i32_0 : i32, i32, i32
  }
}

module attributes {stable_mosaic.version = 11 : i64} {
  func.func @_proj_kernel(%arg0: i32, %arg1: memref<16x64xbf16, #tpu.memory_space<vmem>>, %arg2: memref<64x136xbf16, #tpu.memory_space<vmem>>, %arg3: memref<16x16xf32, #tpu.memory_space<vmem>>, %arg4: memref<16x16xf32, #tpu.memory_space<vmem>>, %arg5: memref<1x32xf32, #tpu.memory_space<vmem>>, %arg6: memref<1x32xf32, #tpu.memory_space<vmem>>, %arg7: memref<32x128xbf16, #tpu.memory_space<vmem>>, %arg8: memref<4x16x16xbf16, #tpu.memory_space<vmem>>, %arg9: memref<4x16x4xbf16, #tpu.memory_space<vmem>>, %arg10: memref<4x16x4xbf16, #tpu.memory_space<vmem>>, %arg11: memref<16x4xbf16, #tpu.memory_space<vmem>>, %arg12: memref<16x4xbf16, #tpu.memory_space<vmem>>, %arg13: memref<4x16x16xbf16, #tpu.memory_space<vmem>>, %arg14: memref<4x16x16xbf16, #tpu.memory_space<vmem>>) attributes {dimension_semantics = [#tpu.dimension_semantics<parallel>], iteration_bounds = array<i64: 2>, scalar_prefetch = 0 : i64, scratch_operands = 0 : i64, tpu.core_type = #tpu.core_type<tc>, window_params = [{transform_indices = @transform_0, window_bounds = array<i64: 16, 64>}, {pipeline_mode = #tpu.pipeline_mode<synchronous>, transform_indices = @transform_1, window_bounds = array<i64: 64, 136>}, {transform_indices = @transform_2, window_bounds = array<i64: 16, 16>}, {transform_indices = @transform_3, window_bounds = array<i64: 16, 16>}, {pipeline_mode = #tpu.pipeline_mode<synchronous>, transform_indices = @transform_4, window_bounds = array<i64: 1, 32>}, {pipeline_mode = #tpu.pipeline_mode<synchronous>, transform_indices = @transform_5, window_bounds = array<i64: 1, 32>}, {pipeline_mode = #tpu.pipeline_mode<synchronous>, transform_indices = @transform_6, window_bounds = array<i64: 32, 128>}, {transform_indices = @transform_7, window_bounds = array<i64: 4, 16, 16>}, {transform_indices = @transform_8, window_bounds = array<i64: 4, 16, 4>}, {transform_indices = @transform_9, window_bounds = array<i64: 4, 16, 4>}, {transform_indices = @transform_10, window_bounds = array<i64: 16, 4>}, {transform_indices = @transform_11, window_bounds = array<i64: 16, 4>}, {transform_indices = @transform_12, window_bounds = array<i64: 4, 16, 16>}, {transform_indices = @transform_13, window_bounds = array<i64: 4, 16, 16>}]} {
    %c0 = arith.constant 0 : index
    %c0_0 = arith.constant 0 : index
    %0 = vector.load %arg1[%c0, %c0_0] : memref<16x64xbf16, #tpu.memory_space<vmem>>, vector<16x64xbf16>
    %c0_1 = arith.constant 0 : index
    %c0_2 = arith.constant 0 : index
    %1 = vector.load %arg2[%c0_1, %c0_2] : memref<64x136xbf16, #tpu.memory_space<vmem>>, vector<64x136xbf16>
    %cst = arith.constant dense<0.000000e+00> : vector<16x136xf32>
    %2 = tpu.matmul %0, %1, %cst {dimension_numbers = #tpu.dot_dimension_numbers<[1], [0], [0], [1], [0, 0, 1, 1], [], []>} : vector<16x64xbf16>, vector<64x136xbf16>, vector<16x136xf32> -> vector<16x136xf32>
    %3 = vector.extract_strided_slice %2 {offsets = [0, 0], sizes = [16, 64], strides = [1, 1]} : vector<16x136xf32> to vector<16x64xf32>
    %4 = vector.extract_strided_slice %2 {offsets = [0, 64], sizes = [16, 16], strides = [1, 1]} : vector<16x136xf32> to vector<16x16xf32>
    %5 = vector.extract_strided_slice %2 {offsets = [0, 80], sizes = [16, 16], strides = [1, 1]} : vector<16x136xf32> to vector<16x16xf32>
    %6 = vector.extract_strided_slice %2 {offsets = [0, 96], sizes = [16, 32], strides = [1, 1]} : vector<16x136xf32> to vector<16x32xf32>
    %7 = vector.extract_strided_slice %2 {offsets = [0, 128], sizes = [16, 4], strides = [1, 1]} : vector<16x136xf32> to vector<16x4xf32>
    %8 = vector.extract_strided_slice %2 {offsets = [0, 132], sizes = [16, 4], strides = [1, 1]} : vector<16x136xf32> to vector<16x4xf32>
    %c0_3 = arith.constant 0 : index
    %c0_4 = arith.constant 0 : index
    %9 = vector.load %arg3[%c0_3, %c0_4] : memref<16x16xf32, #tpu.memory_space<vmem>>, vector<16x16xf32>
    %c0_5 = arith.constant 0 : index
    %c0_6 = arith.constant 0 : index
    %10 = vector.load %arg4[%c0_5, %c0_6] : memref<16x16xf32, #tpu.memory_space<vmem>>, vector<16x16xf32>
    %11 = arith.mulf %4, %9 : vector<16x16xf32>
    %12 = arith.mulf %5, %10 : vector<16x16xf32>
    %13 = arith.subf %11, %12 : vector<16x16xf32>
    %14 = arith.mulf %4, %10 : vector<16x16xf32>
    %15 = arith.mulf %5, %9 : vector<16x16xf32>
    %16 = arith.addf %14, %15 : vector<16x16xf32>
    %17 = vector.extract_strided_slice %9 {offsets = [0, 0], sizes = [16, 4], strides = [1, 1]} : vector<16x16xf32> to vector<16x4xf32>
    %18 = vector.extract_strided_slice %10 {offsets = [0, 0], sizes = [16, 4], strides = [1, 1]} : vector<16x16xf32> to vector<16x4xf32>
    %19 = arith.mulf %7, %17 : vector<16x4xf32>
    %20 = arith.mulf %8, %18 : vector<16x4xf32>
    %21 = arith.subf %19, %20 : vector<16x4xf32>
    %22 = arith.truncf %21 : vector<16x4xf32> to vector<16x4xbf16>
    %c0_7 = arith.constant 0 : index
    %c0_8 = arith.constant 0 : index
    %23 = vector.load %arg11[%c0_7, %c0_8] : memref<16x4xbf16, #tpu.memory_space<vmem>>, vector<16x4xbf16>
    tpu.vector_store %arg11[%c0_7, %c0_8], %22 {strides = array<i32>} : memref<16x4xbf16, #tpu.memory_space<vmem>>, vector<16x4xbf16>,
    %24 = arith.mulf %7, %18 : vector<16x4xf32>
    %25 = arith.mulf %8, %17 : vector<16x4xf32>
    %26 = arith.addf %24, %25 : vector<16x4xf32>
    %27 = arith.truncf %26 : vector<16x4xf32> to vector<16x4xbf16>
    %c0_9 = arith.constant 0 : index
    %c0_10 = arith.constant 0 : index
    %28 = vector.load %arg12[%c0_9, %c0_10] : memref<16x4xbf16, #tpu.memory_space<vmem>>, vector<16x4xbf16>
    tpu.vector_store %arg12[%c0_9, %c0_10], %27 {strides = array<i32>} : memref<16x4xbf16, #tpu.memory_space<vmem>>, vector<16x4xbf16>,
    %cst_11 = arith.constant dense<0.000000e+00> : vector<16xf32>
    %29 = vector.multi_reduction <add>, %6, %cst_11 [1] : vector<16x32xf32> to vector<16xf32>
    %30 = vector.shape_cast %29 : vector<16xf32> to vector<16x1xf32>
    %cst_12 = arith.constant 3.200000e+01 : f32
    %31 = vector.broadcast %cst_12 : f32 to vector<16x1xf32>
    %32 = arith.divf %30, %31 : vector<16x1xf32>
    %33 = vector.broadcast %32 : vector<16x1xf32> to vector<16x32xf32>
    %34 = arith.subf %6, %33 : vector<16x32xf32>
    %35 = arith.mulf %34, %34 : vector<16x32xf32>
    %cst_13 = arith.constant dense<0.000000e+00> : vector<16xf32>
    %36 = vector.multi_reduction <add>, %35, %cst_13 [1] : vector<16x32xf32> to vector<16xf32>
    %37 = vector.shape_cast %36 : vector<16xf32> to vector<16x1xf32>
    %cst_14 = arith.constant 3.200000e+01 : f32
    %38 = vector.broadcast %cst_14 : f32 to vector<16x1xf32>
    %39 = arith.divf %37, %38 : vector<16x1xf32>
    %40 = vector.broadcast %32 : vector<16x1xf32> to vector<16x32xf32>
    %41 = arith.subf %6, %40 : vector<16x32xf32>
    %cst_15 = arith.constant 9.99999974E-6 : f32
    %42 = vector.broadcast %cst_15 : f32 to vector<16x1xf32>
    %43 = arith.addf %39, %42 : vector<16x1xf32>
    %44 = math.rsqrt %43 : vector<16x1xf32>
    %45 = vector.broadcast %44 : vector<16x1xf32> to vector<16x32xf32>
    %46 = arith.mulf %41, %45 : vector<16x32xf32>
    %c0_16 = arith.constant 0 : index
    %c0_17 = arith.constant 0 : index
    %47 = vector.load %arg5[%c0_16, %c0_17] : memref<1x32xf32, #tpu.memory_space<vmem>>, vector<1x32xf32>
    %48 = vector.broadcast %47 : vector<1x32xf32> to vector<16x32xf32>
    %49 = arith.mulf %46, %48 : vector<16x32xf32>
    %c0_18 = arith.constant 0 : index
    %c0_19 = arith.constant 0 : index
    %50 = vector.load %arg6[%c0_18, %c0_19] : memref<1x32xf32, #tpu.memory_space<vmem>>, vector<1x32xf32>
    %51 = vector.broadcast %50 : vector<1x32xf32> to vector<16x32xf32>
    %52 = arith.addf %49, %51 : vector<16x32xf32>
    %53 = arith.truncf %52 : vector<16x32xf32> to vector<16x32xbf16>
    %c0_20 = arith.constant 0 : index
    %c0_21 = arith.constant 0 : index
    %54 = vector.load %arg7[%c0_20, %c0_21] : memref<32x128xbf16, #tpu.memory_space<vmem>>, vector<32x128xbf16>
    %cst_22 = arith.constant dense<0.000000e+00> : vector<16x128xf32>
    %55 = tpu.matmul %53, %54, %cst_22 {dimension_numbers = #tpu.dot_dimension_numbers<[1], [0], [0], [1], [0, 0, 1, 1], [], []>} : vector<16x32xbf16>, vector<32x128xbf16>, vector<16x128xf32> -> vector<16x128xf32>
    %56 = vector.extract_strided_slice %3 {offsets = [0, 0], sizes = [16, 16], strides = [1, 1]} : vector<16x64xf32> to vector<16x16xf32>
    %57 = arith.truncf %56 : vector<16x16xf32> to vector<16x16xbf16>
    %c0_23 = arith.constant 0 : index
    %c0_24 = arith.constant 0 : index
    %c0_25 = arith.constant 0 : index
    %58 = vector.load %arg8[%c0_23, %c0_24, %c0_25] : memref<4x16x16xbf16, #tpu.memory_space<vmem>>, vector<1x16x16xbf16>
    %59 = vector.shape_cast %58 : vector<1x16x16xbf16> to vector<16x16xbf16>
    %60 = vector.shape_cast %57 : vector<16x16xbf16> to vector<1x16x16xbf16>
    tpu.vector_store %arg8[%c0_23, %c0_24, %c0_25], %60 {strides = array<i32>} : memref<4x16x16xbf16, #tpu.memory_space<vmem>>, vector<1x16x16xbf16>,
    %61 = vector.extract_strided_slice %13 {offsets = [0, 0], sizes = [16, 4], strides = [1, 1]} : vector<16x16xf32> to vector<16x4xf32>
    %62 = arith.truncf %61 : vector<16x4xf32> to vector<16x4xbf16>
    %c0_26 = arith.constant 0 : index
    %c0_27 = arith.constant 0 : index
    %c0_28 = arith.constant 0 : index
    %63 = vector.load %arg9[%c0_26, %c0_27, %c0_28] : memref<4x16x4xbf16, #tpu.memory_space<vmem>>, vector<1x16x4xbf16>
    %64 = vector.shape_cast %63 : vector<1x16x4xbf16> to vector<16x4xbf16>
    %65 = vector.shape_cast %62 : vector<16x4xbf16> to vector<1x16x4xbf16>
    tpu.vector_store %arg9[%c0_26, %c0_27, %c0_28], %65 {strides = array<i32>} : memref<4x16x4xbf16, #tpu.memory_space<vmem>>, vector<1x16x4xbf16>,
    %66 = vector.extract_strided_slice %16 {offsets = [0, 0], sizes = [16, 4], strides = [1, 1]} : vector<16x16xf32> to vector<16x4xf32>
    %67 = arith.truncf %66 : vector<16x4xf32> to vector<16x4xbf16>
    %c0_29 = arith.constant 0 : index
    %c0_30 = arith.constant 0 : index
    %c0_31 = arith.constant 0 : index
    %68 = vector.load %arg10[%c0_29, %c0_30, %c0_31] : memref<4x16x4xbf16, #tpu.memory_space<vmem>>, vector<1x16x4xbf16>
    %69 = vector.shape_cast %68 : vector<1x16x4xbf16> to vector<16x4xbf16>
    %70 = vector.shape_cast %67 : vector<16x4xbf16> to vector<1x16x4xbf16>
    tpu.vector_store %arg10[%c0_29, %c0_30, %c0_31], %70 {strides = array<i32>} : memref<4x16x4xbf16, #tpu.memory_space<vmem>>, vector<1x16x4xbf16>,
    %71 = vector.extract_strided_slice %55 {offsets = [0, 0], sizes = [16, 16], strides = [1, 1]} : vector<16x128xf32> to vector<16x16xf32>
    %72 = arith.truncf %71 : vector<16x16xf32> to vector<16x16xbf16>
    %c0_32 = arith.constant 0 : index
    %c0_33 = arith.constant 0 : index
    %c0_34 = arith.constant 0 : index
    %73 = vector.load %arg13[%c0_32, %c0_33, %c0_34] : memref<4x16x16xbf16, #tpu.memory_space<vmem>>, vector<1x16x16xbf16>
    %74 = vector.shape_cast %73 : vector<1x16x16xbf16> to vector<16x16xbf16>
    %75 = vector.shape_cast %72 : vector<16x16xbf16> to vector<1x16x16xbf16>
    tpu.vector_store %arg13[%c0_32, %c0_33, %c0_34], %75 {strides = array<i32>} : memref<4x16x16xbf16, #tpu.memory_space<vmem>>, vector<1x16x16xbf16>,
    %76 = vector.extract_strided_slice %55 {offsets = [0, 64], sizes = [16, 16], strides = [1, 1]} : vector<16x128xf32> to vector<16x16xf32>
    %77 = arith.truncf %76 : vector<16x16xf32> to vector<16x16xbf16>
    %c0_35 = arith.constant 0 : index
    %c0_36 = arith.constant 0 : index
    %c0_37 = arith.constant 0 : index
    %78 = vector.load %arg14[%c0_35, %c0_36, %c0_37] : memref<4x16x16xbf16, #tpu.memory_space<vmem>>, vector<1x16x16xbf16>
    %79 = vector.shape_cast %78 : vector<1x16x16xbf16> to vector<16x16xbf16>
    %80 = vector.shape_cast %77 : vector<16x16xbf16> to vector<1x16x16xbf16>
    tpu.vector_store %arg14[%c0_35, %c0_36, %c0_37], %80 {strides = array<i32>} : memref<4x16x16xbf16, #tpu.memory_space<vmem>>, vector<1x16x16xbf16>,
    %81 = vector.extract_strided_slice %3 {offsets = [0, 16], sizes = [16, 16], strides = [1, 1]} : vector<16x64xf32> to vector<16x16xf32>
    %82 = arith.truncf %81 : vector<16x16xf32> to vector<16x16xbf16>
    %c1 = arith.constant 1 : index
    %c0_38 = arith.constant 0 : index
    %c0_39 = arith.constant 0 : index
    %83 = vector.load %arg8[%c1, %c0_38, %c0_39] : memref<4x16x16xbf16, #tpu.memory_space<vmem>>, vector<1x16x16xbf16>
    %84 = vector.shape_cast %83 : vector<1x16x16xbf16> to vector<16x16xbf16>
    %85 = vector.shape_cast %82 : vector<16x16xbf16> to vector<1x16x16xbf16>
    tpu.vector_store %arg8[%c1, %c0_38, %c0_39], %85 {strides = array<i32>} : memref<4x16x16xbf16, #tpu.memory_space<vmem>>, vector<1x16x16xbf16>,
    %86 = vector.extract_strided_slice %13 {offsets = [0, 4], sizes = [16, 4], strides = [1, 1]} : vector<16x16xf32> to vector<16x4xf32>
    %87 = arith.truncf %86 : vector<16x4xf32> to vector<16x4xbf16>
    %c1_40 = arith.constant 1 : index
    %c0_41 = arith.constant 0 : index
    %c0_42 = arith.constant 0 : index
    %88 = vector.load %arg9[%c1_40, %c0_41, %c0_42] : memref<4x16x4xbf16, #tpu.memory_space<vmem>>, vector<1x16x4xbf16>
    %89 = vector.shape_cast %88 : vector<1x16x4xbf16> to vector<16x4xbf16>
    %90 = vector.shape_cast %87 : vector<16x4xbf16> to vector<1x16x4xbf16>
    tpu.vector_store %arg9[%c1_40, %c0_41, %c0_42], %90 {strides = array<i32>} : memref<4x16x4xbf16, #tpu.memory_space<vmem>>, vector<1x16x4xbf16>,
    %91 = vector.extract_strided_slice %16 {offsets = [0, 4], sizes = [16, 4], strides = [1, 1]} : vector<16x16xf32> to vector<16x4xf32>
    %92 = arith.truncf %91 : vector<16x4xf32> to vector<16x4xbf16>
    %c1_43 = arith.constant 1 : index
    %c0_44 = arith.constant 0 : index
    %c0_45 = arith.constant 0 : index
    %93 = vector.load %arg10[%c1_43, %c0_44, %c0_45] : memref<4x16x4xbf16, #tpu.memory_space<vmem>>, vector<1x16x4xbf16>
    %94 = vector.shape_cast %93 : vector<1x16x4xbf16> to vector<16x4xbf16>
    %95 = vector.shape_cast %92 : vector<16x4xbf16> to vector<1x16x4xbf16>
    tpu.vector_store %arg10[%c1_43, %c0_44, %c0_45], %95 {strides = array<i32>} : memref<4x16x4xbf16, #tpu.memory_space<vmem>>, vector<1x16x4xbf16>,
    %96 = vector.extract_strided_slice %55 {offsets = [0, 16], sizes = [16, 16], strides = [1, 1]} : vector<16x128xf32> to vector<16x16xf32>
    %97 = arith.truncf %96 : vector<16x16xf32> to vector<16x16xbf16>
    %c1_46 = arith.constant 1 : index
    %c0_47 = arith.constant 0 : index
    %c0_48 = arith.constant 0 : index
    %98 = vector.load %arg13[%c1_46, %c0_47, %c0_48] : memref<4x16x16xbf16, #tpu.memory_space<vmem>>, vector<1x16x16xbf16>
    %99 = vector.shape_cast %98 : vector<1x16x16xbf16> to vector<16x16xbf16>
    %100 = vector.shape_cast %97 : vector<16x16xbf16> to vector<1x16x16xbf16>
    tpu.vector_store %arg13[%c1_46, %c0_47, %c0_48], %100 {strides = array<i32>} : memref<4x16x16xbf16, #tpu.memory_space<vmem>>, vector<1x16x16xbf16>,
    %101 = vector.extract_strided_slice %55 {offsets = [0, 80], sizes = [16, 16], strides = [1, 1]} : vector<16x128xf32> to vector<16x16xf32>
    %102 = arith.truncf %101 : vector<16x16xf32> to vector<16x16xbf16>
    %c1_49 = arith.constant 1 : index
    %c0_50 = arith.constant 0 : index
    %c0_51 = arith.constant 0 : index
    %103 = vector.load %arg14[%c1_49, %c0_50, %c0_51] : memref<4x16x16xbf16, #tpu.memory_space<vmem>>, vector<1x16x16xbf16>
    %104 = vector.shape_cast %103 : vector<1x16x16xbf16> to vector<16x16xbf16>
    %105 = vector.shape_cast %102 : vector<16x16xbf16> to vector<1x16x16xbf16>
    tpu.vector_store %arg14[%c1_49, %c0_50, %c0_51], %105 {strides = array<i32>} : memref<4x16x16xbf16, #tpu.memory_space<vmem>>, vector<1x16x16xbf16>,
    %106 = vector.extract_strided_slice %3 {offsets = [0, 32], sizes = [16, 16], strides = [1, 1]} : vector<16x64xf32> to vector<16x16xf32>
    %107 = arith.truncf %106 : vector<16x16xf32> to vector<16x16xbf16>
    %c2 = arith.constant 2 : index
    %c0_52 = arith.constant 0 : index
    %c0_53 = arith.constant 0 : index
    %108 = vector.load %arg8[%c2, %c0_52, %c0_53] : memref<4x16x16xbf16, #tpu.memory_space<vmem>>, vector<1x16x16xbf16>
    %109 = vector.shape_cast %108 : vector<1x16x16xbf16> to vector<16x16xbf16>
    %110 = vector.shape_cast %107 : vector<16x16xbf16> to vector<1x16x16xbf16>
    tpu.vector_store %arg8[%c2, %c0_52, %c0_53], %110 {strides = array<i32>} : memref<4x16x16xbf16, #tpu.memory_space<vmem>>, vector<1x16x16xbf16>,
    %111 = vector.extract_strided_slice %13 {offsets = [0, 8], sizes = [16, 4], strides = [1, 1]} : vector<16x16xf32> to vector<16x4xf32>
    %112 = arith.truncf %111 : vector<16x4xf32> to vector<16x4xbf16>
    %c2_54 = arith.constant 2 : index
    %c0_55 = arith.constant 0 : index
    %c0_56 = arith.constant 0 : index
    %113 = vector.load %arg9[%c2_54, %c0_55, %c0_56] : memref<4x16x4xbf16, #tpu.memory_space<vmem>>, vector<1x16x4xbf16>
    %114 = vector.shape_cast %113 : vector<1x16x4xbf16> to vector<16x4xbf16>
    %115 = vector.shape_cast %112 : vector<16x4xbf16> to vector<1x16x4xbf16>
    tpu.vector_store %arg9[%c2_54, %c0_55, %c0_56], %115 {strides = array<i32>} : memref<4x16x4xbf16, #tpu.memory_space<vmem>>, vector<1x16x4xbf16>,
    %116 = vector.extract_strided_slice %16 {offsets = [0, 8], sizes = [16, 4], strides = [1, 1]} : vector<16x16xf32> to vector<16x4xf32>
    %117 = arith.truncf %116 : vector<16x4xf32> to vector<16x4xbf16>
    %c2_57 = arith.constant 2 : index
    %c0_58 = arith.constant 0 : index
    %c0_59 = arith.constant 0 : index
    %118 = vector.load %arg10[%c2_57, %c0_58, %c0_59] : memref<4x16x4xbf16, #tpu.memory_space<vmem>>, vector<1x16x4xbf16>
    %119 = vector.shape_cast %118 : vector<1x16x4xbf16> to vector<16x4xbf16>
    %120 = vector.shape_cast %117 : vector<16x4xbf16> to vector<1x16x4xbf16>
    tpu.vector_store %arg10[%c2_57, %c0_58, %c0_59], %120 {strides = array<i32>} : memref<4x16x4xbf16, #tpu.memory_space<vmem>>, vector<1x16x4xbf16>,
    %121 = vector.extract_strided_slice %55 {offsets = [0, 32], sizes = [16, 16], strides = [1, 1]} : vector<16x128xf32> to vector<16x16xf32>
    %122 = arith.truncf %121 : vector<16x16xf32> to vector<16x16xbf16>
    %c2_60 = arith.constant 2 : index
    %c0_61 = arith.constant 0 : index
    %c0_62 = arith.constant 0 : index
    %123 = vector.load %arg13[%c2_60, %c0_61, %c0_62] : memref<4x16x16xbf16, #tpu.memory_space<vmem>>, vector<1x16x16xbf16>
    %124 = vector.shape_cast %123 : vector<1x16x16xbf16> to vector<16x16xbf16>
    %125 = vector.shape_cast %122 : vector<16x16xbf16> to vector<1x16x16xbf16>
    tpu.vector_store %arg13[%c2_60, %c0_61, %c0_62], %125 {strides = array<i32>} : memref<4x16x16xbf16, #tpu.memory_space<vmem>>, vector<1x16x16xbf16>,
    %126 = vector.extract_strided_slice %55 {offsets = [0, 96], sizes = [16, 16], strides = [1, 1]} : vector<16x128xf32> to vector<16x16xf32>
    %127 = arith.truncf %126 : vector<16x16xf32> to vector<16x16xbf16>
    %c2_63 = arith.constant 2 : index
    %c0_64 = arith.constant 0 : index
    %c0_65 = arith.constant 0 : index
    %128 = vector.load %arg14[%c2_63, %c0_64, %c0_65] : memref<4x16x16xbf16, #tpu.memory_space<vmem>>, vector<1x16x16xbf16>
    %129 = vector.shape_cast %128 : vector<1x16x16xbf16> to vector<16x16xbf16>
    %130 = vector.shape_cast %127 : vector<16x16xbf16> to vector<1x16x16xbf16>
    tpu.vector_store %arg14[%c2_63, %c0_64, %c0_65], %130 {strides = array<i32>} : memref<4x16x16xbf16, #tpu.memory_space<vmem>>, vector<1x16x16xbf16>,
    %131 = vector.extract_strided_slice %3 {offsets = [0, 48], sizes = [16, 16], strides = [1, 1]} : vector<16x64xf32> to vector<16x16xf32>
    %132 = arith.truncf %131 : vector<16x16xf32> to vector<16x16xbf16>
    %c3 = arith.constant 3 : index
    %c0_66 = arith.constant 0 : index
    %c0_67 = arith.constant 0 : index
    %133 = vector.load %arg8[%c3, %c0_66, %c0_67] : memref<4x16x16xbf16, #tpu.memory_space<vmem>>, vector<1x16x16xbf16>
    %134 = vector.shape_cast %133 : vector<1x16x16xbf16> to vector<16x16xbf16>
    %135 = vector.shape_cast %132 : vector<16x16xbf16> to vector<1x16x16xbf16>
    tpu.vector_store %arg8[%c3, %c0_66, %c0_67], %135 {strides = array<i32>} : memref<4x16x16xbf16, #tpu.memory_space<vmem>>, vector<1x16x16xbf16>,
    %136 = vector.extract_strided_slice %13 {offsets = [0, 12], sizes = [16, 4], strides = [1, 1]} : vector<16x16xf32> to vector<16x4xf32>
    %137 = arith.truncf %136 : vector<16x4xf32> to vector<16x4xbf16>
    %c3_68 = arith.constant 3 : index
    %c0_69 = arith.constant 0 : index
    %c0_70 = arith.constant 0 : index
    %138 = vector.load %arg9[%c3_68, %c0_69, %c0_70] : memref<4x16x4xbf16, #tpu.memory_space<vmem>>, vector<1x16x4xbf16>
    %139 = vector.shape_cast %138 : vector<1x16x4xbf16> to vector<16x4xbf16>
    %140 = vector.shape_cast %137 : vector<16x4xbf16> to vector<1x16x4xbf16>
    tpu.vector_store %arg9[%c3_68, %c0_69, %c0_70], %140 {strides = array<i32>} : memref<4x16x4xbf16, #tpu.memory_space<vmem>>, vector<1x16x4xbf16>,
    %141 = vector.extract_strided_slice %16 {offsets = [0, 12], sizes = [16, 4], strides = [1, 1]} : vector<16x16xf32> to vector<16x4xf32>
    %142 = arith.truncf %141 : vector<16x4xf32> to vector<16x4xbf16>
    %c3_71 = arith.constant 3 : index
    %c0_72 = arith.constant 0 : index
    %c0_73 = arith.constant 0 : index
    %143 = vector.load %arg10[%c3_71, %c0_72, %c0_73] : memref<4x16x4xbf16, #tpu.memory_space<vmem>>, vector<1x16x4xbf16>
    %144 = vector.shape_cast %143 : vector<1x16x4xbf16> to vector<16x4xbf16>
    %145 = vector.shape_cast %142 : vector<16x4xbf16> to vector<1x16x4xbf16>
    tpu.vector_store %arg10[%c3_71, %c0_72, %c0_73], %145 {strides = array<i32>} : memref<4x16x4xbf16, #tpu.memory_space<vmem>>, vector<1x16x4xbf16>,
    %146 = vector.extract_strided_slice %55 {offsets = [0, 48], sizes = [16, 16], strides = [1, 1]} : vector<16x128xf32> to vector<16x16xf32>
    %147 = arith.truncf %146 : vector<16x16xf32> to vector<16x16xbf16>
    %c3_74 = arith.constant 3 : index
    %c0_75 = arith.constant 0 : index
    %c0_76 = arith.constant 0 : index
    %148 = vector.load %arg13[%c3_74, %c0_75, %c0_76] : memref<4x16x16xbf16, #tpu.memory_space<vmem>>, vector<1x16x16xbf16>
    %149 = vector.shape_cast %148 : vector<1x16x16xbf16> to vector<16x16xbf16>
    %150 = vector.shape_cast %147 : vector<16x16xbf16> to vector<1x16x16xbf16>
    tpu.vector_store %arg13[%c3_74, %c0_75, %c0_76], %150 {strides = array<i32>} : memref<4x16x16xbf16, #tpu.memory_space<vmem>>, vector<1x16x16xbf16>,
    %151 = vector.extract_strided_slice %55 {offsets = [0, 112], sizes = [16, 16], strides = [1, 1]} : vector<16x128xf32> to vector<16x16xf32>
    %152 = arith.truncf %151 : vector<16x16xf32> to vector<16x16xbf16>
    %c3_77 = arith.constant 3 : index
    %c0_78 = arith.constant 0 : index
    %c0_79 = arith.constant 0 : index
    %153 = vector.load %arg14[%c3_77, %c0_78, %c0_79] : memref<4x16x16xbf16, #tpu.memory_space<vmem>>, vector<1x16x16xbf16>
    %154 = vector.shape_cast %153 : vector<1x16x16xbf16> to vector<16x16xbf16>
    %155 = vector.shape_cast %152 : vector<16x16xbf16> to vector<1x16x16xbf16>
    tpu.vector_store %arg14[%c3_77, %c0_78, %c0_79], %155 {strides = array<i32>} : memref<4x16x16xbf16, #tpu.memory_space<vmem>>, vector<1x16x16xbf16>,
    return
  }
  func.func @transform_0(%arg0: i32) -> (i32, i32) {
    %c0_i32 = arith.constant 0 : i32
    %c0_i32_0 = arith.constant 0 : i32
    return %arg0, %c0_i32 : i32, i32
  }
  func.func @transform_1(%arg0: i32) -> (i32, i32) {
    %c0_i32 = arith.constant 0 : i32
    %c0_i32_0 = arith.constant 0 : i32
    %c0_i32_1 = arith.constant 0 : i32
    return %c0_i32, %c0_i32_0 : i32, i32
  }
  func.func @transform_2(%arg0: i32) -> (i32, i32) {
    %c0_i32 = arith.constant 0 : i32
    %c0_i32_0 = arith.constant 0 : i32
    return %arg0, %c0_i32 : i32, i32
  }
  func.func @transform_3(%arg0: i32) -> (i32, i32) {
    %c0_i32 = arith.constant 0 : i32
    %c0_i32_0 = arith.constant 0 : i32
    return %arg0, %c0_i32 : i32, i32
  }
  func.func @transform_4(%arg0: i32) -> (i32, i32) {
    %c0_i32 = arith.constant 0 : i32
    %c0_i32_0 = arith.constant 0 : i32
    %c0_i32_1 = arith.constant 0 : i32
    return %c0_i32, %c0_i32_0 : i32, i32
  }
  func.func @transform_5(%arg0: i32) -> (i32, i32) {
    %c0_i32 = arith.constant 0 : i32
    %c0_i32_0 = arith.constant 0 : i32
    %c0_i32_1 = arith.constant 0 : i32
    return %c0_i32, %c0_i32_0 : i32, i32
  }
  func.func @transform_6(%arg0: i32) -> (i32, i32) {
    %c0_i32 = arith.constant 0 : i32
    %c0_i32_0 = arith.constant 0 : i32
    %c0_i32_1 = arith.constant 0 : i32
    return %c0_i32, %c0_i32_0 : i32, i32
  }
  func.func @transform_7(%arg0: i32) -> (i32, i32, i32) {
    %c0_i32 = arith.constant 0 : i32
    %c0_i32_0 = arith.constant 0 : i32
    %c0_i32_1 = arith.constant 0 : i32
    return %c0_i32, %arg0, %c0_i32_0 : i32, i32, i32
  }
  func.func @transform_8(%arg0: i32) -> (i32, i32, i32) {
    %c0_i32 = arith.constant 0 : i32
    %c0_i32_0 = arith.constant 0 : i32
    %c0_i32_1 = arith.constant 0 : i32
    return %c0_i32, %arg0, %c0_i32_0 : i32, i32, i32
  }
  func.func @transform_9(%arg0: i32) -> (i32, i32, i32) {
    %c0_i32 = arith.constant 0 : i32
    %c0_i32_0 = arith.constant 0 : i32
    %c0_i32_1 = arith.constant 0 : i32
    return %c0_i32, %arg0, %c0_i32_0 : i32, i32, i32
  }
  func.func @transform_10(%arg0: i32) -> (i32, i32) {
    %c0_i32 = arith.constant 0 : i32
    %c0_i32_0 = arith.constant 0 : i32
    return %arg0, %c0_i32 : i32, i32
  }
  func.func @transform_11(%arg0: i32) -> (i32, i32) {
    %c0_i32 = arith.constant 0 : i32
    %c0_i32_0 = arith.constant 0 : i32
    return %arg0, %c0_i32 : i32, i32
  }
  func.func @transform_12(%arg0: i32) -> (i32, i32, i32) {
    %c0_i32 = arith.constant 0 : i32
    %c0_i32_0 = arith.constant 0 : i32
    %c0_i32_1 = arith.constant 0 : i32
    return %c0_i32, %arg0, %c0_i32_0 : i32, i32, i32
  }
  func.func @transform_13(%arg0: i32) -> (i32, i32, i32) {
    %c0_i32 = arith.constant 0 : i32
    %c0_i32_0 = arith.constant 0 : i32
    %c0_i32_1 = arith.constant 0 : i32
    return %c0_i32, %arg0, %c0_i32_0 : i32, i32, i32
  }
}

</mosaic_0001>

<llo_original>
// kernel: mla_forward.2
$region0: #{mla_forward.2}
  #allocation0 [shape = 'u32[]', space=smem, size = 0x4, offset = 0x4, fixed_abs, tag = 'smem constant byte address 0x4 - core index']
  #allocation1 [shape = 'u32[144,128]{1,0:T(1,128)}', space=vmem, size = 0x12000, scoped, tag = 'internal scratch']
  %s0 = inlined_call_operand.vmem [shape: bf16[32,64], index: 0, kind: input, shape index: {}]
  %s1 = inlined_call_operand.vmem [shape: bf16[64,136], index: 1, kind: input, shape index: {}]
  %s2 = inlined_call_operand.vmem [shape: f32[32,16], index: 2, kind: input, shape index: {}]
  %s3 = inlined_call_operand.vmem [shape: f32[32,16], index: 3, kind: input, shape index: {}]
  %s4 = inlined_call_operand.vmem [shape: f32[1,32], index: 4, kind: input, shape index: {}]
  %s5 = inlined_call_operand.vmem [shape: f32[1,32], index: 5, kind: input, shape index: {}]
  %s6 = inlined_call_operand.vmem [shape: bf16[32,128], index: 6, kind: input, shape index: {}]
  %s7 = inlined_call_operand.vmem [shape: bf16[4,32,16], index: 7, kind: output, shape index: {0}]
  %s8 = inlined_call_operand.vmem [shape: bf16[4,32,4], index: 8, kind: output, shape index: {1}]
  %s9 = inlined_call_operand.vmem [shape: bf16[4,32,4], index: 9, kind: output, shape index: {2}]
  %s10 = inlined_call_operand.vmem [shape: bf16[32,4], index: 10, kind: output, shape index: {3}]
  %s11 = inlined_call_operand.vmem [shape: bf16[32,4], index: 11, kind: output, shape index: {4}]
  %s12 = inlined_call_operand.vmem [shape: bf16[4,32,16], index: 12, kind: output, shape index: {5}]
  %s13 = inlined_call_operand.vmem [shape: bf16[4,32,16], index: 13, kind: output, shape index: {6}]
  %14 = xla_tuple %s7, %s8, %s9, %s10, %s11, %s12, %s13
  %s15 = sld [smem:[#allocation0]]
  $region294: #{mla_forward.2} parent=0
    _
  %s17 = ssub.s32 1, %s15
  %s18 = scalar_select 0, %s17, %s15
  $region1: #{mla_forward.2} parent=0
    #allocation2 [shape = 'u8[32768]{0}', space=vmem, size = 0x8000, scoped, tag = 'output window, operand 0']
    #allocation3 [shape = 'u8[32768]{0}', space=vmem, size = 0x8000, scoped, tag = 'output window, operand 1']
    #allocation4 [shape = 'u8[32768]{0}', space=vmem, size = 0x8000, scoped, tag = 'output window, operand 2']
    #allocation5 [shape = 'u8[32768]{0}', space=vmem, size = 0x8000, scoped, tag = 'output window, operand 5']
    #allocation6 [shape = 'u8[32768]{0}', space=vmem, size = 0x8000, scoped, tag = 'output window, operand 6']
    loop: start=0, step=1, limit=4
    $region2: #{mla_forward.2} parent=1 // loop_pre_header
      _
    $region3: #{mla_forward.2} parent=1 // loop_header
      %s20 = sphi 0, %s24
      %p21 = scmp.ge.s32.totalorder %s20, 4
      %s30 = sphi 0, %s32
      %s33 = sphi 0, %s30
      %s34 = sphi 0, %s33
      %s50 = sphi 0, %s34
      %s54 = sphi 0, %s54
      %s56 = sphi 0, %s54
      %s57 = sphi 0, %s56
      %s71 = sphi 0, %s57
      %s77 = sphi 0, %s79
      %s80 = sphi 0, %s77
      %s81 = sphi 0, %s80
      %s97 = sphi 0, %s81
      %s103 = sphi 0, %s105
      %s106 = sphi 0, %s103
      %s107 = sphi 0, %s106
      %s123 = sphi 0, %s107
      %s127 = sphi 0, %s127
      %s129 = sphi 0, %s127
      %s130 = sphi 0, %s129
      %s144 = sphi 0, %s130
      %s148 = sphi 0, %s148
      %s150 = sphi 0, %s148
      %s151 = sphi 0, %s150
      %s165 = sphi 0, %s151
      %s169 = sphi 0, %s169
      %s171 = sphi 0, %s169
      %s172 = sphi 0, %s171
      %s186 = sphi 0, %s172
      %s192 = sphi 0, %s194
      %s195 = sphi 0, %s192
      %s196 = sphi 0, %s195
      %s212 = sphi 0, %s196
      %s218 = sphi 0, %s220
      %s221 = sphi 0, %s218
      %s222 = sphi 0, %s221
      %s238 = sphi 0, %s222
      %s244 = sphi 0, %s246
      %s247 = sphi 0, %s244
      %s248 = sphi 0, %s247
      %s264 = sphi 0, %s248
      %s270 = sphi 0, %s272
      %s273 = sphi 0, %s270
      %s274 = sphi 0, %s273
      %s290 = sphi 0, %s274
      %s296 = sphi 0, %s298
      %s299 = sphi 0, %s296
      %s300 = sphi 0, %s299
      %s316 = sphi 0, %s300
      %s322 = sphi 0, %s324
      %s325 = sphi 0, %s322
      %s326 = sphi 0, %s325
      %s342 = sphi 0, %s326
      %s348 = sphi 0, %s350
      %s351 = sphi 0, %s348
      %s352 = sphi 0, %s351
      %s368 = sphi 0, %s352
    $region4: #{mla_forward.2} parent=1 // loop_header_branch
      %23 = sbr.rel (%p21) target = $region8
    $region5: #{mla_forward.2} parent=1 // loop_body
      %s25 = ssub.s32 %s20, 1
      %s26 = ssub.s32 %s20, 2
      %s27 = sadd.s32 %s20, 1
      %s28 = ssub.s32 %s20, %s27
      %p29 = scmp.eq.s32.totalorder %s28, 0
      %s31 = sadd.s32 %s30, 1
      %s32 = scalar_select %p29, %s30, %s31
      %p35 = pneg %p29
      %p36 = scmp.eq.s32.totalorder %s20, 1
      %p37 = por %p35, %p36
      %p38 = scmp.ne.s32.totalorder %s30, %s33
      %p39 = scmp.eq.s32.totalorder %s20, 0
      %p40 = por %p38, %p39
      %p41 = scmp.ne.s32.totalorder %s30, %s33
      %p42 = scmp.eq.s32.totalorder %s25, 1
      %p43 = por %p41, %p42
      %p44 = scmp.ne.s32.totalorder %s33, %s34
      %p45 = scmp.eq.s32.totalorder %s25, 0
      %p46 = por %p44, %p45
      %p47 = scmp.ne.s32.totalorder %s33, %s34
      %p48 = scmp.eq.s32.totalorder %s26, 1
      %p49 = por %p47, %p48
      %p51 = scmp.ne.s32.totalorder %s34, %s50
      %p52 = scmp.eq.s32.totalorder %s26, 0
      %p53 = por %p51, %p52
      %s55 = sadd.s32 %s54, 1
      %p58 = scmp.eq.s32.totalorder %s20, 1
      %p59 = scmp.ne.s32.totalorder %s54, %s56
      %p60 = scmp.eq.s32.totalorder %s20, 0
      %p61 = por %p59, %p60
      %p62 = scmp.ne.s32.totalorder %s54, %s56
      %p63 = scmp.eq.s32.totalorder %s25, 1
      %p64 = por %p62, %p63
      %p65 = scmp.ne.s32.totalorder %s56, %s57
      %p66 = scmp.eq.s32.totalorder %s25, 0
      %p67 = por %p65, %p66
      %p68 = scmp.ne.s32.totalorder %s56, %s57
      %p69 = scmp.eq.s32.totalorder %s26, 1
      %p70 = por %p68, %p69
      %p72 = scmp.ne.s32.totalorder %s57, %s71
      %p73 = scmp.eq.s32.totalorder %s26, 0
      %p74 = por %p72, %p73
      %s75 = ssub.s32 %s20, %s27
      %p76 = scmp.eq.s32.totalorder %s75, 0
      %s78 = sadd.s32 %s77, 1
      %s79 = scalar_select %p76, %s77, %s78
      %p82 = pneg %p76
      %p83 = scmp.eq.s32.totalorder %s20, 1
      %p84 = por %p82, %p83
      %p85 = scmp.ne.s32.totalorder %s77, %s80
      %p86 = scmp.eq.s32.totalorder %s20, 0
      %p87 = por %p85, %p86
      %p88 = scmp.ne.s32.totalorder %s77, %s80
      %p89 = scmp.eq.s32.totalorder %s25, 1
      %p90 = por %p88, %p89
      %p91 = scmp.ne.s32.totalorder %s80, %s81
      %p92 = scmp.eq.s32.totalorder %s25, 0
      %p93 = por %p91, %p92
      %p94 = scmp.ne.s32.totalorder %s80, %s81
      %p95 = scmp.eq.s32.totalorder %s26, 1
      %p96 = por %p94, %p95
      %p98 = scmp.ne.s32.totalorder %s81, %s97
      %p99 = scmp.eq.s32.totalorder %s26, 0
      %p100 = por %p98, %p99
      %s101 = ssub.s32 %s20, %s27
      %p102 = scmp.eq.s32.totalorder %s101, 0
      %s104 = sadd.s32 %s103, 1
      %s105 = scalar_select %p102, %s103, %s104
      %p108 = pneg %p102
      %p109 = scmp.eq.s32.totalorder %s20, 1
      %p110 = por %p108, %p109
      %p111 = scmp.ne.s32.totalorder %s103, %s106
      %p112 = scmp.eq.s32.totalorder %s20, 0
      %p113 = por %p111, %p112
      %p114 = scmp.ne.s32.totalorder %s103, %s106
      %p115 = scmp.eq.s32.totalorder %s25, 1
      %p116 = por %p114, %p115
      %p117 = scmp.ne.s32.totalorder %s106, %s107
      %p118 = scmp.eq.s32.totalorder %s25, 0
      %p119 = por %p117, %p118
      %p120 = scmp.ne.s32.totalorder %s106, %s107
      %p121 = scmp.eq.s32.totalorder %s26, 1
      %p122 = por %p120, %p121
      %p124 = scmp.ne.s32.totalorder %s107, %s123
      %p125 = scmp.eq.s32.totalorder %s26, 0
      %p126 = por %p124, %p125
      %s128 = sadd.s32 %s127, 1
      %p131 = scmp.eq.s32.totalorder %s20, 1
      %p132 = scmp.ne.s32.totalorder %s127, %s129
      %p133 = scmp.eq.s32.totalorder %s20, 0
      %p134 = por %p132, %p133
      %p135 = scmp.ne.s32.totalorder %s127, %s129
      %p136 = scmp.eq.s32.totalorder %s25, 1
      %p137 = por %p135, %p136
      %p138 = scmp.ne.s32.totalorder %s129, %s130
      %p139 = scmp.eq.s32.totalorder %s25, 0
      %p140 = por %p138, %p139
      %p141 = scmp.ne.s32.totalorder %s129, %s130
      %p142 = scmp.eq.s32.totalorder %s26, 1
      %p143 = por %p141, %p142
      %p145 = scmp.ne.s32.totalorder %s130, %s144
      %p146 = scmp.eq.s32.totalorder %s26, 0
      %p147 = por %p145, %p146
      %s149 = sadd.s32 %s148, 1
      %p152 = scmp.eq.s32.totalorder %s20, 1
      %p153 = scmp.ne.s32.totalorder %s148, %s150
      %p154 = scmp.eq.s32.totalorder %s20, 0
      %p155 = por %p153, %p154
      %p156 = scmp.ne.s32.totalorder %s148, %s150
      %p157 = scmp.eq.s32.totalorder %s25, 1
      %p158 = por %p156, %p157
      %p159 = scmp.ne.s32.totalorder %s150, %s151
      %p160 = scmp.eq.s32.totalorder %s25, 0
      %p161 = por %p159, %p160
      %p162 = scmp.ne.s32.totalorder %s150, %s151
      %p163 = scmp.eq.s32.totalorder %s26, 1
      %p164 = por %p162, %p163
      %p166 = scmp.ne.s32.totalorder %s151, %s165
      %p167 = scmp.eq.s32.totalorder %s26, 0
      %p168 = por %p166, %p167
      %s170 = sadd.s32 %s169, 1
      %p173 = scmp.eq.s32.totalorder %s20, 1
      %p174 = scmp.ne.s32.totalorder %s169, %s171
      %p175 = scmp.eq.s32.totalorder %s20, 0
      %p176 = por %p174, %p175
      %p177 = scmp.ne.s32.totalorder %s169, %s171
      %p178 = scmp.eq.s32.totalorder %s25, 1
      %p179 = por %p177, %p178
      %p180 = scmp.ne.s32.totalorder %s171, %s172
      %p181 = scmp.eq.s32.totalorder %s25, 0
      %p182 = por %p180, %p181
      %p183 = scmp.ne.s32.totalorder %s171, %s172
      %p184 = scmp.eq.s32.totalorder %s26, 1
      %p185 = por %p183, %p184
      %p187 = scmp.ne.s32.totalorder %s172, %s186
      %p188 = scmp.eq.s32.totalorder %s26, 0
      %p189 = por %p187, %p188
      %s190 = ssub.s32 %s20, %s27
      %p191 = scmp.eq.s32.totalorder %s190, 0
      %s193 = sadd.s32 %s192, 1
      %s194 = scalar_select %p191, %s192, %s193
      %p197 = pneg %p191
      %p198 = scmp.eq.s32.totalorder %s20, 1
      %p199 = por %p197, %p198
      %p200 = scmp.ne.s32.totalorder %s192, %s195
      %p201 = scmp.eq.s32.totalorder %s20, 0
      %p202 = por %p200, %p201
      %p203 = scmp.ne.s32.totalorder %s192, %s195
      %p204 = scmp.eq.s32.totalorder %s25, 1
      %p205 = por %p203, %p204
      %p206 = scmp.ne.s32.totalorder %s195, %s196
      %p207 = scmp.eq.s32.totalorder %s25, 0
      %p208 = por %p206, %p207
      %p209 = scmp.ne.s32.totalorder %s195, %s196
      %p210 = scmp.eq.s32.totalorder %s26, 1
      %p211 = por %p209, %p210
      %p213 = scmp.ne.s32.totalorder %s196, %s212
      %p214 = scmp.eq.s32.totalorder %s26, 0
      %p215 = por %p213, %p214
      %s216 = ssub.s32 %s20, %s27
      %p217 = scmp.eq.s32.totalorder %s216, 0
      %s219 = sadd.s32 %s218, 1
      %s220 = scalar_select %p217, %s218, %s219
      %p223 = pneg %p217
      %p224 = scmp.eq.s32.totalorder %s20, 1
      %p225 = por %p223, %p224
      %p226 = scmp.ne.s32.totalorder %s218, %s221
      %p227 = scmp.eq.s32.totalorder %s20, 0
      %p228 = por %p226, %p227
      %p229 = scmp.ne.s32.totalorder %s218, %s221
      %p230 = scmp.eq.s32.totalorder %s25, 1
      %p231 = por %p229, %p230
      %p232 = scmp.ne.s32.totalorder %s221, %s222
      %p233 = scmp.eq.s32.totalorder %s25, 0
      %p234 = por %p232, %p233
      %p235 = scmp.ne.s32.totalorder %s221, %s222
      %p236 = scmp.eq.s32.totalorder %s26, 1
      %p237 = por %p235, %p236
      %p239 = scmp.ne.s32.totalorder %s222, %s238
      %p240 = scmp.eq.s32.totalorder %s26, 0
      %p241 = por %p239, %p240
      %s242 = ssub.s32 %s20, %s27
      %p243 = scmp.eq.s32.totalorder %s242, 0
      %s245 = sadd.s32 %s244, 1
      %s246 = scalar_select %p243, %s244, %s245
      %p249 = pneg %p243
      %p250 = scmp.eq.s32.totalorder %s20, 1
      %p251 = por %p249, %p250
      %p252 = scmp.ne.s32.totalorder %s244, %s247
      %p253 = scmp.eq.s32.totalorder %s20, 0
      %p254 = por %p252, %p253
      %p255 = scmp.ne.s32.totalorder %s244, %s247
      %p256 = scmp.eq.s32.totalorder %s25, 1
      %p257 = por %p255, %p256
      %p258 = scmp.ne.s32.totalorder %s247, %s248
      %p259 = scmp.eq.s32.totalorder %s25, 0
      %p260 = por %p258, %p259
      %p261 = scmp.ne.s32.totalorder %s247, %s248
      %p262 = scmp.eq.s32.totalorder %s26, 1
      %p263 = por %p261, %p262
      %p265 = scmp.ne.s32.totalorder %s248, %s264
      %p266 = scmp.eq.s32.totalorder %s26, 0
      %p267 = por %p265, %p266
      %s268 = ssub.s32 %s20, %s27
      %p269 = scmp.eq.s32.totalorder %s268, 0
      %s271 = sadd.s32 %s270, 1
      %s272 = scalar_select %p269, %s270, %s271
      %p275 = pneg %p269
      %p276 = scmp.eq.s32.totalorder %s20, 1
      %p277 = por %p275, %p276
      %p278 = scmp.ne.s32.totalorder %s270, %s273
      %p279 = scmp.eq.s32.totalorder %s20, 0
      %p280 = por %p278, %p279
      %p281 = scmp.ne.s32.totalorder %s270, %s273
      %p282 = scmp.eq.s32.totalorder %s25, 1
      %p283 = por %p281, %p282
      %p284 = scmp.ne.s32.totalorder %s273, %s274
      %p285 = scmp.eq.s32.totalorder %s25, 0
      %p286 = por %p284, %p285
      %p287 = scmp.ne.s32.totalorder %s273, %s274
      %p288 = scmp.eq.s32.totalorder %s26, 1
      %p289 = por %p287, %p288
      %p291 = scmp.ne.s32.totalorder %s274, %s290
      %p292 = scmp.eq.s32.totalorder %s26, 0
      %p293 = por %p291, %p292
      %s294 = ssub.s32 %s20, %s27
      %p295 = scmp.eq.s32.totalorder %s294, 0
      %s297 = sadd.s32 %s296, 1
      %s298 = scalar_select %p295, %s296, %s297
      %p301 = pneg %p295
      %p302 = scmp.eq.s32.totalorder %s20, 1
      %p303 = por %p301, %p302
      %p304 = scmp.ne.s32.totalorder %s296, %s299
      %p305 = scmp.eq.s32.totalorder %s20, 0
      %p306 = por %p304, %p305
      %p307 = scmp.ne.s32.totalorder %s296, %s299
      %p308 = scmp.eq.s32.totalorder %s25, 1
      %p309 = por %p307, %p308
      %p310 = scmp.ne.s32.totalorder %s299, %s300
      %p311 = scmp.eq.s32.totalorder %s25, 0
      %p312 = por %p310, %p311
      %p313 = scmp.ne.s32.totalorder %s299, %s300
      %p314 = scmp.eq.s32.totalorder %s26, 1
      %p315 = por %p313, %p314
      %p317 = scmp.ne.s32.totalorder %s300, %s316
      %p318 = scmp.eq.s32.totalorder %s26, 0
      %p319 = por %p317, %p318
      %s320 = ssub.s32 %s20, %s27
      %p321 = scmp.eq.s32.totalorder %s320, 0
      %s323 = sadd.s32 %s322, 1
      %s324 = scalar_select %p321, %s322, %s323
      %p327 = pneg %p321
      %p328 = scmp.eq.s32.totalorder %s20, 1
      %p329 = por %p327, %p328
      %p330 = scmp.ne.s32.totalorder %s322, %s325
      %p331 = scmp.eq.s32.totalorder %s20, 0
      %p332 = por %p330, %p331
      %p333 = scmp.ne.s32.totalorder %s322, %s325
      %p334 = scmp.eq.s32.totalorder %s25, 1
      %p335 = por %p333, %p334
      %p336 = scmp.ne.s32.totalorder %s325, %s326
      %p337 = scmp.eq.s32.totalorder %s25, 0
      %p338 = por %p336, %p337
      %p339 = scmp.ne.s32.totalorder %s325, %s326
      %p340 = scmp.eq.s32.totalorder %s26, 1
      %p341 = por %p339, %p340
      %p343 = scmp.ne.s32.totalorder %s326, %s342
      %p344 = scmp.eq.s32.totalorder %s26, 0
      %p345 = por %p343, %p344
      %s346 = ssub.s32 %s20, %s27
      %p347 = scmp.eq.s32.totalorder %s346, 0
      %s349 = sadd.s32 %s348, 1
      %s350 = scalar_select %p347, %s348, %s349
      %p353 = pneg %p347
      %p354 = scmp.eq.s32.totalorder %s20, 1
      %p355 = por %p353, %p354
      %p356 = scmp.ne.s32.totalorder %s348, %s351
      %p357 = scmp.eq.s32.totalorder %s20, 0
      %p358 = por %p356, %p357
      %p359 = scmp.ne.s32.totalorder %s348, %s351
      %p360 = scmp.eq.s32.totalorder %s25, 1
      %p361 = por %p359, %p360
      %p362 = scmp.ne.s32.totalorder %s351, %s352
      %p363 = scmp.eq.s32.totalorder %s25, 0
      %p364 = por %p362, %p363
      %p365 = scmp.ne.s32.totalorder %s351, %s352
      %p366 = scmp.eq.s32.totalorder %s26, 1
      %p367 = por %p365, %p366
      %p369 = scmp.ne.s32.totalorder %s352, %s368
      %p370 = scmp.eq.s32.totalorder %s26, 0
      %p371 = por %p369, %p370
      %p372 = scmp.le.s32.totalorder 1, %s20
      %p373 = scmp.lt.s32.totalorder %s20, 3
      %p374 = pnand %p372, %p373
      %p375 = pneg %p374
      // Predicated region
      $region9: #{mla_forward.2} parent=5 // pred_check
        _
      $region10: #{mla_forward.2} parent=5 // pred_check_branch
        %377 = sbr.rel (%p374) target = $region12
      $region11: #{mla_forward.2} parent=5 // pred_region
        %s378 = ssub.s32 %s20, 1
        // Predicated region
        $region13: #{mla_forward.2} parent=11 // pred_check
          %p379 = pneg %p67
        $region14: #{mla_forward.2} parent=11 // pred_check_branch
          %381 = sbr.rel (%p379) target = $region16
        $region15: #{mla_forward.2} parent=11 // pred_region
          _
        $region16: #{mla_forward.2} parent=11 // pred_fallthru
          _
        // Predicated region
        $region17: #{mla_forward.2} parent=11 // pred_check
          %p382 = pneg %p140
        $region18: #{mla_forward.2} parent=11 // pred_check_branch
          %384 = sbr.rel (%p382) target = $region20
        $region19: #{mla_forward.2} parent=11 // pred_region
          _
        $region20: #{mla_forward.2} parent=11 // pred_fallthru
          _
        // Predicated region
        $region21: #{mla_forward.2} parent=11 // pred_check
          %p385 = pneg %p161
        $region22: #{mla_forward.2} parent=11 // pred_check_branch
          %387 = sbr.rel (%p385) target = $region24
        $region23: #{mla_forward.2} parent=11 // pred_region
          _
        $region24: #{mla_forward.2} parent=11 // pred_fallthru
          _
        // Predicated region
        $region25: #{mla_forward.2} parent=11 // pred_check
          %p388 = pneg %p182
        $region26: #{mla_forward.2} parent=11 // pred_check_branch
          %390 = sbr.rel (%p388) target = $region28
        $region27: #{mla_forward.2} parent=11 // pred_region
          _
        $region28: #{mla_forward.2} parent=11 // pred_fallthru
          _
      $region12: #{mla_forward.2} parent=5 // pred_fallthru
        _
      %p391 = scmp.lt.s32.totalorder %s20, 2
      // Predicated region
      $region29: #{mla_forward.2} parent=5 // pred_check
        %p392 = pneg %p391
      $region30: #{mla_forward.2} parent=5 // pred_check_branch
        %394 = sbr.rel (%p392) target = $region32
      $region31: #{mla_forward.2} parent=5 // pred_region
        // Predicated region
        $region33: #{mla_forward.2} parent=31 // pred_check
          %p395 = pneg %p40
        $region34: #{mla_forward.2} parent=31 // pred_check_branch
          %397 = sbr.rel (%p395) target = $region36
        $region35: #{mla_forward.2} parent=31 // pred_region
          %s398 = smul.u32 2, %s20
          %p399 = scmp.lt.s32.totalorder %s398, 3
          %s400 = scalar_select %p399, %s398, 3
          %s401 = smul.addr %s400, 4
          %s402 = scalar_lea.vmem %s0, %s401
          %s403 = smul.u32 2, %s20
        $region36: #{mla_forward.2} parent=31 // pred_fallthru
          _
        // Predicated region
        $region37: #{mla_forward.2} parent=31 // pred_check
          %p404 = pneg %p87
        $region38: #{mla_forward.2} parent=31 // pred_check_branch
          %406 = sbr.rel (%p404) target = $region40
        $region39: #{mla_forward.2} parent=31 // pred_region
          %s407 = smul.u32 2, %s20
          %p408 = scmp.lt.s32.totalorder %s407, 3
          %s409 = scalar_select %p408, %s407, 3
          %s410 = smul.addr %s409, 8
          %s411 = scalar_lea.vmem %s2, %s410
          %s412 = smul.u32 2, %s20
        $region40: #{mla_forward.2} parent=31 // pred_fallthru
          _
        // Predicated region
        $region41: #{mla_forward.2} parent=31 // pred_check
          %p413 = pneg %p113
        $region42: #{mla_forward.2} parent=31 // pred_check_branch
          %415 = sbr.rel (%p413) target = $region44
        $region43: #{mla_forward.2} parent=31 // pred_region
          %s416 = smul.u32 2, %s20
          %p417 = scmp.lt.s32.totalorder %s416, 3
          %s418 = scalar_select %p417, %s416, 3
          %s419 = smul.addr %s418, 8
          %s420 = scalar_lea.vmem %s3, %s419
          %s421 = smul.u32 2, %s20
        $region44: #{mla_forward.2} parent=31 // pred_fallthru
          _
      $region32: #{mla_forward.2} parent=5 // pred_fallthru
        _
      %p422 = scmp.le.s32.totalorder 1, %s20
      %p423 = scmp.lt.s32.totalorder %s20, 3
      %p424 = pnand %p422, %p423
      %p425 = pneg %p424
      // Predicated region
      $region45: #{mla_forward.2} parent=5 // pred_check
        _
      $region46: #{mla_forward.2} parent=5 // pred_check_branch
        %427 = sbr.rel (%p424) target = $region48
      $region47: #{mla_forward.2} parent=5 // pred_region
        %s428 = ssub.s32 %s20, 1
        %s429 = smul.u32 2, %s25
        %p430 = scmp.lt.s32.totalorder %s429, 3
        %s431 = scalar_select %p430, %s429, 3
        %s432 = smul.addr %s431, 4
        %s433 = scalar_lea.vmem %s0, %s432
        %p434 = pneg %p46
        %p435 = pneg %p43
        %p436 = pneg %p67
        %p437 = pneg %p64
        %s438 = smul.u32 2, %s25
        %p439 = scmp.lt.s32.totalorder %s438, 3
        %s440 = scalar_select %p439, %s438, 3
        %s441 = smul.addr %s440, 8
        %s442 = scalar_lea.vmem %s2, %s441
        %p443 = pneg %p93
        %p444 = pneg %p90
        %s445 = smul.u32 2, %s25
        %p446 = scmp.lt.s32.totalorder %s445, 3
        %s447 = scalar_select %p446, %s445, 3
        %s448 = smul.addr %s447, 8
        %s449 = scalar_lea.vmem %s3, %s448
        %p450 = pneg %p119
        %p451 = pneg %p116
        %p452 = pneg %p140
        %p453 = pneg %p137
        %p454 = pneg %p161
        %p455 = pneg %p158
        %p456 = pneg %p182
        %p457 = pneg %p179
        %p458 = pneg %p208
        %p459 = pneg %p205
        %s460 = sand.u32 %s195, 1
        %s461 = sand.u32 %s195, 1
        %s462 = smul.addr %s461, 32
        %s463 = scalar_lea.vmem [#allocation2], %s462
        %p464 = pneg %p234
        %p465 = pneg %p231
        %s466 = sand.u32 %s221, 1
        %s467 = sand.u32 %s221, 1
        %s468 = smul.addr %s467, 32
        %s469 = scalar_lea.vmem [#allocation3], %s468
        %p470 = pneg %p260
        %p471 = pneg %p257
        %s472 = sand.u32 %s247, 1
        %s473 = sand.u32 %s247, 1
        %s474 = smul.addr %s473, 32
        %s475 = scalar_lea.vmem [#allocation4], %s474
        %p476 = pneg %p286
        %p477 = pneg %p283
        %s478 = smul.u32 2, %s25
        %p479 = scmp.lt.s32.totalorder %s478, 3
        %s480 = scalar_select %p479, %s478, 3
        %s481 = smul.addr %s480, 4
        %s482 = scalar_lea.vmem %s10, %s481
        %p483 = pneg %p312
        %p484 = pneg %p309
        %s485 = smul.u32 2, %s25
        %p486 = scmp.lt.s32.totalorder %s485, 3
        %s487 = scalar_select %p486, %s485, 3
        %s488 = smul.addr %s487, 4
        %s489 = scalar_lea.vmem %s11, %s488
        %p490 = pneg %p338
        %p491 = pneg %p335
        %s492 = sand.u32 %s325, 1
        %s493 = sand.u32 %s325, 1
        %s494 = smul.addr %s493, 32
        %s495 = scalar_lea.vmem [#allocation5], %s494
        %p496 = pneg %p364
        %p497 = pneg %p361
        %s498 = sand.u32 %s351, 1
        %s499 = sand.u32 %s351, 1
        %s500 = smul.addr %s499, 32
        %s501 = scalar_lea.vmem [#allocation6], %s500
        %s502 = smul.u32 2, %s25
        %p503 = scmp.lt.s32.totalorder %s502, 3
        %s504 = scalar_select %p503, %s502, 3
        %s505 = smul.addr %s504, 4
        %s506 = scalar_lea.vmem %s0, %s505
        %s507 = smul.u32 2, %s25
        %s508 = smul.u32 2, %s25
        %p509 = scmp.lt.s32.totalorder %s508, 3
        %s510 = scalar_select %p509, %s508, 3
        %s511 = smul.addr %s510, 8
        %s512 = scalar_lea.vmem %s2, %s511
        %s513 = smul.u32 2, %s25
        %s514 = smul.u32 2, %s25
        %p515 = scmp.lt.s32.totalorder %s514, 3
        %s516 = scalar_select %p515, %s514, 3
        %s517 = smul.addr %s516, 8
        %s518 = scalar_lea.vmem %s3, %s517
        %s519 = smul.u32 2, %s25
        %s520 = smul.u32 2, %s25
        %s521 = smul.u32 2, %s25
        %s522 = smul.u32 2, %s25
        %s523 = smul.u32 2, %s25
        %p524 = scmp.lt.s32.totalorder %s523, 3
        %s525 = scalar_select %p524, %s523, 3
        %s526 = smul.addr %s525, 4
        %s527 = scalar_lea.vmem %s10, %s526
        %s528 = smul.u32 2, %s25
        %s529 = smul.u32 2, %s25
        %p530 = scmp.lt.s32.totalorder %s529, 3
        %s531 = scalar_select %p530, %s529, 3
        %s532 = smul.addr %s531, 4
        %s533 = scalar_lea.vmem %s11, %s532
        %s534 = smul.u32 2, %s25
        %s535 = smul.u32 2, %s25
        %s536 = smul.u32 2, %s25
        %v538 = vld [vmem:[%s506] sm:$0xf]
        %v539 = vld [vmem:[%s506 + $0x4] sm:$0xf]
        %v540 = vld [vmem:[%s1] sm:$0xff]
        %v541 = vld [vmem:[%s1 + $0x8] sm:$0xff]
        %v542 = vld [vmem:[%s1 + $0x10] sm:$0xff]
        %v543 = vld [vmem:[%s1 + $0x18] sm:$0xff]
        %v544 = vld [vmem:[%s1 + $0x20] sm:$0xff]
        %v545 = vld [vmem:[%s1 + $0x28] sm:$0xff]
        %v546 = vld [vmem:[%s1 + $0x30] sm:$0xff]
        %v547 = vld [vmem:[%s1 + $0x38] sm:$0xff]
        %v550 = vunpack.c.l.b16 %v538
        %v551 = vunpack.c.l.b16 %v539
        %v552 = vpack.c.b16 %v551, %v550
        %v561 = vunpack.c.l.b16 %v540
        %v562 = vunpack.c.h.b16 %v540
        %v563 = vunpack.c.l.b16 %v541
        %v564 = vunpack.c.h.b16 %v541
        %v565 = vunpack.c.l.b16 %v542
        %v566 = vunpack.c.h.b16 %v542
        %v567 = vunpack.c.l.b16 %v543
        %v568 = vunpack.c.h.b16 %v543
        %v569 = vunpack.c.l.b16 %v544
        %v570 = vunpack.c.h.b16 %v544
        %v571 = vunpack.c.l.b16 %v545
        %v572 = vunpack.c.h.b16 %v545
        %v573 = vunpack.c.l.b16 %v546
        %v574 = vunpack.c.h.b16 %v546
        %v575 = vunpack.c.l.b16 %v547
        %v576 = vunpack.c.h.b16 %v547
        %v577 = vpack.c.b16 %v563, %v561
        %v578 = vpack.c.b16 %v564, %v562
        %v579 = vpack.c.b16 %v567, %v565
        %v580 = vpack.c.b16 %v568, %v566
        %v581 = vpack.c.b16 %v571, %v569
        %v582 = vpack.c.b16 %v572, %v570
        %v583 = vpack.c.b16 %v575, %v573
        %v584 = vpack.c.b16 %v576, %v574
        %vm593 = vcmask 523264
        %v595 = vsel %vm593, %v552, 0
        %597 = vmatprep.subr.bf16.mxu0 %v578
        %598 = vmatpush1.bf16.msra.mxu0 %v577
        %599 = vmatprep.subr.bf16.mxu0 %v580
        %600 = vmatpush1.bf16.msra.mxu0 %v579
        %601 = vmatprep.subr.bf16.mxu0 %v582
        %602 = vmatpush1.bf16.msra.mxu0 %v581
        %603 = vmatprep.subr.bf16.mxu0 %v584
        %604 = vmatpush1.bf16.msra.mxu0 %v583
        %605 = vmatprep.subr.bf16.mxu0 0
        %606 = vmatpush1.bf16.msra.mxu0 0
        %607 = vmatprep.subr.bf16.mxu0 0
        %608 = vmatpush1.bf16.msra.mxu0 0
        %609 = vmatprep.subr.bf16.mxu0 0
        %610 = vmatpush1.bf16.msra.mxu0 0
        %611 = vmatprep.subr.bf16.mxu0 0
        %612 = vmatpush1.bf16.msra.mxu0 0
        %613 = vmatprep.subr.bf16.mxu0 0
        %614 = vmatpush1.bf16.msra.mxu0 0
        %615 = vmatprep.subr.bf16.mxu0 0
        %616 = vmatpush1.bf16.msra.mxu0 0
        %617 = vmatprep.subr.bf16.mxu0 0
        %618 = vmatpush1.bf16.msra.mxu0 0
        %619 = vmatprep.subr.bf16.mxu0 0
        %620 = vmatpush1.bf16.msra.mxu0 0
        %621 = vmatprep.subr.bf16.mxu0 0
        %622 = vmatpush1.bf16.msra.mxu0 0
        %623 = vmatprep.subr.bf16.mxu0 0
        %624 = vmatpush1.bf16.msra.mxu0 0
        %625 = vmatprep.subr.bf16.mxu0 0
        %626 = vmatpush1.bf16.msra.mxu0 0
        %627 = vmatprep.subr.bf16.mxu0 0
        %628 = vmatpush1.bf16.msra.mxu0 0
        %629 = vmatprep.mubr.bf16.mxu0 0
        %630 = vmatmul.mubr.bf16.gmra.mrb[0].mxu0 %v595
        %v631 = vpop.f32.mrb[0].mxu0
        %v632 = vadd.f32 0.0, %v631
        %v633 = vpop.f32.mrb[0].mxu0
        %v634 = vadd.f32 0.0, %v633
        %v635 = vpop.f32.mrb[0].mxu0
        %v636 = vadd.f32 0.0, %v635
        %v637 = vpop.f32.mrb[0].mxu0
        %v638 = vadd.f32 0.0, %v637
        %639 = vdwg.mxu0
        %v640 = vld [vmem:[%s512] sm:$0xff]
        %v641 = vld [vmem:[%s512 + $0x8] sm:$0xff]
        %v642 = vld [vmem:[%s518] sm:$0xff]
        %v643 = vld [vmem:[%s518 + $0x8] sm:$0xff]
        %646 = vrot.lane.b32.xlu0 %v640, 64
        %v647 = vpop.permute.xlu0 %646
        %648 = vrot.lane.b32.xlu0 %v641, 64
        %v649 = vpop.permute.xlu0 %648
        %v652 = vmul.f32 %v632, %v647
        %v653 = vmul.f32 %v636, %v649
        %656 = vrot.lane.b32.xlu0 %v642, 80
        %v657 = vpop.permute.xlu0 %656
        %658 = vrot.lane.b32.xlu0 %v643, 80
        %v659 = vpop.permute.xlu0 %658
        %v662 = vmul.f32 %v632, %v657
        %v663 = vmul.f32 %v636, %v659
        %666 = vrot.lane.b32.xlu0 %v662, 112
        %v667 = vpop.permute.xlu0 %666
        %668 = vrot.lane.b32.xlu0 %v663, 112
        %v669 = vpop.permute.xlu0 %668
        %v672 = vsub.f32 %v652, %v667
        %v673 = vsub.f32 %v653, %v669
        %674 = vrot.lane.b32.xlu0 %v642, 64
        %v675 = vpop.permute.xlu0 %674
        %676 = vrot.lane.b32.xlu0 %v643, 64
        %v677 = vpop.permute.xlu0 %676
        %v680 = vmul.f32 %v632, %v675
        %v681 = vmul.f32 %v636, %v677
        %682 = vrot.lane.b32.xlu0 %v640, 80
        %v683 = vpop.permute.xlu0 %682
        %684 = vrot.lane.b32.xlu0 %v641, 80
        %v685 = vpop.permute.xlu0 %684
        %v688 = vmul.f32 %v632, %v683
        %v689 = vmul.f32 %v636, %v685
        %692 = vrot.lane.b32.xlu0 %v688, 112
        %v693 = vpop.permute.xlu0 %692
        %694 = vrot.lane.b32.xlu0 %v689, 112
        %v695 = vpop.permute.xlu0 %694
        %v698 = vadd.f32 %v680, %v693
        %v699 = vadd.f32 %v681, %v695
        %v700 = vmul.f32 %v634, %v640
        %v701 = vmul.f32 %v638, %v641
        %702 = vrot.lane.b32.xlu0 %v642, 4
        %v703 = vpop.permute.xlu0 %702
        %704 = vrot.lane.b32.xlu0 %v643, 4
        %v705 = vpop.permute.xlu0 %704
        %v708 = vmul.f32 %v634, %v703
        %v709 = vmul.f32 %v638, %v705
        %712 = vrot.lane.b32.xlu0 %v708, 124
        %v713 = vpop.permute.xlu0 %712
        %714 = vrot.lane.b32.xlu0 %v709, 124
        %v715 = vpop.permute.xlu0 %714
        %v718 = vsub.f32 %v700, %v713
        %v719 = vsub.f32 %v701, %v715
        %v720 = vpack.c.bf16 %v719, %v718
        %v722 = vunpack.c.l.b16 %v720
        %v723 = vunpack.c.h.b16 %v720
        %v724 = vpack.c.b16 %v722, %v722
        %v725 = vpack.c.b16 %v723, %v723
        %vm728 = vcmask 27648
        %729 = vst.msk [vmem:[%s527] sm:$0xf] %vm728, %v724
        %730 = vst.msk [vmem:[%s527 + $0x4] sm:$0xf] %vm728, %v725
        %v731 = vmul.f32 %v634, %v642
        %v732 = vmul.f32 %v638, %v643
        %733 = vrot.lane.b32.xlu0 %v640, 4
        %v734 = vpop.permute.xlu0 %733
        %735 = vrot.lane.b32.xlu0 %v641, 4
        %v736 = vpop.permute.xlu0 %735
        %v739 = vmul.f32 %v634, %v734
        %v740 = vmul.f32 %v638, %v736
        %743 = vrot.lane.b32.xlu0 %v739, 124
        %v744 = vpop.permute.xlu0 %743
        %745 = vrot.lane.b32.xlu0 %v740, 124
        %v746 = vpop.permute.xlu0 %745
        %v749 = vadd.f32 %v731, %v744
        %v750 = vadd.f32 %v732, %v746
        %v751 = vpack.c.bf16 %v750, %v749
        %v753 = vunpack.c.l.b16 %v751
        %v754 = vunpack.c.h.b16 %v751
        %v755 = vpack.c.b16 %v753, %v753
        %v756 = vpack.c.b16 %v754, %v754
        %759 = vst.msk [vmem:[%s533] sm:$0xf] %vm728, %v755
        %760 = vst.msk [vmem:[%s533 + $0x4] sm:$0xf] %vm728, %v756
        %763 = vrot.lane.b32.xlu0 %v632, 32
        %v764 = vpop.permute.xlu0 %763
        %765 = vrot.lane.b32.xlu0 %v636, 32
        %v766 = vpop.permute.xlu0 %765
        %vm769 = vcmask 261120
        %v770 = vsel %vm769, %v764, 0.0
        %771 = vadd.xlane.f32.xlu0 %v770
        %v772 = vpop.xlane.xlu0 %771
        %v773 = vsel %vm769, %v766, 0.0
        %774 = vadd.xlane.f32.xlu0 %v773
        %v775 = vpop.xlane.xlu0 %774
        %v776 = vrcp.pop 32.0
        %v777 = vmul.f32 %v772, %v776
        %v778 = vmul.f32 %v775, %v776
        %v779 = vsub.f32 %v632, %v777
        %v780 = vsub.f32 %v636, %v778
        %v781 = vmul.f32 %v779, %v779
        %v782 = vmul.f32 %v780, %v780
        %785 = vrot.lane.b32.xlu0 %v781, 32
        %v786 = vpop.permute.xlu0 %785
        %787 = vrot.lane.b32.xlu0 %v782, 32
        %v788 = vpop.permute.xlu0 %787
        %v791 = vsel %vm769, %v786, 0.0
        %792 = vadd.xlane.f32.xlu0 %v791
        %v793 = vpop.xlane.xlu0 %792
        %v794 = vsel %vm769, %v788, 0.0
        %795 = vadd.xlane.f32.xlu0 %v794
        %v796 = vpop.xlane.xlu0 %795
        %v797 = vmul.f32 %v793, %v776
        %v798 = vmul.f32 %v796, %v776
        %v799 = vadd.f32 %v797, 1e-05
        %v800 = vadd.f32 %v798, 1e-05
        %v801 = vrsqrt.pop %v799
        %v802 = vrsqrt.pop %v800
        %v803 = vmul.f32 %v779, %v801
        %v804 = vmul.f32 %v780, %v802
        %v805 = vld [vmem:[%s4] sm:$0x1]
        %v807 = vlaneseq
        %v808 = vshrl.u32 %v807, 7
        %v809 = vsub.s32 0, %v808
        %v810 = vrot.slane %v805, %v809
        %811 = vrot.lane.b32.xlu0 %v810, 96
        %v812 = vpop.permute.xlu0 %811
        %v814 = vmul.f32 %v803, %v812
        %v815 = vmul.f32 %v804, %v812
        %v816 = vld [vmem:[%s5] sm:$0x1]
        %v818 = vlaneseq
        %v819 = vshrl.u32 %v818, 7
        %v820 = vsub.s32 0, %v819
        %v821 = vrot.slane %v816, %v820
        %822 = vrot.lane.b32.xlu0 %v821, 96
        %v823 = vpop.permute.xlu0 %822
        %v825 = vadd.f32 %v814, %v823
        %v826 = vadd.f32 %v815, %v823
        %v827 = vpack.c.bf16 %v826, %v825
        %v828 = vld [vmem:[%s6] sm:$0xf]
        %v829 = vld [vmem:[%s6 + $0x4] sm:$0xf]
        %v830 = vld [vmem:[%s6 + $0x8] sm:$0xf]
        %v831 = vld [vmem:[%s6 + $0xc] sm:$0xf]
        %833 = vrot.lane.b32.xlu0 %v827, 32
        %v834 = vpop.permute.xlu0 %833
        %v839 = vunpack.c.l.b16 %v828
        %v840 = vunpack.c.l.b16 %v829
        %v841 = vunpack.c.l.b16 %v830
        %v842 = vunpack.c.l.b16 %v831
        %v843 = vpack.c.b16 %v840, %v839
        %v844 = vpack.c.b16 %v842, %v841
        %v848 = vsel %vm769, %v834, 0
        %850 = vmatprep.subr.bf16.mxu0 0
        %851 = vmatpush1.bf16.msra.mxu0 %v843
        %852 = vmatprep.subr.bf16.mxu0 0
        %853 = vmatpush1.bf16.msra.mxu0 %v844
        %854 = vmatprep.subr.bf16.mxu0 0
        %855 = vmatpush1.bf16.msra.mxu0 0
        %856 = vmatprep.subr.bf16.mxu0 0
        %857 = vmatpush1.bf16.msra.mxu0 0
        %858 = vmatprep.subr.bf16.mxu0 0
        %859 = vmatpush1.bf16.msra.mxu0 0
        %860 = vmatprep.subr.bf16.mxu0 0
        %861 = vmatpush1.bf16.msra.mxu0 0
        %862 = vmatprep.subr.bf16.mxu0 0
        %863 = vmatpush1.bf16.msra.mxu0 0
        %864 = vmatprep.subr.bf16.mxu0 0
        %865 = vmatpush1.bf16.msra.mxu0 0
        %866 = vmatprep.subr.bf16.mxu0 0
        %867 = vmatpush1.bf16.msra.mxu0 0
        %868 = vmatprep.subr.bf16.mxu0 0
        %869 = vmatpush1.bf16.msra.mxu0 0
        %870 = vmatprep.subr.bf16.mxu0 0
        %871 = vmatpush1.bf16.msra.mxu0 0
        %872 = vmatprep.subr.bf16.mxu0 0
        %873 = vmatpush1.bf16.msra.mxu0 0
        %874 = vmatprep.subr.bf16.mxu0 0
        %875 = vmatpush1.bf16.msra.mxu0 0
        %876 = vmatprep.subr.bf16.mxu0 0
        %877 = vmatpush1.bf16.msra.mxu0 0
        %878 = vmatprep.subr.bf16.mxu0 0
        %879 = vmatpush1.bf16.msra.mxu0 0
        %880 = vmatprep.subr.bf16.mxu0 0
        %881 = vmatpush1.bf16.msra.mxu0 0
        %882 = vmatprep.mubr.bf16.mxu0 0
        %883 = vmatmul.mubr.bf16.gmra.mrb[0].mxu0 %v848
        %v884 = vpop.f32.mrb[0].mxu0
        %v885 = vadd.f32 0.0, %v884
        %v886 = vpop.f32.mrb[0].mxu0
        %v887 = vpop.f32.mrb[0].mxu0
        %v888 = vadd.f32 0.0, %v887
        %v889 = vpop.f32.mrb[0].mxu0
        %890 = vdwg.mxu0
        %v891 = vpack.c.bf16 %v636, %v632
        %v893 = vunpack.c.l.b16 %v891
        %v894 = vunpack.c.h.b16 %v891
        %v895 = vpack.c.b16 %v893, %v893
        %v896 = vpack.c.b16 %v894, %v894
        %vm899 = vcmask 125952
        %900 = vst.msk [vmem:[%s463] sm:$0xf] %vm899, %v895
        %901 = vst.msk [vmem:[%s463 + $0x4] sm:$0xf] %vm899, %v896
        %v902 = vpack.c.bf16 %v673, %v672
        %v904 = vunpack.c.l.b16 %v902
        %v905 = vunpack.c.h.b16 %v902
        %v906 = vpack.c.b16 %v904, %v904
        %v907 = vpack.c.b16 %v905, %v905
        %908 = vrot.lane.b32.xlu0 %v906, 64
        %v909 = vpop.permute.xlu0 %908
        %910 = vrot.lane.b32.xlu0 %v907, 64
        %v911 = vpop.permute.xlu0 %910
        %914 = vst.msk [vmem:[%s469] sm:$0xf] %vm728, %v909
        %915 = vst.msk [vmem:[%s469 + $0x4] sm:$0xf] %vm728, %v911
        %v916 = vpack.c.bf16 %v699, %v698
        %v918 = vunpack.c.l.b16 %v916
        %v919 = vunpack.c.h.b16 %v916
        %v920 = vpack.c.b16 %v918, %v918
        %v921 = vpack.c.b16 %v919, %v919
        %922 = vrot.lane.b32.xlu0 %v920, 64
        %v923 = vpop.permute.xlu0 %922
        %924 = vrot.lane.b32.xlu0 %v921, 64
        %v925 = vpop.permute.xlu0 %924
        %928 = vst.msk [vmem:[%s475] sm:$0xf] %vm728, %v923
        %929 = vst.msk [vmem:[%s475 + $0x4] sm:$0xf] %vm728, %v925
        %v930 = vpack.c.bf16 %v888, %v885
        %v932 = vunpack.c.l.b16 %v930
        %v933 = vunpack.c.h.b16 %v930
        %v934 = vpack.c.b16 %v932, %v932
        %v935 = vpack.c.b16 %v933, %v933
        %938 = vst.msk [vmem:[%s495] sm:$0xf] %vm899, %v934
        %939 = vst.msk [vmem:[%s495 + $0x4] sm:$0xf] %vm899, %v935
        %940 = vrot.lane.b32.xlu0 %v934, 64
        %v941 = vpop.permute.xlu0 %940
        %942 = vrot.lane.b32.xlu0 %v935, 64
        %v943 = vpop.permute.xlu0 %942
        %946 = vst.msk [vmem:[%s501] sm:$0xf] %vm899, %v941
        %947 = vst.msk [vmem:[%s501 + $0x4] sm:$0xf] %vm899, %v943
        %948 = vrot.lane.b32.xlu0 %v895, 112
        %v949 = vpop.permute.xlu0 %948
        %950 = vrot.lane.b32.xlu0 %v896, 112
        %v951 = vpop.permute.xlu0 %950
        %s954 = scalar_lea.vmem %s463, 8 [#allocation2]
        %955 = vst.msk [vmem:[%s954] sm:$0xf] %vm899, %v949
        %956 = vst.msk [vmem:[%s954 + $0x4] sm:$0xf] %vm899, %v951
        %957 = vrot.lane.b32.xlu0 %v906, 60
        %v958 = vpop.permute.xlu0 %957
        %959 = vrot.lane.b32.xlu0 %v907, 60
        %v960 = vpop.permute.xlu0 %959
        %s963 = scalar_lea.vmem %s469, 8 [#allocation3]
        %964 = vst.msk [vmem:[%s963] sm:$0xf] %vm728, %v958
        %965 = vst.msk [vmem:[%s963 + $0x4] sm:$0xf] %vm728, %v960
        %966 = vrot.lane.b32.xlu0 %v920, 60
        %v967 = vpop.permute.xlu0 %966
        %968 = vrot.lane.b32.xlu0 %v921, 60
        %v969 = vpop.permute.xlu0 %968
        %s972 = scalar_lea.vmem %s475, 8 [#allocation4]
        %973 = vst.msk [vmem:[%s972] sm:$0xf] %vm728, %v967
        %974 = vst.msk [vmem:[%s972 + $0x4] sm:$0xf] %vm728, %v969
        %975 = vrot.lane.b32.xlu0 %v934, 112
        %v976 = vpop.permute.xlu0 %975
        %977 = vrot.lane.b32.xlu0 %v935, 112
        %v978 = vpop.permute.xlu0 %977
        %s981 = scalar_lea.vmem %s495, 8 [#allocation5]
        %982 = vst.msk [vmem:[%s981] sm:$0xf] %vm899, %v976
        %983 = vst.msk [vmem:[%s981 + $0x4] sm:$0xf] %vm899, %v978
        %984 = vrot.lane.b32.xlu0 %v934, 48
        %v985 = vpop.permute.xlu0 %984
        %986 = vrot.lane.b32.xlu0 %v935, 48
        %v987 = vpop.permute.xlu0 %986
        %s990 = scalar_lea.vmem %s501, 8 [#allocation6]
        %991 = vst.msk [vmem:[%s990] sm:$0xf] %vm899, %v985
        %992 = vst.msk [vmem:[%s990 + $0x4] sm:$0xf] %vm899, %v987
        %993 = vrot.lane.b32.xlu0 %v895, 96
        %v994 = vpop.permute.xlu0 %993
        %995 = vrot.lane.b32.xlu0 %v896, 96
        %v996 = vpop.permute.xlu0 %995
        %s999 = scalar_lea.vmem %s463, 16 [#allocation2]
        %1000 = vst.msk [vmem:[%s999] sm:$0xf] %vm899, %v994
        %1001 = vst.msk [vmem:[%s999 + $0x4] sm:$0xf] %vm899, %v996
        %1002 = vrot.lane.b32.xlu0 %v906, 56
        %v1003 = vpop.permute.xlu0 %1002
        %1004 = vrot.lane.b32.xlu0 %v907, 56
        %v1005 = vpop.permute.xlu0 %1004
        %s1008 = scalar_lea.vmem %s469, 16 [#allocation3]
        %1009 = vst.msk [vmem:[%s1008] sm:$0xf] %vm728, %v1003
        %1010 = vst.msk [vmem:[%s1008 + $0x4] sm:$0xf] %vm728, %v1005
        %1011 = vrot.lane.b32.xlu0 %v920, 56
        %v1012 = vpop.permute.xlu0 %1011
        %1013 = vrot.lane.b32.xlu0 %v921, 56
        %v1014 = vpop.permute.xlu0 %1013
        %s1017 = scalar_lea.vmem %s475, 16 [#allocation4]
        %1018 = vst.msk [vmem:[%s1017] sm:$0xf] %vm728, %v1012
        %1019 = vst.msk [vmem:[%s1017 + $0x4] sm:$0xf] %vm728, %v1014
        %1020 = vrot.lane.b32.xlu0 %v934, 96
        %v1021 = vpop.permute.xlu0 %1020
        %1022 = vrot.lane.b32.xlu0 %v935, 96
        %v1023 = vpop.permute.xlu0 %1022
        %s1026 = scalar_lea.vmem %s495, 16 [#allocation5]
        %1027 = vst.msk [vmem:[%s1026] sm:$0xf] %vm899, %v1021
        %1028 = vst.msk [vmem:[%s1026 + $0x4] sm:$0xf] %vm899, %v1023
        %1029 = vrot.lane.b32.xlu0 %v934, 32
        %v1030 = vpop.permute.xlu0 %1029
        %1031 = vrot.lane.b32.xlu0 %v935, 32
        %v1032 = vpop.permute.xlu0 %1031
        %s1035 = scalar_lea.vmem %s501, 16 [#allocation6]
        %1036 = vst.msk [vmem:[%s1035] sm:$0xf] %vm899, %v1030
        %1037 = vst.msk [vmem:[%s1035 + $0x4] sm:$0xf] %vm899, %v1032
        %1038 = vrot.lane.b32.xlu0 %v895, 80
        %v1039 = vpop.permute.xlu0 %1038
        %1040 = vrot.lane.b32.xlu0 %v896, 80
        %v1041 = vpop.permute.xlu0 %1040
        %s1044 = scalar_lea.vmem %s463, 24 [#allocation2]
        %1045 = vst.msk [vmem:[%s1044] sm:$0xf] %vm899, %v1039
        %1046 = vst.msk [vmem:[%s1044 + $0x4] sm:$0xf] %vm899, %v1041
        %1047 = vrot.lane.b32.xlu0 %v906, 52
        %v1048 = vpop.permute.xlu0 %1047
        %1049 = vrot.lane.b32.xlu0 %v907, 52
        %v1050 = vpop.permute.xlu0 %1049
        %s1053 = scalar_lea.vmem %s469, 24 [#allocation3]
        %1054 = vst.msk [vmem:[%s1053] sm:$0xf] %vm728, %v1048
        %1055 = vst.msk [vmem:[%s1053 + $0x4] sm:$0xf] %vm728, %v1050
        %1056 = vrot.lane.b32.xlu0 %v920, 52
        %v1057 = vpop.permute.xlu0 %1056
        %1058 = vrot.lane.b32.xlu0 %v921, 52
        %v1059 = vpop.permute.xlu0 %1058
        %s1062 = scalar_lea.vmem %s475, 24 [#allocation4]
        %1063 = vst.msk [vmem:[%s1062] sm:$0xf] %vm728, %v1057
        %1064 = vst.msk [vmem:[%s1062 + $0x4] sm:$0xf] %vm728, %v1059
        %1065 = vrot.lane.b32.xlu0 %v934, 80
        %v1066 = vpop.permute.xlu0 %1065
        %1067 = vrot.lane.b32.xlu0 %v935, 80
        %v1068 = vpop.permute.xlu0 %1067
        %s1071 = scalar_lea.vmem %s495, 24 [#allocation5]
        %1072 = vst.msk [vmem:[%s1071] sm:$0xf] %vm899, %v1066
        %1073 = vst.msk [vmem:[%s1071 + $0x4] sm:$0xf] %vm899, %v1068
        %1074 = vrot.lane.b32.xlu0 %v934, 16
        %v1075 = vpop.permute.xlu0 %1074
        %1076 = vrot.lane.b32.xlu0 %v935, 16
        %v1077 = vpop.permute.xlu0 %1076
        %s1080 = scalar_lea.vmem %s501, 24 [#allocation6]
        %1081 = vst.msk [vmem:[%s1080] sm:$0xf] %vm899, %v1075
        %1082 = vst.msk [vmem:[%s1080 + $0x4] sm:$0xf] %vm899, %v1077
        %s1083 = sand.u32 %s195, 1
        %s1084 = sand.u32 %s195, 1
        %s1085 = smul.addr %s1084, 32
        %s1086 = scalar_lea.vmem [#allocation2], %s1085
        %s1087 = sand.u32 %s221, 1
        %s1088 = sand.u32 %s221, 1
        %s1089 = smul.addr %s1088, 32
        %s1090 = scalar_lea.vmem [#allocation3], %s1089
        %s1091 = sand.u32 %s247, 1
        %s1092 = sand.u32 %s247, 1
        %s1093 = smul.addr %s1092, 32
        %s1094 = scalar_lea.vmem [#allocation4], %s1093
        %s1095 = smul.u32 2, %s25
        %p1096 = scmp.lt.s32.totalorder %s1095, 3
        %s1097 = scalar_select %p1096, %s1095, 3
        %s1098 = smul.addr %s1097, 4
        %s1099 = scalar_lea.vmem %s10, %s1098
        %s1100 = smul.u32 2, %s25
        %p1101 = scmp.lt.s32.totalorder %s1100, 3
        %s1102 = scalar_select %p1101, %s1100, 3
        %s1103 = smul.addr %s1102, 4
        %s1104 = scalar_lea.vmem %s11, %s1103
        %s1105 = sand.u32 %s325, 1
        %s1106 = sand.u32 %s325, 1
        %s1107 = smul.addr %s1106, 32
        %s1108 = scalar_lea.vmem [#allocation5], %s1107
        %s1109 = sand.u32 %s351, 1
        %s1110 = sand.u32 %s351, 1
        %s1111 = smul.addr %s1110, 32
        %s1112 = scalar_lea.vmem [#allocation6], %s1111
        // Predicated region
        $region49: #{mla_forward.2} parent=47 // pred_check
          %p1113 = pneg %p205
        $region50: #{mla_forward.2} parent=47 // pred_check_branch
          %1115 = sbr.rel (%p1113) target = $region52
        $region51: #{mla_forward.2} parent=47 // pred_region
          %s1116 = smul.u32 2, %s25
          %s1117 = smul.addr %s1116, 4
          %s1118 = scalar_lea.vmem %s7, %s1117
          // Predicated region
          $region53: #{mla_forward.2} parent=51 // pred_check
            _
          $region54: #{mla_forward.2} parent=51 // pred_check_branch
            %1120 = sbr.rel (0) target = $region56
          $region55: #{mla_forward.2} parent=51 // pred_region
            // Predicated region
            $region57: #{mla_forward.2} parent=55 // pred_check
              _
            $region58: #{mla_forward.2} parent=55 // pred_check_branch
              %1122 = sbr.rel target = $region60
            $region59: #{mla_forward.2} parent=55 // pred_region
              // Predicated region
              $region72: #{mla_forward.2} parent=59 // pred_check
                _
              $region73: #{mla_forward.2} parent=59 // pred_check_branch
                %1151 = sbr.rel (0) target = $region75
              $region74: #{mla_forward.2} parent=59 // pred_region
                loop: start=0, step=1, limit=1
                $region76: #{mla_forward.2} parent=74 // loop_pre_header
                  _
                $region77: #{mla_forward.2} parent=74 // loop_header
                  %s1153 = sphi 0, %s1157
                  %p1154 = scmp.ge.s32.totalorder %s1153, 1
                  %s1158 = sphi %s1086, %s1086
                  %s1159 = sphi %s1118, %s1118
                $region78: #{mla_forward.2} parent=74 // loop_header_branch
                  %1156 = sbr.rel (%p1154) target = $region82
                $region79: #{mla_forward.2} parent=74 // loop_body
                  _
                $region80: #{mla_forward.2} parent=74 // loop_footer
                  %s1157 = sadd.s32 1, %s1153
                $region81: #{mla_forward.2} parent=74 // loop_footer_branch
                  %1152 = sbr.rel target = $region77
                $region82: #{mla_forward.2} parent=74 // loop_exit
                  _
                loop: start=0, step=1, limit=1
                $region83: #{mla_forward.2} parent=74 // loop_pre_header
                  _
                $region84: #{mla_forward.2} parent=74 // loop_header
                  %s1162 = sphi 0, %s1166
                  %p1163 = scmp.ge.s32.totalorder %s1162, 1
                  %s1167 = sphi %s1086, %s1086
                  %s1168 = sphi %s1118, %s1118
                $region85: #{mla_forward.2} parent=74 // loop_header_branch
                  %1165 = sbr.rel (%p1163) target = $region89
                $region86: #{mla_forward.2} parent=74 // loop_body
                  %v1169 = vld [vmem:[%s1167] sm:$0xf]
                  %1170 = vst [vmem:[%s1168] sm:$0xf] %v1169
                  %v1171 = vld [vmem:[%s1167 + $0x4] sm:$0xf]
                  %1172 = vst [vmem:[%s1168 + $0x4] sm:$0xf] %v1171
                  %v1173 = vld [vmem:[%s1167 + $0x8] sm:$0xf]
                  %1174 = vst [vmem:[%s1168 + $0x10] sm:$0xf] %v1173
                  %v1175 = vld [vmem:[%s1167 + $0xc] sm:$0xf]
                  %1176 = vst [vmem:[%s1168 + $0x14] sm:$0xf] %v1175
                  %v1177 = vld [vmem:[%s1167 + $0x10] sm:$0xf]
                  %1178 = vst [vmem:[%s1168 + $0x20] sm:$0xf] %v1177
                  %v1179 = vld [vmem:[%s1167 + $0x14] sm:$0xf]
                  %1180 = vst [vmem:[%s1168 + $0x24] sm:$0xf] %v1179
                  %v1181 = vld [vmem:[%s1167 + $0x18] sm:$0xf]
                  %1182 = vst [vmem:[%s1168 + $0x30] sm:$0xf] %v1181
                  %v1183 = vld [vmem:[%s1167 + $0x1c] sm:$0xf]
                  %1184 = vst [vmem:[%s1168 + $0x34] sm:$0xf] %v1183
                $region87: #{mla_forward.2} parent=74 // loop_footer
                  %s1166 = sadd.s32 1, %s1162
                $region88: #{mla_forward.2} parent=74 // loop_footer_branch
                  %1161 = sbr.rel target = $region84
                $region89: #{mla_forward.2} parent=74 // loop_exit
                  _
              $region75: #{mla_forward.2} parent=59 // pred_fallthru
                _
            $region60: #{mla_forward.2} parent=55 // pred_fallthru
              _
            // Predicated region
            $region61: #{mla_forward.2} parent=55 // pred_check
              _
            $region62: #{mla_forward.2} parent=55 // pred_check_branch
              %1124 = sbr.rel (0) target = $region64
            $region63: #{mla_forward.2} parent=55 // pred_region
              loop: start=0, step=1, limit=1
              $region65: #{mla_forward.2} parent=63 // loop_pre_header
                _
              $region66: #{mla_forward.2} parent=63 // loop_header
                %s1127 = sphi 0, %s1131
                %p1128 = scmp.ge.s32.totalorder %s1127, 1
                %s1132 = sphi %s1086, %s1086
                %s1133 = sphi %s1118, %s1118
              $region67: #{mla_forward.2} parent=63 // loop_header_branch
                %1130 = sbr.rel (%p1128) target = $region71
              $region68: #{mla_forward.2} parent=63 // loop_body
                %v1134 = vld [vmem:[%s1132] sm:$0xf]
                %1135 = vst [vmem:[%s1133] sm:$0xf] %v1134
                %v1136 = vld [vmem:[%s1132 + $0x4] sm:$0xf]
                %1137 = vst [vmem:[%s1133 + $0x4] sm:$0xf] %v1136
                %v1138 = vld [vmem:[%s1132 + $0x8] sm:$0xf]
                %1139 = vst [vmem:[%s1133 + $0x10] sm:$0xf] %v1138
                %v1140 = vld [vmem:[%s1132 + $0xc] sm:$0xf]
                %1141 = vst [vmem:[%s1133 + $0x14] sm:$0xf] %v1140
                %v1142 = vld [vmem:[%s1132 + $0x10] sm:$0xf]
                %1143 = vst [vmem:[%s1133 + $0x20] sm:$0xf] %v1142
                %v1144 = vld [vmem:[%s1132 + $0x14] sm:$0xf]
                %1145 = vst [vmem:[%s1133 + $0x24] sm:$0xf] %v1144
                %v1146 = vld [vmem:[%s1132 + $0x18] sm:$0xf]
                %1147 = vst [vmem:[%s1133 + $0x30] sm:$0xf] %v1146
                %v1148 = vld [vmem:[%s1132 + $0x1c] sm:$0xf]
                %1149 = vst [vmem:[%s1133 + $0x34] sm:$0xf] %v1148
              $region69: #{mla_forward.2} parent=63 // loop_footer
                %s1131 = sadd.s32 1, %s1127
              $region70: #{mla_forward.2} parent=63 // loop_footer_branch
                %1126 = sbr.rel target = $region66
              $region71: #{mla_forward.2} parent=63 // loop_exit
                _
            $region64: #{mla_forward.2} parent=55 // pred_fallthru
              _
          $region56: #{mla_forward.2} parent=51 // pred_fallthru
            _
          %1185 = vnop
        $region52: #{mla_forward.2} parent=47 // pred_fallthru
          _
        // Predicated region
        $region90: #{mla_forward.2} parent=47 // pred_check
          %p1186 = pneg %p231
        $region91: #{mla_forward.2} parent=47 // pred_check_branch
          %1188 = sbr.rel (%p1186) target = $region93
        $region92: #{mla_forward.2} parent=47 // pred_region
          %s1189 = smul.u32 2, %s25
          %s1190 = smul.addr %s1189, 4
          %s1191 = scalar_lea.vmem %s8, %s1190
          // Predicated region
          $region94: #{mla_forward.2} parent=92 // pred_check
            _
          $region95: #{mla_forward.2} parent=92 // pred_check_branch
            %1193 = sbr.rel (0) target = $region97
          $region96: #{mla_forward.2} parent=92 // pred_region
            // Predicated region
            $region98: #{mla_forward.2} parent=96 // pred_check
              _
            $region99: #{mla_forward.2} parent=96 // pred_check_branch
              %1195 = sbr.rel target = $region101
            $region100: #{mla_forward.2} parent=96 // pred_region
              // Predicated region
              $region113: #{mla_forward.2} parent=100 // pred_check
                _
              $region114: #{mla_forward.2} parent=100 // pred_check_branch
                %1224 = sbr.rel (0) target = $region116
              $region115: #{mla_forward.2} parent=100 // pred_region
                loop: start=0, step=1, limit=1
                $region117: #{mla_forward.2} parent=115 // loop_pre_header
                  _
                $region118: #{mla_forward.2} parent=115 // loop_header
                  %s1226 = sphi 0, %s1230
                  %p1227 = scmp.ge.s32.totalorder %s1226, 1
                  %s1231 = sphi %s1090, %s1090
                  %s1232 = sphi %s1191, %s1191
                $region119: #{mla_forward.2} parent=115 // loop_header_branch
                  %1229 = sbr.rel (%p1227) target = $region123
                $region120: #{mla_forward.2} parent=115 // loop_body
                  _
                $region121: #{mla_forward.2} parent=115 // loop_footer
                  %s1230 = sadd.s32 1, %s1226
                $region122: #{mla_forward.2} parent=115 // loop_footer_branch
                  %1225 = sbr.rel target = $region118
                $region123: #{mla_forward.2} parent=115 // loop_exit
                  _
                loop: start=0, step=1, limit=1
                $region124: #{mla_forward.2} parent=115 // loop_pre_header
                  _
                $region125: #{mla_forward.2} parent=115 // loop_header
                  %s1235 = sphi 0, %s1239
                  %p1236 = scmp.ge.s32.totalorder %s1235, 1
                  %s1240 = sphi %s1090, %s1090
                  %s1241 = sphi %s1191, %s1191
                $region126: #{mla_forward.2} parent=115 // loop_header_branch
                  %1238 = sbr.rel (%p1236) target = $region130
                $region127: #{mla_forward.2} parent=115 // loop_body
                  %v1242 = vld [vmem:[%s1240] sm:$0xf]
                  %1243 = vst [vmem:[%s1241] sm:$0xf] %v1242
                  %v1244 = vld [vmem:[%s1240 + $0x4] sm:$0xf]
                  %1245 = vst [vmem:[%s1241 + $0x4] sm:$0xf] %v1244
                  %v1246 = vld [vmem:[%s1240 + $0x8] sm:$0xf]
                  %1247 = vst [vmem:[%s1241 + $0x10] sm:$0xf] %v1246
                  %v1248 = vld [vmem:[%s1240 + $0xc] sm:$0xf]
                  %1249 = vst [vmem:[%s1241 + $0x14] sm:$0xf] %v1248
                  %v1250 = vld [vmem:[%s1240 + $0x10] sm:$0xf]
                  %1251 = vst [vmem:[%s1241 + $0x20] sm:$0xf] %v1250
                  %v1252 = vld [vmem:[%s1240 + $0x14] sm:$0xf]
                  %1253 = vst [vmem:[%s1241 + $0x24] sm:$0xf] %v1252
                  %v1254 = vld [vmem:[%s1240 + $0x18] sm:$0xf]
                  %1255 = vst [vmem:[%s1241 + $0x30] sm:$0xf] %v1254
                  %v1256 = vld [vmem:[%s1240 + $0x1c] sm:$0xf]
                  %1257 = vst [vmem:[%s1241 + $0x34] sm:$0xf] %v1256
                $region128: #{mla_forward.2} parent=115 // loop_footer
                  %s1239 = sadd.s32 1, %s1235
                $region129: #{mla_forward.2} parent=115 // loop_footer_branch
                  %1234 = sbr.rel target = $region125
                $region130: #{mla_forward.2} parent=115 // loop_exit
                  _
              $region116: #{mla_forward.2} parent=100 // pred_fallthru
                _
            $region101: #{mla_forward.2} parent=96 // pred_fallthru
              _
            // Predicated region
            $region102: #{mla_forward.2} parent=96 // pred_check
              _
            $region103: #{mla_forward.2} parent=96 // pred_check_branch
              %1197 = sbr.rel (0) target = $region105
            $region104: #{mla_forward.2} parent=96 // pred_region
              loop: start=0, step=1, limit=1
              $region106: #{mla_forward.2} parent=104 // loop_pre_header
                _
              $region107: #{mla_forward.2} parent=104 // loop_header
                %s1200 = sphi 0, %s1204
                %p1201 = scmp.ge.s32.totalorder %s1200, 1
                %s1205 = sphi %s1090, %s1090
                %s1206 = sphi %s1191, %s1191
              $region108: #{mla_forward.2} parent=104 // loop_header_branch
                %1203 = sbr.rel (%p1201) target = $region112
              $region109: #{mla_forward.2} parent=104 // loop_body
                %v1207 = vld [vmem:[%s1205] sm:$0xf]
                %1208 = vst [vmem:[%s1206] sm:$0xf] %v1207
                %v1209 = vld [vmem:[%s1205 + $0x4] sm:$0xf]
                %1210 = vst [vmem:[%s1206 + $0x4] sm:$0xf] %v1209
                %v1211 = vld [vmem:[%s1205 + $0x8] sm:$0xf]
                %1212 = vst [vmem:[%s1206 + $0x10] sm:$0xf] %v1211
                %v1213 = vld [vmem:[%s1205 + $0xc] sm:$0xf]
                %1214 = vst [vmem:[%s1206 + $0x14] sm:$0xf] %v1213
                %v1215 = vld [vmem:[%s1205 + $0x10] sm:$0xf]
                %1216 = vst [vmem:[%s1206 + $0x20] sm:$0xf] %v1215
                %v1217 = vld [vmem:[%s1205 + $0x14] sm:$0xf]
                %1218 = vst [vmem:[%s1206 + $0x24] sm:$0xf] %v1217
                %v1219 = vld [vmem:[%s1205 + $0x18] sm:$0xf]
                %1220 = vst [vmem:[%s1206 + $0x30] sm:$0xf] %v1219
                %v1221 = vld [vmem:[%s1205 + $0x1c] sm:$0xf]
                %1222 = vst [vmem:[%s1206 + $0x34] sm:$0xf] %v1221
              $region110: #{mla_forward.2} parent=104 // loop_footer
                %s1204 = sadd.s32 1, %s1200
              $region111: #{mla_forward.2} parent=104 // loop_footer_branch
                %1199 = sbr.rel target = $region107
              $region112: #{mla_forward.2} parent=104 // loop_exit
                _
            $region105: #{mla_forward.2} parent=96 // pred_fallthru
              _
          $region97: #{mla_forward.2} parent=92 // pred_fallthru
            _
          %1258 = vnop
        $region93: #{mla_forward.2} parent=47 // pred_fallthru
          _
        // Predicated region
        $region131: #{mla_forward.2} parent=47 // pred_check
          %p1259 = pneg %p257
        $region132: #{mla_forward.2} parent=47 // pred_check_branch
          %1261 = sbr.rel (%p1259) target = $region134
        $region133: #{mla_forward.2} parent=47 // pred_region
          %s1262 = smul.u32 2, %s25
          %s1263 = smul.addr %s1262, 4
          %s1264 = scalar_lea.vmem %s9, %s1263
          // Predicated region
          $region135: #{mla_forward.2} parent=133 // pred_check
            _
          $region136: #{mla_forward.2} parent=133 // pred_check_branch
            %1266 = sbr.rel (0) target = $region138
          $region137: #{mla_forward.2} parent=133 // pred_region
            // Predicated region
            $region139: #{mla_forward.2} parent=137 // pred_check
              _
            $region140: #{mla_forward.2} parent=137 // pred_check_branch
              %1268 = sbr.rel target = $region142
            $region141: #{mla_forward.2} parent=137 // pred_region
              // Predicated region
              $region154: #{mla_forward.2} parent=141 // pred_check
                _
              $region155: #{mla_forward.2} parent=141 // pred_check_branch
                %1297 = sbr.rel (0) target = $region157
              $region156: #{mla_forward.2} parent=141 // pred_region
                loop: start=0, step=1, limit=1
                $region158: #{mla_forward.2} parent=156 // loop_pre_header
                  _
                $region159: #{mla_forward.2} parent=156 // loop_header
                  %s1299 = sphi 0, %s1303
                  %p1300 = scmp.ge.s32.totalorder %s1299, 1
                  %s1304 = sphi %s1094, %s1094
                  %s1305 = sphi %s1264, %s1264
                $region160: #{mla_forward.2} parent=156 // loop_header_branch
                  %1302 = sbr.rel (%p1300) target = $region164
                $region161: #{mla_forward.2} parent=156 // loop_body
                  _
                $region162: #{mla_forward.2} parent=156 // loop_footer
                  %s1303 = sadd.s32 1, %s1299
                $region163: #{mla_forward.2} parent=156 // loop_footer_branch
                  %1298 = sbr.rel target = $region159
                $region164: #{mla_forward.2} parent=156 // loop_exit
                  _
                loop: start=0, step=1, limit=1
                $region165: #{mla_forward.2} parent=156 // loop_pre_header
                  _
                $region166: #{mla_forward.2} parent=156 // loop_header
                  %s1308 = sphi 0, %s1312
                  %p1309 = scmp.ge.s32.totalorder %s1308, 1
                  %s1313 = sphi %s1094, %s1094
                  %s1314 = sphi %s1264, %s1264
                $region167: #{mla_forward.2} parent=156 // loop_header_branch
                  %1311 = sbr.rel (%p1309) target = $region171
                $region168: #{mla_forward.2} parent=156 // loop_body
                  %v1315 = vld [vmem:[%s1313] sm:$0xf]
                  %1316 = vst [vmem:[%s1314] sm:$0xf] %v1315
                  %v1317 = vld [vmem:[%s1313 + $0x4] sm:$0xf]
                  %1318 = vst [vmem:[%s1314 + $0x4] sm:$0xf] %v1317
                  %v1319 = vld [vmem:[%s1313 + $0x8] sm:$0xf]
                  %1320 = vst [vmem:[%s1314 + $0x10] sm:$0xf] %v1319
                  %v1321 = vld [vmem:[%s1313 + $0xc] sm:$0xf]
                  %1322 = vst [vmem:[%s1314 + $0x14] sm:$0xf] %v1321
                  %v1323 = vld [vmem:[%s1313 + $0x10] sm:$0xf]
                  %1324 = vst [vmem:[%s1314 + $0x20] sm:$0xf] %v1323
                  %v1325 = vld [vmem:[%s1313 + $0x14] sm:$0xf]
                  %1326 = vst [vmem:[%s1314 + $0x24] sm:$0xf] %v1325
                  %v1327 = vld [vmem:[%s1313 + $0x18] sm:$0xf]
                  %1328 = vst [vmem:[%s1314 + $0x30] sm:$0xf] %v1327
                  %v1329 = vld [vmem:[%s1313 + $0x1c] sm:$0xf]
                  %1330 = vst [vmem:[%s1314 + $0x34] sm:$0xf] %v1329
                $region169: #{mla_forward.2} parent=156 // loop_footer
                  %s1312 = sadd.s32 1, %s1308
                $region170: #{mla_forward.2} parent=156 // loop_footer_branch
                  %1307 = sbr.rel target = $region166
                $region171: #{mla_forward.2} parent=156 // loop_exit
                  _
              $region157: #{mla_forward.2} parent=141 // pred_fallthru
                _
            $region142: #{mla_forward.2} parent=137 // pred_fallthru
              _
            // Predicated region
            $region143: #{mla_forward.2} parent=137 // pred_check
              _
            $region144: #{mla_forward.2} parent=137 // pred_check_branch
              %1270 = sbr.rel (0) target = $region146
            $region145: #{mla_forward.2} parent=137 // pred_region
              loop: start=0, step=1, limit=1
              $region147: #{mla_forward.2} parent=145 // loop_pre_header
                _
              $region148: #{mla_forward.2} parent=145 // loop_header
                %s1273 = sphi 0, %s1277
                %p1274 = scmp.ge.s32.totalorder %s1273, 1
                %s1278 = sphi %s1094, %s1094
                %s1279 = sphi %s1264, %s1264
              $region149: #{mla_forward.2} parent=145 // loop_header_branch
                %1276 = sbr.rel (%p1274) target = $region153
              $region150: #{mla_forward.2} parent=145 // loop_body
                %v1280 = vld [vmem:[%s1278] sm:$0xf]
                %1281 = vst [vmem:[%s1279] sm:$0xf] %v1280
                %v1282 = vld [vmem:[%s1278 + $0x4] sm:$0xf]
                %1283 = vst [vmem:[%s1279 + $0x4] sm:$0xf] %v1282
                %v1284 = vld [vmem:[%s1278 + $0x8] sm:$0xf]
                %1285 = vst [vmem:[%s1279 + $0x10] sm:$0xf] %v1284
                %v1286 = vld [vmem:[%s1278 + $0xc] sm:$0xf]
                %1287 = vst [vmem:[%s1279 + $0x14] sm:$0xf] %v1286
                %v1288 = vld [vmem:[%s1278 + $0x10] sm:$0xf]
                %1289 = vst [vmem:[%s1279 + $0x20] sm:$0xf] %v1288
                %v1290 = vld [vmem:[%s1278 + $0x14] sm:$0xf]
                %1291 = vst [vmem:[%s1279 + $0x24] sm:$0xf] %v1290
                %v1292 = vld [vmem:[%s1278 + $0x18] sm:$0xf]
                %1293 = vst [vmem:[%s1279 + $0x30] sm:$0xf] %v1292
                %v1294 = vld [vmem:[%s1278 + $0x1c] sm:$0xf]
                %1295 = vst [vmem:[%s1279 + $0x34] sm:$0xf] %v1294
              $region151: #{mla_forward.2} parent=145 // loop_footer
                %s1277 = sadd.s32 1, %s1273
              $region152: #{mla_forward.2} parent=145 // loop_footer_branch
                %1272 = sbr.rel target = $region148
              $region153: #{mla_forward.2} parent=145 // loop_exit
                _
            $region146: #{mla_forward.2} parent=137 // pred_fallthru
              _
          $region138: #{mla_forward.2} parent=133 // pred_fallthru
            _
          %1331 = vnop
        $region134: #{mla_forward.2} parent=47 // pred_fallthru
          _
        // Predicated region
        $region172: #{mla_forward.2} parent=47 // pred_check
          %p1332 = pneg %p283
        $region173: #{mla_forward.2} parent=47 // pred_check_branch
          %1334 = sbr.rel (%p1332) target = $region175
        $region174: #{mla_forward.2} parent=47 // pred_region
          %s1335 = smul.u32 2, %s25
        $region175: #{mla_forward.2} parent=47 // pred_fallthru
          _
        // Predicated region
        $region176: #{mla_forward.2} parent=47 // pred_check
          %p1336 = pneg %p309
        $region177: #{mla_forward.2} parent=47 // pred_check_branch
          %1338 = sbr.rel (%p1336) target = $region179
        $region178: #{mla_forward.2} parent=47 // pred_region
          %s1339 = smul.u32 2, %s25
        $region179: #{mla_forward.2} parent=47 // pred_fallthru
          _
        // Predicated region
        $region180: #{mla_forward.2} parent=47 // pred_check
          %p1340 = pneg %p335
        $region181: #{mla_forward.2} parent=47 // pred_check_branch
          %1342 = sbr.rel (%p1340) target = $region183
        $region182: #{mla_forward.2} parent=47 // pred_region
          %s1343 = smul.u32 2, %s25
          %s1344 = smul.addr %s1343, 4
          %s1345 = scalar_lea.vmem %s12, %s1344
          // Predicated region
          $region184: #{mla_forward.2} parent=182 // pred_check
            _
          $region185: #{mla_forward.2} parent=182 // pred_check_branch
            %1347 = sbr.rel (0) target = $region187
          $region186: #{mla_forward.2} parent=182 // pred_region
            // Predicated region
            $region188: #{mla_forward.2} parent=186 // pred_check
              _
            $region189: #{mla_forward.2} parent=186 // pred_check_branch
              %1349 = sbr.rel target = $region191
            $region190: #{mla_forward.2} parent=186 // pred_region
              // Predicated region
              $region203: #{mla_forward.2} parent=190 // pred_check
                _
              $region204: #{mla_forward.2} parent=190 // pred_check_branch
                %1378 = sbr.rel (0) target = $region206
              $region205: #{mla_forward.2} parent=190 // pred_region
                loop: start=0, step=1, limit=1
                $region207: #{mla_forward.2} parent=205 // loop_pre_header
                  _
                $region208: #{mla_forward.2} parent=205 // loop_header
                  %s1380 = sphi 0, %s1384
                  %p1381 = scmp.ge.s32.totalorder %s1380, 1
                  %s1385 = sphi %s1108, %s1108
                  %s1386 = sphi %s1345, %s1345
                $region209: #{mla_forward.2} parent=205 // loop_header_branch
                  %1383 = sbr.rel (%p1381) target = $region213
                $region210: #{mla_forward.2} parent=205 // loop_body
                  _
                $region211: #{mla_forward.2} parent=205 // loop_footer
                  %s1384 = sadd.s32 1, %s1380
                $region212: #{mla_forward.2} parent=205 // loop_footer_branch
                  %1379 = sbr.rel target = $region208
                $region213: #{mla_forward.2} parent=205 // loop_exit
                  _
                loop: start=0, step=1, limit=1
                $region214: #{mla_forward.2} parent=205 // loop_pre_header
                  _
                $region215: #{mla_forward.2} parent=205 // loop_header
                  %s1389 = sphi 0, %s1393
                  %p1390 = scmp.ge.s32.totalorder %s1389, 1
                  %s1394 = sphi %s1108, %s1108
                  %s1395 = sphi %s1345, %s1345
                $region216: #{mla_forward.2} parent=205 // loop_header_branch
                  %1392 = sbr.rel (%p1390) target = $region220
                $region217: #{mla_forward.2} parent=205 // loop_body
                  %v1396 = vld [vmem:[%s1394] sm:$0xf]
                  %1397 = vst [vmem:[%s1395] sm:$0xf] %v1396
                  %v1398 = vld [vmem:[%s1394 + $0x4] sm:$0xf]
                  %1399 = vst [vmem:[%s1395 + $0x4] sm:$0xf] %v1398
                  %v1400 = vld [vmem:[%s1394 + $0x8] sm:$0xf]
                  %1401 = vst [vmem:[%s1395 + $0x10] sm:$0xf] %v1400
                  %v1402 = vld [vmem:[%s1394 + $0xc] sm:$0xf]
                  %1403 = vst [vmem:[%s1395 + $0x14] sm:$0xf] %v1402
                  %v1404 = vld [vmem:[%s1394 + $0x10] sm:$0xf]
                  %1405 = vst [vmem:[%s1395 + $0x20] sm:$0xf] %v1404
                  %v1406 = vld [vmem:[%s1394 + $0x14] sm:$0xf]
                  %1407 = vst [vmem:[%s1395 + $0x24] sm:$0xf] %v1406
                  %v1408 = vld [vmem:[%s1394 + $0x18] sm:$0xf]
                  %1409 = vst [vmem:[%s1395 + $0x30] sm:$0xf] %v1408
                  %v1410 = vld [vmem:[%s1394 + $0x1c] sm:$0xf]
                  %1411 = vst [vmem:[%s1395 + $0x34] sm:$0xf] %v1410
                $region218: #{mla_forward.2} parent=205 // loop_footer
                  %s1393 = sadd.s32 1, %s1389
                $region219: #{mla_forward.2} parent=205 // loop_footer_branch
                  %1388 = sbr.rel target = $region215
                $region220: #{mla_forward.2} parent=205 // loop_exit
                  _
              $region206: #{mla_forward.2} parent=190 // pred_fallthru
                _
            $region191: #{mla_forward.2} parent=186 // pred_fallthru
              _
            // Predicated region
            $region192: #{mla_forward.2} parent=186 // pred_check
              _
            $region193: #{mla_forward.2} parent=186 // pred_check_branch
              %1351 = sbr.rel (0) target = $region195
            $region194: #{mla_forward.2} parent=186 // pred_region
              loop: start=0, step=1, limit=1
              $region196: #{mla_forward.2} parent=194 // loop_pre_header
                _
              $region197: #{mla_forward.2} parent=194 // loop_header
                %s1354 = sphi 0, %s1358
                %p1355 = scmp.ge.s32.totalorder %s1354, 1
                %s1359 = sphi %s1108, %s1108
                %s1360 = sphi %s1345, %s1345
              $region198: #{mla_forward.2} parent=194 // loop_header_branch
                %1357 = sbr.rel (%p1355) target = $region202
              $region199: #{mla_forward.2} parent=194 // loop_body
                %v1361 = vld [vmem:[%s1359] sm:$0xf]
                %1362 = vst [vmem:[%s1360] sm:$0xf] %v1361
                %v1363 = vld [vmem:[%s1359 + $0x4] sm:$0xf]
                %1364 = vst [vmem:[%s1360 + $0x4] sm:$0xf] %v1363
                %v1365 = vld [vmem:[%s1359 + $0x8] sm:$0xf]
                %1366 = vst [vmem:[%s1360 + $0x10] sm:$0xf] %v1365
                %v1367 = vld [vmem:[%s1359 + $0xc] sm:$0xf]
                %1368 = vst [vmem:[%s1360 + $0x14] sm:$0xf] %v1367
                %v1369 = vld [vmem:[%s1359 + $0x10] sm:$0xf]
                %1370 = vst [vmem:[%s1360 + $0x20] sm:$0xf] %v1369
                %v1371 = vld [vmem:[%s1359 + $0x14] sm:$0xf]
                %1372 = vst [vmem:[%s1360 + $0x24] sm:$0xf] %v1371
                %v1373 = vld [vmem:[%s1359 + $0x18] sm:$0xf]
                %1374 = vst [vmem:[%s1360 + $0x30] sm:$0xf] %v1373
                %v1375 = vld [vmem:[%s1359 + $0x1c] sm:$0xf]
                %1376 = vst [vmem:[%s1360 + $0x34] sm:$0xf] %v1375
              $region200: #{mla_forward.2} parent=194 // loop_footer
                %s1358 = sadd.s32 1, %s1354
              $region201: #{mla_forward.2} parent=194 // loop_footer_branch
                %1353 = sbr.rel target = $region197
              $region202: #{mla_forward.2} parent=194 // loop_exit
                _
            $region195: #{mla_forward.2} parent=186 // pred_fallthru
              _
          $region187: #{mla_forward.2} parent=182 // pred_fallthru
            _
          %1412 = vnop
        $region183: #{mla_forward.2} parent=47 // pred_fallthru
          _
        // Predicated region
        $region221: #{mla_forward.2} parent=47 // pred_check
          %p1413 = pneg %p361
        $region222: #{mla_forward.2} parent=47 // pred_check_branch
          %1415 = sbr.rel (%p1413) target = $region224
        $region223: #{mla_forward.2} parent=47 // pred_region
          %s1416 = smul.u32 2, %s25
          %s1417 = smul.addr %s1416, 4
          %s1418 = scalar_lea.vmem %s13, %s1417
          // Predicated region
          $region225: #{mla_forward.2} parent=223 // pred_check
            _
          $region226: #{mla_forward.2} parent=223 // pred_check_branch
            %1420 = sbr.rel (0) target = $region228
          $region227: #{mla_forward.2} parent=223 // pred_region
            // Predicated region
            $region229: #{mla_forward.2} parent=227 // pred_check
              _
            $region230: #{mla_forward.2} parent=227 // pred_check_branch
              %1422 = sbr.rel target = $region232
            $region231: #{mla_forward.2} parent=227 // pred_region
              // Predicated region
              $region244: #{mla_forward.2} parent=231 // pred_check
                _
              $region245: #{mla_forward.2} parent=231 // pred_check_branch
                %1451 = sbr.rel (0) target = $region247
              $region246: #{mla_forward.2} parent=231 // pred_region
                loop: start=0, step=1, limit=1
                $region248: #{mla_forward.2} parent=246 // loop_pre_header
                  _
                $region249: #{mla_forward.2} parent=246 // loop_header
                  %s1453 = sphi 0, %s1457
                  %p1454 = scmp.ge.s32.totalorder %s1453, 1
                  %s1458 = sphi %s1112, %s1112
                  %s1459 = sphi %s1418, %s1418
                $region250: #{mla_forward.2} parent=246 // loop_header_branch
                  %1456 = sbr.rel (%p1454) target = $region254
                $region251: #{mla_forward.2} parent=246 // loop_body
                  _
                $region252: #{mla_forward.2} parent=246 // loop_footer
                  %s1457 = sadd.s32 1, %s1453
                $region253: #{mla_forward.2} parent=246 // loop_footer_branch
                  %1452 = sbr.rel target = $region249
                $region254: #{mla_forward.2} parent=246 // loop_exit
                  _
                loop: start=0, step=1, limit=1
                $region255: #{mla_forward.2} parent=246 // loop_pre_header
                  _
                $region256: #{mla_forward.2} parent=246 // loop_header
                  %s1462 = sphi 0, %s1466
                  %p1463 = scmp.ge.s32.totalorder %s1462, 1
                  %s1467 = sphi %s1112, %s1112
                  %s1468 = sphi %s1418, %s1418
                $region257: #{mla_forward.2} parent=246 // loop_header_branch
                  %1465 = sbr.rel (%p1463) target = $region261
                $region258: #{mla_forward.2} parent=246 // loop_body
                  %v1469 = vld [vmem:[%s1467] sm:$0xf]
                  %1470 = vst [vmem:[%s1468] sm:$0xf] %v1469
                  %v1471 = vld [vmem:[%s1467 + $0x4] sm:$0xf]
                  %1472 = vst [vmem:[%s1468 + $0x4] sm:$0xf] %v1471
                  %v1473 = vld [vmem:[%s1467 + $0x8] sm:$0xf]
                  %1474 = vst [vmem:[%s1468 + $0x10] sm:$0xf] %v1473
                  %v1475 = vld [vmem:[%s1467 + $0xc] sm:$0xf]
                  %1476 = vst [vmem:[%s1468 + $0x14] sm:$0xf] %v1475
                  %v1477 = vld [vmem:[%s1467 + $0x10] sm:$0xf]
                  %1478 = vst [vmem:[%s1468 + $0x20] sm:$0xf] %v1477
                  %v1479 = vld [vmem:[%s1467 + $0x14] sm:$0xf]
                  %1480 = vst [vmem:[%s1468 + $0x24] sm:$0xf] %v1479
                  %v1481 = vld [vmem:[%s1467 + $0x18] sm:$0xf]
                  %1482 = vst [vmem:[%s1468 + $0x30] sm:$0xf] %v1481
                  %v1483 = vld [vmem:[%s1467 + $0x1c] sm:$0xf]
                  %1484 = vst [vmem:[%s1468 + $0x34] sm:$0xf] %v1483
                $region259: #{mla_forward.2} parent=246 // loop_footer
                  %s1466 = sadd.s32 1, %s1462
                $region260: #{mla_forward.2} parent=246 // loop_footer_branch
                  %1461 = sbr.rel target = $region256
                $region261: #{mla_forward.2} parent=246 // loop_exit
                  _
              $region247: #{mla_forward.2} parent=231 // pred_fallthru
                _
            $region232: #{mla_forward.2} parent=227 // pred_fallthru
              _
            // Predicated region
            $region233: #{mla_forward.2} parent=227 // pred_check
              _
            $region234: #{mla_forward.2} parent=227 // pred_check_branch
              %1424 = sbr.rel (0) target = $region236
            $region235: #{mla_forward.2} parent=227 // pred_region
              loop: start=0, step=1, limit=1
              $region237: #{mla_forward.2} parent=235 // loop_pre_header
                _
              $region238: #{mla_forward.2} parent=235 // loop_header
                %s1427 = sphi 0, %s1431
                %p1428 = scmp.ge.s32.totalorder %s1427, 1
                %s1432 = sphi %s1112, %s1112
                %s1433 = sphi %s1418, %s1418
              $region239: #{mla_forward.2} parent=235 // loop_header_branch
                %1430 = sbr.rel (%p1428) target = $region243
              $region240: #{mla_forward.2} parent=235 // loop_body
                %v1434 = vld [vmem:[%s1432] sm:$0xf]
                %1435 = vst [vmem:[%s1433] sm:$0xf] %v1434
                %v1436 = vld [vmem:[%s1432 + $0x4] sm:$0xf]
                %1437 = vst [vmem:[%s1433 + $0x4] sm:$0xf] %v1436
                %v1438 = vld [vmem:[%s1432 + $0x8] sm:$0xf]
                %1439 = vst [vmem:[%s1433 + $0x10] sm:$0xf] %v1438
                %v1440 = vld [vmem:[%s1432 + $0xc] sm:$0xf]
                %1441 = vst [vmem:[%s1433 + $0x14] sm:$0xf] %v1440
                %v1442 = vld [vmem:[%s1432 + $0x10] sm:$0xf]
                %1443 = vst [vmem:[%s1433 + $0x20] sm:$0xf] %v1442
                %v1444 = vld [vmem:[%s1432 + $0x14] sm:$0xf]
                %1445 = vst [vmem:[%s1433 + $0x24] sm:$0xf] %v1444
                %v1446 = vld [vmem:[%s1432 + $0x18] sm:$0xf]
                %1447 = vst [vmem:[%s1433 + $0x30] sm:$0xf] %v1446
                %v1448 = vld [vmem:[%s1432 + $0x1c] sm:$0xf]
                %1449 = vst [vmem:[%s1433 + $0x34] sm:$0xf] %v1448
              $region241: #{mla_forward.2} parent=235 // loop_footer
                %s1431 = sadd.s32 1, %s1427
              $region242: #{mla_forward.2} parent=235 // loop_footer_branch
                %1426 = sbr.rel target = $region238
              $region243: #{mla_forward.2} parent=235 // loop_exit
                _
            $region236: #{mla_forward.2} parent=227 // pred_fallthru
              _
          $region228: #{mla_forward.2} parent=223 // pred_fallthru
            _
          %1485 = vnop
        $region224: #{mla_forward.2} parent=47 // pred_fallthru
          _
      $region48: #{mla_forward.2} parent=5 // pred_fallthru
        _
      %p1486 = scmp.le.s32.totalorder 2, %s20
      // Predicated region
      $region262: #{mla_forward.2} parent=5 // pred_check
        %p1487 = pneg %p1486
      $region263: #{mla_forward.2} parent=5 // pred_check_branch
        %1489 = sbr.rel (%p1487) target = $region265
      $region264: #{mla_forward.2} parent=5 // pred_region
        %s1490 = ssub.s32 %s20, 2
        // Predicated region
        $region266: #{mla_forward.2} parent=264 // pred_check
          %p1491 = pneg %p211
        $region267: #{mla_forward.2} parent=264 // pred_check_branch
          %1493 = sbr.rel (%p1491) target = $region269
        $region268: #{mla_forward.2} parent=264 // pred_region
          %s1494 = sand.u32 %s196, 1
          %s1495 = sand.u32 %s196, 1
          %s1496 = smul.addr %s1495, 32
          %s1497 = scalar_lea.vmem [#allocation2], %s1496
        $region269: #{mla_forward.2} parent=264 // pred_fallthru
          _
        // Predicated region
        $region270: #{mla_forward.2} parent=264 // pred_check
          %p1498 = pneg %p237
        $region271: #{mla_forward.2} parent=264 // pred_check_branch
          %1500 = sbr.rel (%p1498) target = $region273
        $region272: #{mla_forward.2} parent=264 // pred_region
          %s1501 = sand.u32 %s222, 1
          %s1502 = sand.u32 %s222, 1
          %s1503 = smul.addr %s1502, 32
          %s1504 = scalar_lea.vmem [#allocation3], %s1503
        $region273: #{mla_forward.2} parent=264 // pred_fallthru
          _
        // Predicated region
        $region274: #{mla_forward.2} parent=264 // pred_check
          %p1505 = pneg %p263
        $region275: #{mla_forward.2} parent=264 // pred_check_branch
          %1507 = sbr.rel (%p1505) target = $region277
        $region276: #{mla_forward.2} parent=264 // pred_region
          %s1508 = sand.u32 %s248, 1
          %s1509 = sand.u32 %s248, 1
          %s1510 = smul.addr %s1509, 32
          %s1511 = scalar_lea.vmem [#allocation4], %s1510
        $region277: #{mla_forward.2} parent=264 // pred_fallthru
          _
        // Predicated region
        $region278: #{mla_forward.2} parent=264 // pred_check
          %p1512 = pneg %p289
        $region279: #{mla_forward.2} parent=264 // pred_check_branch
          %1514 = sbr.rel (%p1512) target = $region281
        $region280: #{mla_forward.2} parent=264 // pred_region
          %s1515 = smul.u32 2, %s26
          %p1516 = scmp.lt.s32.totalorder %s1515, 3
          %s1517 = scalar_select %p1516, %s1515, 3
          %s1518 = smul.addr %s1517, 4
          %s1519 = scalar_lea.vmem %s10, %s1518
        $region281: #{mla_forward.2} parent=264 // pred_fallthru
          _
        // Predicated region
        $region282: #{mla_forward.2} parent=264 // pred_check
          %p1520 = pneg %p315
        $region283: #{mla_forward.2} parent=264 // pred_check_branch
          %1522 = sbr.rel (%p1520) target = $region285
        $region284: #{mla_forward.2} parent=264 // pred_region
          %s1523 = smul.u32 2, %s26
          %p1524 = scmp.lt.s32.totalorder %s1523, 3
          %s1525 = scalar_select %p1524, %s1523, 3
          %s1526 = smul.addr %s1525, 4
          %s1527 = scalar_lea.vmem %s11, %s1526
        $region285: #{mla_forward.2} parent=264 // pred_fallthru
          _
        // Predicated region
        $region286: #{mla_forward.2} parent=264 // pred_check
          %p1528 = pneg %p341
        $region287: #{mla_forward.2} parent=264 // pred_check_branch
          %1530 = sbr.rel (%p1528) target = $region289
        $region288: #{mla_forward.2} parent=264 // pred_region
          %s1531 = sand.u32 %s326, 1
          %s1532 = sand.u32 %s326, 1
          %s1533 = smul.addr %s1532, 32
          %s1534 = scalar_lea.vmem [#allocation5], %s1533
        $region289: #{mla_forward.2} parent=264 // pred_fallthru
          _
        // Predicated region
        $region290: #{mla_forward.2} parent=264 // pred_check
          %p1535 = pneg %p367
        $region291: #{mla_forward.2} parent=264 // pred_check_branch
          %1537 = sbr.rel (%p1535) target = $region293
        $region292: #{mla_forward.2} parent=264 // pred_region
          %s1538 = sand.u32 %s352, 1
          %s1539 = sand.u32 %s352, 1
          %s1540 = smul.addr %s1539, 32
          %s1541 = scalar_lea.vmem [#allocation6], %s1540
        $region293: #{mla_forward.2} parent=264 // pred_fallthru
          _
      $region265: #{mla_forward.2} parent=5 // pred_fallthru
        _
    $region6: #{mla_forward.2} parent=1 // loop_footer
      %s24 = sadd.s32 1, %s20
    $region7: #{mla_forward.2} parent=1 // loop_footer_branch
      %19 = sbr.rel target = $region3
    $region8: #{mla_forward.2} parent=1 // loop_exit
      _

// kernel: mla_forward.3
$region0: #{mla_forward.3}
  #allocation0 [shape = 'u32[]', space=smem, size = 0x4, offset = 0x4, fixed_abs, tag = 'smem constant byte address 0x4 - core index']
  #allocation1 [shape = 'u32[144,128]{1,0:T(1,128)}', space=vmem, size = 0x12000, scoped, tag = 'internal scratch']
  %s0 = inlined_call_operand.vmem [shape: bf16[4,32,16], index: 0, kind: input, shape index: {}]
  %s1 = inlined_call_operand.vmem [shape: bf16[4,32,4], index: 1, kind: input, shape index: {}]
  %s2 = inlined_call_operand.vmem [shape: bf16[4,32,4], index: 2, kind: input, shape index: {}]
  %s3 = inlined_call_operand.vmem [shape: bf16[4,32,16], index: 3, kind: input, shape index: {}]
  %s4 = inlined_call_operand.vmem [shape: bf16[32,4], index: 4, kind: input, shape index: {}]
  %s5 = inlined_call_operand.vmem [shape: bf16[32,4], index: 5, kind: input, shape index: {}]
  %s6 = inlined_call_operand.vmem [shape: bf16[4,32,16], index: 6, kind: input, shape index: {}]
  %s7 = inlined_call_operand.vmem [shape: bf16[4,16,64], index: 7, kind: input, shape index: {}]
  %s8 = inlined_call_operand.hbm [shape: f32[2,16,64], index: 8, kind: output, shape index: {}]
  %s9 = sld [smem:[#allocation0]]
  $region270: #{mla_forward.3} parent=0
    _
  %s11 = ssub.s32 1, %s9
  %s12 = scalar_select 0, %s11, %s9
  $region1: #{mla_forward.3} parent=0
    #allocation2 [shape = 'u8[32768]{0}', space=vmem, size = 0x8000, scoped, tag = 'input window, operand 0']
    #allocation3 [shape = 'u8[32768]{0}', space=vmem, size = 0x8000, scoped, tag = 'input window, operand 1']
    #allocation4 [shape = 'u8[32768]{0}', space=vmem, size = 0x8000, scoped, tag = 'input window, operand 2']
    #allocation5 [shape = 'u8[32768]{0}', space=vmem, size = 0x8000, scoped, tag = 'input window, operand 3']
    #allocation6 [shape = 'u8[32768]{0}', space=vmem, size = 0x8000, scoped, tag = 'input window, operand 6']
    #allocation7 [shape = 'u8[16384]{0}', space=vmem, size = 0x4000, scoped, tag = 'output window, operand 0']
    #allocation8 [shape = 's32[2]{0}', space=sflag, size = 0x8, scoped, tag = 'scoped memory for mla_forward.3']
    %13 = vsyncpa [#allocation8], 0
    %s14 = scalar_lea.sflag [#allocation8], 1
    %15 = vsyncpa %s14, 0
    loop: start=0, step=1, limit=4
    $region2: #{mla_forward.3} parent=1 // loop_pre_header
      _
    $region3: #{mla_forward.3} parent=1 // loop_header
      %s17 = sphi 0, %s21
      %p18 = scmp.ge.s32.totalorder %s17, 4
      %s27 = sphi 0, %s29
      %s30 = sphi 0, %s27
      %s31 = sphi 0, %s30
      %s47 = sphi 0, %s31
      %s53 = sphi 0, %s55
      %s56 = sphi 0, %s53
      %s57 = sphi 0, %s56
      %s73 = sphi 0, %s57
      %s79 = sphi 0, %s81
      %s82 = sphi 0, %s79
      %s83 = sphi 0, %s82
      %s99 = sphi 0, %s83
      %s105 = sphi 0, %s107
      %s108 = sphi 0, %s105
      %s109 = sphi 0, %s108
      %s125 = sphi 0, %s109
      %s131 = sphi 0, %s133
      %s134 = sphi 0, %s131
      %s135 = sphi 0, %s134
      %s151 = sphi 0, %s135
      %s157 = sphi 0, %s159
      %s160 = sphi 0, %s157
      %s161 = sphi 0, %s160
      %s177 = sphi 0, %s161
      %s183 = sphi 0, %s185
      %s186 = sphi 0, %s183
      %s187 = sphi 0, %s186
      %s203 = sphi 0, %s187
      %s207 = sphi 0, %s207
      %s209 = sphi 0, %s207
      %s210 = sphi 0, %s209
      %s224 = sphi 0, %s210
      %s230 = sphi 0, %s232
      %s233 = sphi 0, %s230
      %s234 = sphi 0, %s233
      %s250 = sphi 0, %s234
    $region4: #{mla_forward.3} parent=1 // loop_header_branch
      %20 = sbr.rel (%p18) target = $region8
    $region5: #{mla_forward.3} parent=1 // loop_body
      %s22 = ssub.s32 %s17, 1
      %s23 = ssub.s32 %s17, 2
      %s24 = sadd.s32 %s17, 1
      %s25 = ssub.s32 %s17, %s24
      %p26 = scmp.eq.s32.totalorder %s25, 0
      %s28 = sadd.s32 %s27, 1
      %s29 = scalar_select %p26, %s27, %s28
      %p32 = pneg %p26
      %p33 = scmp.eq.s32.totalorder %s17, 1
      %p34 = por %p32, %p33
      %p35 = scmp.ne.s32.totalorder %s27, %s30
      %p36 = scmp.eq.s32.totalorder %s17, 0
      %p37 = por %p35, %p36
      %p38 = scmp.ne.s32.totalorder %s27, %s30
      %p39 = scmp.eq.s32.totalorder %s22, 1
      %p40 = por %p38, %p39
      %p41 = scmp.ne.s32.totalorder %s30, %s31
      %p42 = scmp.eq.s32.totalorder %s22, 0
      %p43 = por %p41, %p42
      %p44 = scmp.ne.s32.totalorder %s30, %s31
      %p45 = scmp.eq.s32.totalorder %s23, 1
      %p46 = por %p44, %p45
      %p48 = scmp.ne.s32.totalorder %s31, %s47
      %p49 = scmp.eq.s32.totalorder %s23, 0
      %p50 = por %p48, %p49
      %s51 = ssub.s32 %s17, %s24
      %p52 = scmp.eq.s32.totalorder %s51, 0
      %s54 = sadd.s32 %s53, 1
      %s55 = scalar_select %p52, %s53, %s54
      %p58 = pneg %p52
      %p59 = scmp.eq.s32.totalorder %s17, 1
      %p60 = por %p58, %p59
      %p61 = scmp.ne.s32.totalorder %s53, %s56
      %p62 = scmp.eq.s32.totalorder %s17, 0
      %p63 = por %p61, %p62
      %p64 = scmp.ne.s32.totalorder %s53, %s56
      %p65 = scmp.eq.s32.totalorder %s22, 1
      %p66 = por %p64, %p65
      %p67 = scmp.ne.s32.totalorder %s56, %s57
      %p68 = scmp.eq.s32.totalorder %s22, 0
      %p69 = por %p67, %p68
      %p70 = scmp.ne.s32.totalorder %s56, %s57
      %p71 = scmp.eq.s32.totalorder %s23, 1
      %p72 = por %p70, %p71
      %p74 = scmp.ne.s32.totalorder %s57, %s73
      %p75 = scmp.eq.s32.totalorder %s23, 0
      %p76 = por %p74, %p75
      %s77 = ssub.s32 %s17, %s24
      %p78 = scmp.eq.s32.totalorder %s77, 0
      %s80 = sadd.s32 %s79, 1
      %s81 = scalar_select %p78, %s79, %s80
      %p84 = pneg %p78
      %p85 = scmp.eq.s32.totalorder %s17, 1
      %p86 = por %p84, %p85
      %p87 = scmp.ne.s32.totalorder %s79, %s82
      %p88 = scmp.eq.s32.totalorder %s17, 0
      %p89 = por %p87, %p88
      %p90 = scmp.ne.s32.totalorder %s79, %s82
      %p91 = scmp.eq.s32.totalorder %s22, 1
      %p92 = por %p90, %p91
      %p93 = scmp.ne.s32.totalorder %s82, %s83
      %p94 = scmp.eq.s32.totalorder %s22, 0
      %p95 = por %p93, %p94
      %p96 = scmp.ne.s32.totalorder %s82, %s83
      %p97 = scmp.eq.s32.totalorder %s23, 1
      %p98 = por %p96, %p97
      %p100 = scmp.ne.s32.totalorder %s83, %s99
      %p101 = scmp.eq.s32.totalorder %s23, 0
      %p102 = por %p100, %p101
      %s103 = ssub.s32 %s17, %s24
      %p104 = scmp.eq.s32.totalorder %s103, 0
      %s106 = sadd.s32 %s105, 1
      %s107 = scalar_select %p104, %s105, %s106
      %p110 = pneg %p104
      %p111 = scmp.eq.s32.totalorder %s17, 1
      %p112 = por %p110, %p111
      %p113 = scmp.ne.s32.totalorder %s105, %s108
      %p114 = scmp.eq.s32.totalorder %s17, 0
      %p115 = por %p113, %p114
      %p116 = scmp.ne.s32.totalorder %s105, %s108
      %p117 = scmp.eq.s32.totalorder %s22, 1
      %p118 = por %p116, %p117
      %p119 = scmp.ne.s32.totalorder %s108, %s109
      %p120 = scmp.eq.s32.totalorder %s22, 0
      %p121 = por %p119, %p120
      %p122 = scmp.ne.s32.totalorder %s108, %s109
      %p123 = scmp.eq.s32.totalorder %s23, 1
      %p124 = por %p122, %p123
      %p126 = scmp.ne.s32.totalorder %s109, %s125
      %p127 = scmp.eq.s32.totalorder %s23, 0
      %p128 = por %p126, %p127
      %s129 = ssub.s32 %s17, %s24
      %p130 = scmp.eq.s32.totalorder %s129, 0
      %s132 = sadd.s32 %s131, 1
      %s133 = scalar_select %p130, %s131, %s132
      %p136 = pneg %p130
      %p137 = scmp.eq.s32.totalorder %s17, 1
      %p138 = por %p136, %p137
      %p139 = scmp.ne.s32.totalorder %s131, %s134
      %p140 = scmp.eq.s32.totalorder %s17, 0
      %p141 = por %p139, %p140
      %p142 = scmp.ne.s32.totalorder %s131, %s134
      %p143 = scmp.eq.s32.totalorder %s22, 1
      %p144 = por %p142, %p143
      %p145 = scmp.ne.s32.totalorder %s134, %s135
      %p146 = scmp.eq.s32.totalorder %s22, 0
      %p147 = por %p145, %p146
      %p148 = scmp.ne.s32.totalorder %s134, %s135
      %p149 = scmp.eq.s32.totalorder %s23, 1
      %p150 = por %p148, %p149
      %p152 = scmp.ne.s32.totalorder %s135, %s151
      %p153 = scmp.eq.s32.totalorder %s23, 0
      %p154 = por %p152, %p153
      %s155 = ssub.s32 %s17, %s24
      %p156 = scmp.eq.s32.totalorder %s155, 0
      %s158 = sadd.s32 %s157, 1
      %s159 = scalar_select %p156, %s157, %s158
      %p162 = pneg %p156
      %p163 = scmp.eq.s32.totalorder %s17, 1
      %p164 = por %p162, %p163
      %p165 = scmp.ne.s32.totalorder %s157, %s160
      %p166 = scmp.eq.s32.totalorder %s17, 0
      %p167 = por %p165, %p166
      %p168 = scmp.ne.s32.totalorder %s157, %s160
      %p169 = scmp.eq.s32.totalorder %s22, 1
      %p170 = por %p168, %p169
      %p171 = scmp.ne.s32.totalorder %s160, %s161
      %p172 = scmp.eq.s32.totalorder %s22, 0
      %p173 = por %p171, %p172
      %p174 = scmp.ne.s32.totalorder %s160, %s161
      %p175 = scmp.eq.s32.totalorder %s23, 1
      %p176 = por %p174, %p175
      %p178 = scmp.ne.s32.totalorder %s161, %s177
      %p179 = scmp.eq.s32.totalorder %s23, 0
      %p180 = por %p178, %p179
      %s181 = ssub.s32 %s17, %s24
      %p182 = scmp.eq.s32.totalorder %s181, 0
      %s184 = sadd.s32 %s183, 1
      %s185 = scalar_select %p182, %s183, %s184
      %p188 = pneg %p182
      %p189 = scmp.eq.s32.totalorder %s17, 1
      %p190 = por %p188, %p189
      %p191 = scmp.ne.s32.totalorder %s183, %s186
      %p192 = scmp.eq.s32.totalorder %s17, 0
      %p193 = por %p191, %p192
      %p194 = scmp.ne.s32.totalorder %s183, %s186
      %p195 = scmp.eq.s32.totalorder %s22, 1
      %p196 = por %p194, %p195
      %p197 = scmp.ne.s32.totalorder %s186, %s187
      %p198 = scmp.eq.s32.totalorder %s22, 0
      %p199 = por %p197, %p198
      %p200 = scmp.ne.s32.totalorder %s186, %s187
      %p201 = scmp.eq.s32.totalorder %s23, 1
      %p202 = por %p200, %p201
      %p204 = scmp.ne.s32.totalorder %s187, %s203
      %p205 = scmp.eq.s32.totalorder %s23, 0
      %p206 = por %p204, %p205
      %s208 = sadd.s32 %s207, 1
      %p211 = scmp.eq.s32.totalorder %s17, 1
      %p212 = scmp.ne.s32.totalorder %s207, %s209
      %p213 = scmp.eq.s32.totalorder %s17, 0
      %p214 = por %p212, %p213
      %p215 = scmp.ne.s32.totalorder %s207, %s209
      %p216 = scmp.eq.s32.totalorder %s22, 1
      %p217 = por %p215, %p216
      %p218 = scmp.ne.s32.totalorder %s209, %s210
      %p219 = scmp.eq.s32.totalorder %s22, 0
      %p220 = por %p218, %p219
      %p221 = scmp.ne.s32.totalorder %s209, %s210
      %p222 = scmp.eq.s32.totalorder %s23, 1
      %p223 = por %p221, %p222
      %p225 = scmp.ne.s32.totalorder %s210, %s224
      %p226 = scmp.eq.s32.totalorder %s23, 0
      %p227 = por %p225, %p226
      %s228 = ssub.s32 %s17, %s24
      %p229 = scmp.eq.s32.totalorder %s228, 0
      %s231 = sadd.s32 %s230, 1
      %s232 = scalar_select %p229, %s230, %s231
      %p235 = pneg %p229
      %p236 = scmp.eq.s32.totalorder %s17, 1
      %p237 = por %p235, %p236
      %p238 = scmp.ne.s32.totalorder %s230, %s233
      %p239 = scmp.eq.s32.totalorder %s17, 0
      %p240 = por %p238, %p239
      %p241 = scmp.ne.s32.totalorder %s230, %s233
      %p242 = scmp.eq.s32.totalorder %s22, 1
      %p243 = por %p241, %p242
      %p244 = scmp.ne.s32.totalorder %s233, %s234
      %p245 = scmp.eq.s32.totalorder %s22, 0
      %p246 = por %p244, %p245
      %p247 = scmp.ne.s32.totalorder %s233, %s234
      %p248 = scmp.eq.s32.totalorder %s23, 1
      %p249 = por %p247, %p248
      %p251 = scmp.ne.s32.totalorder %s234, %s250
      %p252 = scmp.eq.s32.totalorder %s23, 0
      %p253 = por %p251, %p252
      %p254 = scmp.le.s32.totalorder 1, %s17
      %p255 = scmp.lt.s32.totalorder %s17, 3
      %p256 = pnand %p254, %p255
      %p257 = pneg %p256
      // Predicated region
      $region9: #{mla_forward.3} parent=5 // pred_check
        _
      $region10: #{mla_forward.3} parent=5 // pred_check_branch
        %259 = sbr.rel (%p256) target = $region12
      $region11: #{mla_forward.3} parent=5 // pred_region
        %s260 = ssub.s32 %s17, 1
        // Predicated region
        $region13: #{mla_forward.3} parent=11 // pred_check
          %p261 = pneg %p220
        $region14: #{mla_forward.3} parent=11 // pred_check_branch
          %263 = sbr.rel (%p261) target = $region16
        $region15: #{mla_forward.3} parent=11 // pred_region
          _
        $region16: #{mla_forward.3} parent=11 // pred_fallthru
          _
      $region12: #{mla_forward.3} parent=5 // pred_fallthru
        _
      %p264 = scmp.lt.s32.totalorder %s17, 2
      // Predicated region
      $region17: #{mla_forward.3} parent=5 // pred_check
        %p265 = pneg %p264
      $region18: #{mla_forward.3} parent=5 // pred_check_branch
        %267 = sbr.rel (%p265) target = $region20
      $region19: #{mla_forward.3} parent=5 // pred_region
        // Predicated region
        $region21: #{mla_forward.3} parent=19 // pred_check
          %p268 = pneg %p37
        $region22: #{mla_forward.3} parent=19 // pred_check_branch
          %270 = sbr.rel (%p268) target = $region24
        $region23: #{mla_forward.3} parent=19 // pred_region
          %s271 = sand.u32 %s27, 1
          %s272 = sand.u32 %s27, 1
          %s273 = smul.addr %s272, 32
          %s274 = scalar_lea.vmem [#allocation2], %s273
          %s275 = smul.u32 2, %s17
          %s276 = smul.addr %s275, 4
          %s277 = scalar_lea.vmem %s0, %s276
          // Predicated region
          $region25: #{mla_forward.3} parent=23 // pred_check
            _
          $region26: #{mla_forward.3} parent=23 // pred_check_branch
            %279 = sbr.rel (0) target = $region28
          $region27: #{mla_forward.3} parent=23 // pred_region
            // Predicated region
            $region29: #{mla_forward.3} parent=27 // pred_check
              _
            $region30: #{mla_forward.3} parent=27 // pred_check_branch
              %281 = sbr.rel target = $region32
            $region31: #{mla_forward.3} parent=27 // pred_region
              // Predicated region
              $region44: #{mla_forward.3} parent=31 // pred_check
                _
              $region45: #{mla_forward.3} parent=31 // pred_check_branch
                %310 = sbr.rel (0) target = $region47
              $region46: #{mla_forward.3} parent=31 // pred_region
                loop: start=0, step=1, limit=1
                $region48: #{mla_forward.3} parent=46 // loop_pre_header
                  _
                $region49: #{mla_forward.3} parent=46 // loop_header
                  %s312 = sphi 0, %s316
                  %p313 = scmp.ge.s32.totalorder %s312, 1
                  %s317 = sphi %s277, %s277
                  %s318 = sphi %s274, %s274
                $region50: #{mla_forward.3} parent=46 // loop_header_branch
                  %315 = sbr.rel (%p313) target = $region54
                $region51: #{mla_forward.3} parent=46 // loop_body
                  _
                $region52: #{mla_forward.3} parent=46 // loop_footer
                  %s316 = sadd.s32 1, %s312
                $region53: #{mla_forward.3} parent=46 // loop_footer_branch
                  %311 = sbr.rel target = $region49
                $region54: #{mla_forward.3} parent=46 // loop_exit
                  _
                loop: start=0, step=1, limit=1
                $region55: #{mla_forward.3} parent=46 // loop_pre_header
                  _
                $region56: #{mla_forward.3} parent=46 // loop_header
                  %s321 = sphi 0, %s325
                  %p322 = scmp.ge.s32.totalorder %s321, 1
                  %s326 = sphi %s277, %s277
                  %s327 = sphi %s274, %s274
                $region57: #{mla_forward.3} parent=46 // loop_header_branch
                  %324 = sbr.rel (%p322) target = $region61
                $region58: #{mla_forward.3} parent=46 // loop_body
                  %v328 = vld [vmem:[%s326] sm:$0xf]
                  %329 = vst [vmem:[%s327] sm:$0xf] %v328
                  %v330 = vld [vmem:[%s326 + $0x4] sm:$0xf]
                  %331 = vst [vmem:[%s327 + $0x4] sm:$0xf] %v330
                  %v332 = vld [vmem:[%s326 + $0x10] sm:$0xf]
                  %333 = vst [vmem:[%s327 + $0x8] sm:$0xf] %v332
                  %v334 = vld [vmem:[%s326 + $0x14] sm:$0xf]
                  %335 = vst [vmem:[%s327 + $0xc] sm:$0xf] %v334
                  %v336 = vld [vmem:[%s326 + $0x20] sm:$0xf]
                  %337 = vst [vmem:[%s327 + $0x10] sm:$0xf] %v336
                  %v338 = vld [vmem:[%s326 + $0x24] sm:$0xf]
                  %339 = vst [vmem:[%s327 + $0x14] sm:$0xf] %v338
                  %v340 = vld [vmem:[%s326 + $0x30] sm:$0xf]
                  %341 = vst [vmem:[%s327 + $0x18] sm:$0xf] %v340
                  %v342 = vld [vmem:[%s326 + $0x34] sm:$0xf]
                  %343 = vst [vmem:[%s327 + $0x1c] sm:$0xf] %v342
                $region59: #{mla_forward.3} parent=46 // loop_footer
                  %s325 = sadd.s32 1, %s321
                $region60: #{mla_forward.3} parent=46 // loop_footer_branch
                  %320 = sbr.rel target = $region56
                $region61: #{mla_forward.3} parent=46 // loop_exit
                  _
              $region47: #{mla_forward.3} parent=31 // pred_fallthru
                _
            $region32: #{mla_forward.3} parent=27 // pred_fallthru
              _
            // Predicated region
            $region33: #{mla_forward.3} parent=27 // pred_check
              _
            $region34: #{mla_forward.3} parent=27 // pred_check_branch
              %283 = sbr.rel (0) target = $region36
            $region35: #{mla_forward.3} parent=27 // pred_region
              loop: start=0, step=1, limit=1
              $region37: #{mla_forward.3} parent=35 // loop_pre_header
                _
              $region38: #{mla_forward.3} parent=35 // loop_header
                %s286 = sphi 0, %s290
                %p287 = scmp.ge.s32.totalorder %s286, 1
                %s291 = sphi %s277, %s277
                %s292 = sphi %s274, %s274
              $region39: #{mla_forward.3} parent=35 // loop_header_branch
                %289 = sbr.rel (%p287) target = $region43
              $region40: #{mla_forward.3} parent=35 // loop_body
                %v293 = vld [vmem:[%s291] sm:$0xf]
                %294 = vst [vmem:[%s292] sm:$0xf] %v293
                %v295 = vld [vmem:[%s291 + $0x4] sm:$0xf]
                %296 = vst [vmem:[%s292 + $0x4] sm:$0xf] %v295
                %v297 = vld [vmem:[%s291 + $0x10] sm:$0xf]
                %298 = vst [vmem:[%s292 + $0x8] sm:$0xf] %v297
                %v299 = vld [vmem:[%s291 + $0x14] sm:$0xf]
                %300 = vst [vmem:[%s292 + $0xc] sm:$0xf] %v299
                %v301 = vld [vmem:[%s291 + $0x20] sm:$0xf]
                %302 = vst [vmem:[%s292 + $0x10] sm:$0xf] %v301
                %v303 = vld [vmem:[%s291 + $0x24] sm:$0xf]
                %304 = vst [vmem:[%s292 + $0x14] sm:$0xf] %v303
                %v305 = vld [vmem:[%s291 + $0x30] sm:$0xf]
                %306 = vst [vmem:[%s292 + $0x18] sm:$0xf] %v305
                %v307 = vld [vmem:[%s291 + $0x34] sm:$0xf]
                %308 = vst [vmem:[%s292 + $0x1c] sm:$0xf] %v307
              $region41: #{mla_forward.3} parent=35 // loop_footer
                %s290 = sadd.s32 1, %s286
              $region42: #{mla_forward.3} parent=35 // loop_footer_branch
                %285 = sbr.rel target = $region38
              $region43: #{mla_forward.3} parent=35 // loop_exit
                _
            $region36: #{mla_forward.3} parent=27 // pred_fallthru
              _
          $region28: #{mla_forward.3} parent=23 // pred_fallthru
            _
          %344 = vnop
        $region24: #{mla_forward.3} parent=19 // pred_fallthru
          _
        // Predicated region
        $region62: #{mla_forward.3} parent=19 // pred_check
          %p345 = pneg %p63
        $region63: #{mla_forward.3} parent=19 // pred_check_branch
          %347 = sbr.rel (%p345) target = $region65
        $region64: #{mla_forward.3} parent=19 // pred_region
          %s348 = sand.u32 %s53, 1
          %s349 = sand.u32 %s53, 1
          %s350 = smul.addr %s349, 32
          %s351 = scalar_lea.vmem [#allocation3], %s350
          %s352 = smul.u32 2, %s17
          %s353 = smul.addr %s352, 4
          %s354 = scalar_lea.vmem %s1, %s353
          // Predicated region
          $region66: #{mla_forward.3} parent=64 // pred_check
            _
          $region67: #{mla_forward.3} parent=64 // pred_check_branch
            %356 = sbr.rel (0) target = $region69
          $region68: #{mla_forward.3} parent=64 // pred_region
            // Predicated region
            $region70: #{mla_forward.3} parent=68 // pred_check
              _
            $region71: #{mla_forward.3} parent=68 // pred_check_branch
              %358 = sbr.rel target = $region73
            $region72: #{mla_forward.3} parent=68 // pred_region
              // Predicated region
              $region85: #{mla_forward.3} parent=72 // pred_check
                _
              $region86: #{mla_forward.3} parent=72 // pred_check_branch
                %387 = sbr.rel (0) target = $region88
              $region87: #{mla_forward.3} parent=72 // pred_region
                loop: start=0, step=1, limit=1
                $region89: #{mla_forward.3} parent=87 // loop_pre_header
                  _
                $region90: #{mla_forward.3} parent=87 // loop_header
                  %s389 = sphi 0, %s393
                  %p390 = scmp.ge.s32.totalorder %s389, 1
                  %s394 = sphi %s354, %s354
                  %s395 = sphi %s351, %s351
                $region91: #{mla_forward.3} parent=87 // loop_header_branch
                  %392 = sbr.rel (%p390) target = $region95
                $region92: #{mla_forward.3} parent=87 // loop_body
                  _
                $region93: #{mla_forward.3} parent=87 // loop_footer
                  %s393 = sadd.s32 1, %s389
                $region94: #{mla_forward.3} parent=87 // loop_footer_branch
                  %388 = sbr.rel target = $region90
                $region95: #{mla_forward.3} parent=87 // loop_exit
                  _
                loop: start=0, step=1, limit=1
                $region96: #{mla_forward.3} parent=87 // loop_pre_header
                  _
                $region97: #{mla_forward.3} parent=87 // loop_header
                  %s398 = sphi 0, %s402
                  %p399 = scmp.ge.s32.totalorder %s398, 1
                  %s403 = sphi %s354, %s354
                  %s404 = sphi %s351, %s351
                $region98: #{mla_forward.3} parent=87 // loop_header_branch
                  %401 = sbr.rel (%p399) target = $region102
                $region99: #{mla_forward.3} parent=87 // loop_body
                  %v405 = vld [vmem:[%s403] sm:$0xf]
                  %406 = vst [vmem:[%s404] sm:$0xf] %v405
                  %v407 = vld [vmem:[%s403 + $0x4] sm:$0xf]
                  %408 = vst [vmem:[%s404 + $0x4] sm:$0xf] %v407
                  %v409 = vld [vmem:[%s403 + $0x10] sm:$0xf]
                  %410 = vst [vmem:[%s404 + $0x8] sm:$0xf] %v409
                  %v411 = vld [vmem:[%s403 + $0x14] sm:$0xf]
                  %412 = vst [vmem:[%s404 + $0xc] sm:$0xf] %v411
                  %v413 = vld [vmem:[%s403 + $0x20] sm:$0xf]
                  %414 = vst [vmem:[%s404 + $0x10] sm:$0xf] %v413
                  %v415 = vld [vmem:[%s403 + $0x24] sm:$0xf]
                  %416 = vst [vmem:[%s404 + $0x14] sm:$0xf] %v415
                  %v417 = vld [vmem:[%s403 + $0x30] sm:$0xf]
                  %418 = vst [vmem:[%s404 + $0x18] sm:$0xf] %v417
                  %v419 = vld [vmem:[%s403 + $0x34] sm:$0xf]
                  %420 = vst [vmem:[%s404 + $0x1c] sm:$0xf] %v419
                $region100: #{mla_forward.3} parent=87 // loop_footer
                  %s402 = sadd.s32 1, %s398
                $region101: #{mla_forward.3} parent=87 // loop_footer_branch
                  %397 = sbr.rel target = $region97
                $region102: #{mla_forward.3} parent=87 // loop_exit
                  _
              $region88: #{mla_forward.3} parent=72 // pred_fallthru
                _
            $region73: #{mla_forward.3} parent=68 // pred_fallthru
              _
            // Predicated region
            $region74: #{mla_forward.3} parent=68 // pred_check
              _
            $region75: #{mla_forward.3} parent=68 // pred_check_branch
              %360 = sbr.rel (0) target = $region77
            $region76: #{mla_forward.3} parent=68 // pred_region
              loop: start=0, step=1, limit=1
              $region78: #{mla_forward.3} parent=76 // loop_pre_header
                _
              $region79: #{mla_forward.3} parent=76 // loop_header
                %s363 = sphi 0, %s367
                %p364 = scmp.ge.s32.totalorder %s363, 1
                %s368 = sphi %s354, %s354
                %s369 = sphi %s351, %s351
              $region80: #{mla_forward.3} parent=76 // loop_header_branch
                %366 = sbr.rel (%p364) target = $region84
              $region81: #{mla_forward.3} parent=76 // loop_body
                %v370 = vld [vmem:[%s368] sm:$0xf]
                %371 = vst [vmem:[%s369] sm:$0xf] %v370
                %v372 = vld [vmem:[%s368 + $0x4] sm:$0xf]
                %373 = vst [vmem:[%s369 + $0x4] sm:$0xf] %v372
                %v374 = vld [vmem:[%s368 + $0x10] sm:$0xf]
                %375 = vst [vmem:[%s369 + $0x8] sm:$0xf] %v374
                %v376 = vld [vmem:[%s368 + $0x14] sm:$0xf]
                %377 = vst [vmem:[%s369 + $0xc] sm:$0xf] %v376
                %v378 = vld [vmem:[%s368 + $0x20] sm:$0xf]
                %379 = vst [vmem:[%s369 + $0x10] sm:$0xf] %v378
                %v380 = vld [vmem:[%s368 + $0x24] sm:$0xf]
                %381 = vst [vmem:[%s369 + $0x14] sm:$0xf] %v380
                %v382 = vld [vmem:[%s368 + $0x30] sm:$0xf]
                %383 = vst [vmem:[%s369 + $0x18] sm:$0xf] %v382
                %v384 = vld [vmem:[%s368 + $0x34] sm:$0xf]
                %385 = vst [vmem:[%s369 + $0x1c] sm:$0xf] %v384
              $region82: #{mla_forward.3} parent=76 // loop_footer
                %s367 = sadd.s32 1, %s363
              $region83: #{mla_forward.3} parent=76 // loop_footer_branch
                %362 = sbr.rel target = $region79
              $region84: #{mla_forward.3} parent=76 // loop_exit
                _
            $region77: #{mla_forward.3} parent=68 // pred_fallthru
              _
          $region69: #{mla_forward.3} parent=64 // pred_fallthru
            _
          %421 = vnop
        $region65: #{mla_forward.3} parent=19 // pred_fallthru
          _
        // Predicated region
        $region103: #{mla_forward.3} parent=19 // pred_check
          %p422 = pneg %p89
        $region104: #{mla_forward.3} parent=19 // pred_check_branch
          %424 = sbr.rel (%p422) target = $region106
        $region105: #{mla_forward.3} parent=19 // pred_region
          %s425 = sand.u32 %s79, 1
          %s426 = sand.u32 %s79, 1
          %s427 = smul.addr %s426, 32
          %s428 = scalar_lea.vmem [#allocation4], %s427
          %s429 = smul.u32 2, %s17
          %s430 = smul.addr %s429, 4
          %s431 = scalar_lea.vmem %s2, %s430
          // Predicated region
          $region107: #{mla_forward.3} parent=105 // pred_check
            _
          $region108: #{mla_forward.3} parent=105 // pred_check_branch
            %433 = sbr.rel (0) target = $region110
          $region109: #{mla_forward.3} parent=105 // pred_region
            // Predicated region
            $region111: #{mla_forward.3} parent=109 // pred_check
              _
            $region112: #{mla_forward.3} parent=109 // pred_check_branch
              %435 = sbr.rel target = $region114
            $region113: #{mla_forward.3} parent=109 // pred_region
              // Predicated region
              $region126: #{mla_forward.3} parent=113 // pred_check
                _
              $region127: #{mla_forward.3} parent=113 // pred_check_branch
                %464 = sbr.rel (0) target = $region129
              $region128: #{mla_forward.3} parent=113 // pred_region
                loop: start=0, step=1, limit=1
                $region130: #{mla_forward.3} parent=128 // loop_pre_header
                  _
                $region131: #{mla_forward.3} parent=128 // loop_header
                  %s466 = sphi 0, %s470
                  %p467 = scmp.ge.s32.totalorder %s466, 1
                  %s471 = sphi %s431, %s431
                  %s472 = sphi %s428, %s428
                $region132: #{mla_forward.3} parent=128 // loop_header_branch
                  %469 = sbr.rel (%p467) target = $region136
                $region133: #{mla_forward.3} parent=128 // loop_body
                  _
                $region134: #{mla_forward.3} parent=128 // loop_footer
                  %s470 = sadd.s32 1, %s466
                $region135: #{mla_forward.3} parent=128 // loop_footer_branch
                  %465 = sbr.rel target = $region131
                $region136: #{mla_forward.3} parent=128 // loop_exit
                  _
                loop: start=0, step=1, limit=1
                $region137: #{mla_forward.3} parent=128 // loop_pre_header
                  _
                $region138: #{mla_forward.3} parent=128 // loop_header
                  %s475 = sphi 0, %s479
                  %p476 = scmp.ge.s32.totalorder %s475, 1
                  %s480 = sphi %s431, %s431
                  %s481 = sphi %s428, %s428
                $region139: #{mla_forward.3} parent=128 // loop_header_branch
                  %478 = sbr.rel (%p476) target = $region143
                $region140: #{mla_forward.3} parent=128 // loop_body
                  %v482 = vld [vmem:[%s480] sm:$0xf]
                  %483 = vst [vmem:[%s481] sm:$0xf] %v482
                  %v484 = vld [vmem:[%s480 + $0x4] sm:$0xf]
                  %485 = vst [vmem:[%s481 + $0x4] sm:$0xf] %v484
                  %v486 = vld [vmem:[%s480 + $0x10] sm:$0xf]
                  %487 = vst [vmem:[%s481 + $0x8] sm:$0xf] %v486
                  %v488 = vld [vmem:[%s480 + $0x14] sm:$0xf]
                  %489 = vst [vmem:[%s481 + $0xc] sm:$0xf] %v488
                  %v490 = vld [vmem:[%s480 + $0x20] sm:$0xf]
                  %491 = vst [vmem:[%s481 + $0x10] sm:$0xf] %v490
                  %v492 = vld [vmem:[%s480 + $0x24] sm:$0xf]
                  %493 = vst [vmem:[%s481 + $0x14] sm:$0xf] %v492
                  %v494 = vld [vmem:[%s480 + $0x30] sm:$0xf]
                  %495 = vst [vmem:[%s481 + $0x18] sm:$0xf] %v494
                  %v496 = vld [vmem:[%s480 + $0x34] sm:$0xf]
                  %497 = vst [vmem:[%s481 + $0x1c] sm:$0xf] %v496
                $region141: #{mla_forward.3} parent=128 // loop_footer
                  %s479 = sadd.s32 1, %s475
                $region142: #{mla_forward.3} parent=128 // loop_footer_branch
                  %474 = sbr.rel target = $region138
                $region143: #{mla_forward.3} parent=128 // loop_exit
                  _
              $region129: #{mla_forward.3} parent=113 // pred_fallthru
                _
            $region114: #{mla_forward.3} parent=109 // pred_fallthru
              _
            // Predicated region
            $region115: #{mla_forward.3} parent=109 // pred_check
              _
            $region116: #{mla_forward.3} parent=109 // pred_check_branch
              %437 = sbr.rel (0) target = $region118
            $region117: #{mla_forward.3} parent=109 // pred_region
              loop: start=0, step=1, limit=1
              $region119: #{mla_forward.3} parent=117 // loop_pre_header
                _
              $region120: #{mla_forward.3} parent=117 // loop_header
                %s440 = sphi 0, %s444
                %p441 = scmp.ge.s32.totalorder %s440, 1
                %s445 = sphi %s431, %s431
                %s446 = sphi %s428, %s428
              $region121: #{mla_forward.3} parent=117 // loop_header_branch
                %443 = sbr.rel (%p441) target = $region125
              $region122: #{mla_forward.3} parent=117 // loop_body
                %v447 = vld [vmem:[%s445] sm:$0xf]
                %448 = vst [vmem:[%s446] sm:$0xf] %v447
                %v449 = vld [vmem:[%s445 + $0x4] sm:$0xf]
                %450 = vst [vmem:[%s446 + $0x4] sm:$0xf] %v449
                %v451 = vld [vmem:[%s445 + $0x10] sm:$0xf]
                %452 = vst [vmem:[%s446 + $0x8] sm:$0xf] %v451
                %v453 = vld [vmem:[%s445 + $0x14] sm:$0xf]
                %454 = vst [vmem:[%s446 + $0xc] sm:$0xf] %v453
                %v455 = vld [vmem:[%s445 + $0x20] sm:$0xf]
                %456 = vst [vmem:[%s446 + $0x10] sm:$0xf] %v455
                %v457 = vld [vmem:[%s445 + $0x24] sm:$0xf]
                %458 = vst [vmem:[%s446 + $0x14] sm:$0xf] %v457
                %v459 = vld [vmem:[%s445 + $0x30] sm:$0xf]
                %460 = vst [vmem:[%s446 + $0x18] sm:$0xf] %v459
                %v461 = vld [vmem:[%s445 + $0x34] sm:$0xf]
                %462 = vst [vmem:[%s446 + $0x1c] sm:$0xf] %v461
              $region123: #{mla_forward.3} parent=117 // loop_footer
                %s444 = sadd.s32 1, %s440
              $region124: #{mla_forward.3} parent=117 // loop_footer_branch
                %439 = sbr.rel target = $region120
              $region125: #{mla_forward.3} parent=117 // loop_exit
                _
            $region118: #{mla_forward.3} parent=109 // pred_fallthru
              _
          $region110: #{mla_forward.3} parent=105 // pred_fallthru
            _
          %498 = vnop
        $region106: #{mla_forward.3} parent=19 // pred_fallthru
          _
        // Predicated region
        $region144: #{mla_forward.3} parent=19 // pred_check
          %p499 = pneg %p115
        $region145: #{mla_forward.3} parent=19 // pred_check_branch
          %501 = sbr.rel (%p499) target = $region147
        $region146: #{mla_forward.3} parent=19 // pred_region
          %s502 = sand.u32 %s105, 1
          %s503 = sand.u32 %s105, 1
          %s504 = smul.addr %s503, 32
          %s505 = scalar_lea.vmem [#allocation5], %s504
          %s506 = smul.u32 2, %s17
          %s507 = smul.addr %s506, 4
          %s508 = scalar_lea.vmem %s3, %s507
          // Predicated region
          $region148: #{mla_forward.3} parent=146 // pred_check
            _
          $region149: #{mla_forward.3} parent=146 // pred_check_branch
            %510 = sbr.rel (0) target = $region151
          $region150: #{mla_forward.3} parent=146 // pred_region
            // Predicated region
            $region152: #{mla_forward.3} parent=150 // pred_check
              _
            $region153: #{mla_forward.3} parent=150 // pred_check_branch
              %512 = sbr.rel target = $region155
            $region154: #{mla_forward.3} parent=150 // pred_region
              // Predicated region
              $region167: #{mla_forward.3} parent=154 // pred_check
                _
              $region168: #{mla_forward.3} parent=154 // pred_check_branch
                %541 = sbr.rel (0) target = $region170
              $region169: #{mla_forward.3} parent=154 // pred_region
                loop: start=0, step=1, limit=1
                $region171: #{mla_forward.3} parent=169 // loop_pre_header
                  _
                $region172: #{mla_forward.3} parent=169 // loop_header
                  %s543 = sphi 0, %s547
                  %p544 = scmp.ge.s32.totalorder %s543, 1
                  %s548 = sphi %s508, %s508
                  %s549 = sphi %s505, %s505
                $region173: #{mla_forward.3} parent=169 // loop_header_branch
                  %546 = sbr.rel (%p544) target = $region177
                $region174: #{mla_forward.3} parent=169 // loop_body
                  _
                $region175: #{mla_forward.3} parent=169 // loop_footer
                  %s547 = sadd.s32 1, %s543
                $region176: #{mla_forward.3} parent=169 // loop_footer_branch
                  %542 = sbr.rel target = $region172
                $region177: #{mla_forward.3} parent=169 // loop_exit
                  _
                loop: start=0, step=1, limit=1
                $region178: #{mla_forward.3} parent=169 // loop_pre_header
                  _
                $region179: #{mla_forward.3} parent=169 // loop_header
                  %s552 = sphi 0, %s556
                  %p553 = scmp.ge.s32.totalorder %s552, 1
                  %s557 = sphi %s508, %s508
                  %s558 = sphi %s505, %s505
                $region180: #{mla_forward.3} parent=169 // loop_header_branch
                  %555 = sbr.rel (%p553) target = $region184
                $region181: #{mla_forward.3} parent=169 // loop_body
                  %v559 = vld [vmem:[%s557] sm:$0xf]
                  %560 = vst [vmem:[%s558] sm:$0xf] %v559
                  %v561 = vld [vmem:[%s557 + $0x4] sm:$0xf]
                  %562 = vst [vmem:[%s558 + $0x4] sm:$0xf] %v561
                  %v563 = vld [vmem:[%s557 + $0x10] sm:$0xf]
                  %564 = vst [vmem:[%s558 + $0x8] sm:$0xf] %v563
                  %v565 = vld [vmem:[%s557 + $0x14] sm:$0xf]
                  %566 = vst [vmem:[%s558 + $0xc] sm:$0xf] %v565
                  %v567 = vld [vmem:[%s557 + $0x20] sm:$0xf]
                  %568 = vst [vmem:[%s558 + $0x10] sm:$0xf] %v567
                  %v569 = vld [vmem:[%s557 + $0x24] sm:$0xf]
                  %570 = vst [vmem:[%s558 + $0x14] sm:$0xf] %v569
                  %v571 = vld [vmem:[%s557 + $0x30] sm:$0xf]
                  %572 = vst [vmem:[%s558 + $0x18] sm:$0xf] %v571
                  %v573 = vld [vmem:[%s557 + $0x34] sm:$0xf]
                  %574 = vst [vmem:[%s558 + $0x1c] sm:$0xf] %v573
                $region182: #{mla_forward.3} parent=169 // loop_footer
                  %s556 = sadd.s32 1, %s552
                $region183: #{mla_forward.3} parent=169 // loop_footer_branch
                  %551 = sbr.rel target = $region179
                $region184: #{mla_forward.3} parent=169 // loop_exit
                  _
              $region170: #{mla_forward.3} parent=154 // pred_fallthru
                _
            $region155: #{mla_forward.3} parent=150 // pred_fallthru
              _
            // Predicated region
            $region156: #{mla_forward.3} parent=150 // pred_check
              _
            $region157: #{mla_forward.3} parent=150 // pred_check_branch
              %514 = sbr.rel (0) target = $region159
            $region158: #{mla_forward.3} parent=150 // pred_region
              loop: start=0, step=1, limit=1
              $region160: #{mla_forward.3} parent=158 // loop_pre_header
                _
              $region161: #{mla_forward.3} parent=158 // loop_header
                %s517 = sphi 0, %s521
                %p518 = scmp.ge.s32.totalorder %s517, 1
                %s522 = sphi %s508, %s508
                %s523 = sphi %s505, %s505
              $region162: #{mla_forward.3} parent=158 // loop_header_branch
                %520 = sbr.rel (%p518) target = $region166
              $region163: #{mla_forward.3} parent=158 // loop_body
                %v524 = vld [vmem:[%s522] sm:$0xf]
                %525 = vst [vmem:[%s523] sm:$0xf] %v524
                %v526 = vld [vmem:[%s522 + $0x4] sm:$0xf]
                %527 = vst [vmem:[%s523 + $0x4] sm:$0xf] %v526
                %v528 = vld [vmem:[%s522 + $0x10] sm:$0xf]
                %529 = vst [vmem:[%s523 + $0x8] sm:$0xf] %v528
                %v530 = vld [vmem:[%s522 + $0x14] sm:$0xf]
                %531 = vst [vmem:[%s523 + $0xc] sm:$0xf] %v530
                %v532 = vld [vmem:[%s522 + $0x20] sm:$0xf]
                %533 = vst [vmem:[%s523 + $0x10] sm:$0xf] %v532
                %v534 = vld [vmem:[%s522 + $0x24] sm:$0xf]
                %535 = vst [vmem:[%s523 + $0x14] sm:$0xf] %v534
                %v536 = vld [vmem:[%s522 + $0x30] sm:$0xf]
                %537 = vst [vmem:[%s523 + $0x18] sm:$0xf] %v536
                %v538 = vld [vmem:[%s522 + $0x34] sm:$0xf]
                %539 = vst [vmem:[%s523 + $0x1c] sm:$0xf] %v538
              $region164: #{mla_forward.3} parent=158 // loop_footer
                %s521 = sadd.s32 1, %s517
              $region165: #{mla_forward.3} parent=158 // loop_footer_branch
                %516 = sbr.rel target = $region161
              $region166: #{mla_forward.3} parent=158 // loop_exit
                _
            $region159: #{mla_forward.3} parent=150 // pred_fallthru
              _
          $region151: #{mla_forward.3} parent=146 // pred_fallthru
            _
          %575 = vnop
        $region147: #{mla_forward.3} parent=19 // pred_fallthru
          _
        // Predicated region
        $region185: #{mla_forward.3} parent=19 // pred_check
          %p576 = pneg %p141
        $region186: #{mla_forward.3} parent=19 // pred_check_branch
          %578 = sbr.rel (%p576) target = $region188
        $region187: #{mla_forward.3} parent=19 // pred_region
          %s579 = smul.u32 2, %s17
          %p580 = scmp.lt.s32.totalorder %s579, 3
          %s581 = scalar_select %p580, %s579, 3
          %s582 = smul.addr %s581, 4
          %s583 = scalar_lea.vmem %s4, %s582
          %s584 = smul.u32 2, %s17
        $region188: #{mla_forward.3} parent=19 // pred_fallthru
          _
        // Predicated region
        $region189: #{mla_forward.3} parent=19 // pred_check
          %p585 = pneg %p167
        $region190: #{mla_forward.3} parent=19 // pred_check_branch
          %587 = sbr.rel (%p585) target = $region192
        $region191: #{mla_forward.3} parent=19 // pred_region
          %s588 = smul.u32 2, %s17
          %p589 = scmp.lt.s32.totalorder %s588, 3
          %s590 = scalar_select %p589, %s588, 3
          %s591 = smul.addr %s590, 4
          %s592 = scalar_lea.vmem %s5, %s591
          %s593 = smul.u32 2, %s17
        $region192: #{mla_forward.3} parent=19 // pred_fallthru
          _
        // Predicated region
        $region193: #{mla_forward.3} parent=19 // pred_check
          %p594 = pneg %p193
        $region194: #{mla_forward.3} parent=19 // pred_check_branch
          %596 = sbr.rel (%p594) target = $region196
        $region195: #{mla_forward.3} parent=19 // pred_region
          %s597 = sand.u32 %s183, 1
          %s598 = sand.u32 %s183, 1
          %s599 = smul.addr %s598, 32
          %s600 = scalar_lea.vmem [#allocation6], %s599
          %s601 = smul.u32 2, %s17
          %s602 = smul.addr %s601, 4
          %s603 = scalar_lea.vmem %s6, %s602
          // Predicated region
          $region197: #{mla_forward.3} parent=195 // pred_check
            _
          $region198: #{mla_forward.3} parent=195 // pred_check_branch
            %605 = sbr.rel (0) target = $region200
          $region199: #{mla_forward.3} parent=195 // pred_region
            // Predicated region
            $region201: #{mla_forward.3} parent=199 // pred_check
              _
            $region202: #{mla_forward.3} parent=199 // pred_check_branch
              %607 = sbr.rel target = $region204
            $region203: #{mla_forward.3} parent=199 // pred_region
              // Predicated region
              $region216: #{mla_forward.3} parent=203 // pred_check
                _
              $region217: #{mla_forward.3} parent=203 // pred_check_branch
                %636 = sbr.rel (0) target = $region219
              $region218: #{mla_forward.3} parent=203 // pred_region
                loop: start=0, step=1, limit=1
                $region220: #{mla_forward.3} parent=218 // loop_pre_header
                  _
                $region221: #{mla_forward.3} parent=218 // loop_header
                  %s638 = sphi 0, %s642
                  %p639 = scmp.ge.s32.totalorder %s638, 1
                  %s643 = sphi %s603, %s603
                  %s644 = sphi %s600, %s600
                $region222: #{mla_forward.3} parent=218 // loop_header_branch
                  %641 = sbr.rel (%p639) target = $region226
                $region223: #{mla_forward.3} parent=218 // loop_body
                  _
                $region224: #{mla_forward.3} parent=218 // loop_footer
                  %s642 = sadd.s32 1, %s638
                $region225: #{mla_forward.3} parent=218 // loop_footer_branch
                  %637 = sbr.rel target = $region221
                $region226: #{mla_forward.3} parent=218 // loop_exit
                  _
                loop: start=0, step=1, limit=1
                $region227: #{mla_forward.3} parent=218 // loop_pre_header
                  _
                $region228: #{mla_forward.3} parent=218 // loop_header
                  %s647 = sphi 0, %s651
                  %p648 = scmp.ge.s32.totalorder %s647, 1
                  %s652 = sphi %s603, %s603
                  %s653 = sphi %s600, %s600
                $region229: #{mla_forward.3} parent=218 // loop_header_branch
                  %650 = sbr.rel (%p648) target = $region233
                $region230: #{mla_forward.3} parent=218 // loop_body
                  %v654 = vld [vmem:[%s652] sm:$0xf]
                  %655 = vst [vmem:[%s653] sm:$0xf] %v654
                  %v656 = vld [vmem:[%s652 + $0x4] sm:$0xf]
                  %657 = vst [vmem:[%s653 + $0x4] sm:$0xf] %v656
                  %v658 = vld [vmem:[%s652 + $0x10] sm:$0xf]
                  %659 = vst [vmem:[%s653 + $0x8] sm:$0xf] %v658
                  %v660 = vld [vmem:[%s652 + $0x14] sm:$0xf]
                  %661 = vst [vmem:[%s653 + $0xc] sm:$0xf] %v660
                  %v662 = vld [vmem:[%s652 + $0x20] sm:$0xf]
                  %663 = vst [vmem:[%s653 + $0x10] sm:$0xf] %v662
                  %v664 = vld [vmem:[%s652 + $0x24] sm:$0xf]
                  %665 = vst [vmem:[%s653 + $0x14] sm:$0xf] %v664
                  %v666 = vld [vmem:[%s652 + $0x30] sm:$0xf]
                  %667 = vst [vmem:[%s653 + $0x18] sm:$0xf] %v666
                  %v668 = vld [vmem:[%s652 + $0x34] sm:$0xf]
                  %669 = vst [vmem:[%s653 + $0x1c] sm:$0xf] %v668
                $region231: #{mla_forward.3} parent=218 // loop_footer
                  %s651 = sadd.s32 1, %s647
                $region232: #{mla_forward.3} parent=218 // loop_footer_branch
                  %646 = sbr.rel target = $region228
                $region233: #{mla_forward.3} parent=218 // loop_exit
                  _
              $region219: #{mla_forward.3} parent=203 // pred_fallthru
                _
            $region204: #{mla_forward.3} parent=199 // pred_fallthru
              _
            // Predicated region
            $region205: #{mla_forward.3} parent=199 // pred_check
              _
            $region206: #{mla_forward.3} parent=199 // pred_check_branch
              %609 = sbr.rel (0) target = $region208
            $region207: #{mla_forward.3} parent=199 // pred_region
              loop: start=0, step=1, limit=1
              $region209: #{mla_forward.3} parent=207 // loop_pre_header
                _
              $region210: #{mla_forward.3} parent=207 // loop_header
                %s612 = sphi 0, %s616
                %p613 = scmp.ge.s32.totalorder %s612, 1
                %s617 = sphi %s603, %s603
                %s618 = sphi %s600, %s600
              $region211: #{mla_forward.3} parent=207 // loop_header_branch
                %615 = sbr.rel (%p613) target = $region215
              $region212: #{mla_forward.3} parent=207 // loop_body
                %v619 = vld [vmem:[%s617] sm:$0xf]
                %620 = vst [vmem:[%s618] sm:$0xf] %v619
                %v621 = vld [vmem:[%s617 + $0x4] sm:$0xf]
                %622 = vst [vmem:[%s618 + $0x4] sm:$0xf] %v621
                %v623 = vld [vmem:[%s617 + $0x10] sm:$0xf]
                %624 = vst [vmem:[%s618 + $0x8] sm:$0xf] %v623
                %v625 = vld [vmem:[%s617 + $0x14] sm:$0xf]
                %626 = vst [vmem:[%s618 + $0xc] sm:$0xf] %v625
                %v627 = vld [vmem:[%s617 + $0x20] sm:$0xf]
                %628 = vst [vmem:[%s618 + $0x10] sm:$0xf] %v627
                %v629 = vld [vmem:[%s617 + $0x24] sm:$0xf]
                %630 = vst [vmem:[%s618 + $0x14] sm:$0xf] %v629
                %v631 = vld [vmem:[%s617 + $0x30] sm:$0xf]
                %632 = vst [vmem:[%s618 + $0x18] sm:$0xf] %v631
                %v633 = vld [vmem:[%s617 + $0x34] sm:$0xf]
                %634 = vst [vmem:[%s618 + $0x1c] sm:$0xf] %v633
              $region213: #{mla_forward.3} parent=207 // loop_footer
                %s616 = sadd.s32 1, %s612
              $region214: #{mla_forward.3} parent=207 // loop_footer_branch
                %611 = sbr.rel target = $region210
              $region215: #{mla_forward.3} parent=207 // loop_exit
                _
            $region208: #{mla_forward.3} parent=199 // pred_fallthru
              _
          $region200: #{mla_forward.3} parent=195 // pred_fallthru
            _
          %670 = vnop
        $region196: #{mla_forward.3} parent=19 // pred_fallthru
          _
      $region20: #{mla_forward.3} parent=5 // pred_fallthru
        _
      %p671 = scmp.le.s32.totalorder 1, %s17
      %p672 = scmp.lt.s32.totalorder %s17, 3
      %p673 = pnand %p671, %p672
      %p674 = pneg %p673
      // Predicated region
      $region234: #{mla_forward.3} parent=5 // pred_check
        _
      $region235: #{mla_forward.3} parent=5 // pred_check_branch
        %676 = sbr.rel (%p673) target = $region237
      $region236: #{mla_forward.3} parent=5 // pred_region
        %s677 = ssub.s32 %s17, 1
        %s678 = sand.u32 %s30, 1
        %s679 = sand.u32 %s30, 1
        %s680 = smul.addr %s679, 32
        %s681 = scalar_lea.vmem [#allocation2], %s680
        // Predicated region
        $region238: #{mla_forward.3} parent=236 // pred_check
          %p682 = pneg %p43
        $region239: #{mla_forward.3} parent=236 // pred_check_branch
          %684 = sbr.rel (%p682) target = $region241
        $region240: #{mla_forward.3} parent=236 // pred_region
          _
        $region241: #{mla_forward.3} parent=236 // pred_fallthru
          _
        %s685 = sand.u32 %s56, 1
        %s686 = sand.u32 %s56, 1
        %s687 = smul.addr %s686, 32
        %s688 = scalar_lea.vmem [#allocation3], %s687
        // Predicated region
        $region242: #{mla_forward.3} parent=236 // pred_check
          %p689 = pneg %p69
        $region243: #{mla_forward.3} parent=236 // pred_check_branch
          %691 = sbr.rel (%p689) target = $region245
        $region244: #{mla_forward.3} parent=236 // pred_region
          _
        $region245: #{mla_forward.3} parent=236 // pred_fallthru
          _
        %s692 = sand.u32 %s82, 1
        %s693 = sand.u32 %s82, 1
        %s694 = smul.addr %s693, 32
        %s695 = scalar_lea.vmem [#allocation4], %s694
        // Predicated region
        $region246: #{mla_forward.3} parent=236 // pred_check
          %p696 = pneg %p95
        $region247: #{mla_forward.3} parent=236 // pred_check_branch
          %698 = sbr.rel (%p696) target = $region249
        $region248: #{mla_forward.3} parent=236 // pred_region
          _
        $region249: #{mla_forward.3} parent=236 // pred_fallthru
          _
        %s699 = sand.u32 %s108, 1
        %s700 = sand.u32 %s108, 1
        %s701 = smul.addr %s700, 32
        %s702 = scalar_lea.vmem [#allocation5], %s701
        // Predicated region
        $region250: #{mla_forward.3} parent=236 // pred_check
          %p703 = pneg %p121
        $region251: #{mla_forward.3} parent=236 // pred_check_branch
          %705 = sbr.rel (%p703) target = $region253
        $region252: #{mla_forward.3} parent=236 // pred_region
          _
        $region253: #{mla_forward.3} parent=236 // pred_fallthru
          _
        %s706 = sand.u32 %s186, 1
        %s707 = sand.u32 %s186, 1
        %s708 = smul.addr %s707, 32
        %s709 = scalar_lea.vmem [#allocation6], %s708
        // Predicated region
        $region254: #{mla_forward.3} parent=236 // pred_check
          %p710 = pneg %p199
        $region255: #{mla_forward.3} parent=236 // pred_check_branch
          %712 = sbr.rel (%p710) target = $region257
        $region256: #{mla_forward.3} parent=236 // pred_region
          _
        $region257: #{mla_forward.3} parent=236 // pred_fallthru
          _
        %s713 = sand.u32 %s30, 1
        %s714 = sand.u32 %s30, 1
        %s715 = smul.addr %s714, 32
        %s716 = scalar_lea.vmem [#allocation2], %s715
        %p717 = pneg %p43
        %p718 = pneg %p40
        %s719 = sand.u32 %s56, 1
        %s720 = sand.u32 %s56, 1
        %s721 = smul.addr %s720, 32
        %s722 = scalar_lea.vmem [#allocation3], %s721
        %p723 = pneg %p69
        %p724 = pneg %p66
        %s725 = sand.u32 %s82, 1
        %s726 = sand.u32 %s82, 1
        %s727 = smul.addr %s726, 32
        %s728 = scalar_lea.vmem [#allocation4], %s727
        %p729 = pneg %p95
        %p730 = pneg %p92
        %s731 = sand.u32 %s108, 1
        %s732 = sand.u32 %s108, 1
        %s733 = smul.addr %s732, 32
        %s734 = scalar_lea.vmem [#allocation5], %s733
        %p735 = pneg %p121
        %p736 = pneg %p118
        %s737 = smul.u32 2, %s22
        %p738 = scmp.lt.s32.totalorder %s737, 3
        %s739 = scalar_select %p738, %s737, 3
        %s740 = smul.addr %s739, 4
        %s741 = scalar_lea.vmem %s4, %s740
        %p742 = pneg %p147
        %p743 = pneg %p144
        %s744 = smul.u32 2, %s22
        %p745 = scmp.lt.s32.totalorder %s744, 3
        %s746 = scalar_select %p745, %s744, 3
        %s747 = smul.addr %s746, 4
        %s748 = scalar_lea.vmem %s5, %s747
        %p749 = pneg %p173
        %p750 = pneg %p170
        %s751 = sand.u32 %s186, 1
        %s752 = sand.u32 %s186, 1
        %s753 = smul.addr %s752, 32
        %s754 = scalar_lea.vmem [#allocation6], %s753
        %p755 = pneg %p199
        %p756 = pneg %p196
        %p757 = pneg %p220
        %p758 = pneg %p217
        %p759 = pneg %p246
        %p760 = pneg %p243
        %s761 = sand.u32 %s233, 1
        %s762 = scalar_lea.sflag [#allocation8], %s761
        %s763 = sand.u32 %s233, 1
        %s764 = smul.addr %s763, 16
        %s765 = scalar_lea.vmem [#allocation7], %s764
        %s766 = smul.u32 2, %s22
        %s767 = smul.u32 2, %s22
        %s768 = smul.u32 2, %s22
        %s769 = smul.u32 2, %s22
        %s770 = smul.u32 2, %s22
        %p771 = scmp.lt.s32.totalorder %s770, 3
        %s772 = scalar_select %p771, %s770, 3
        %s773 = smul.addr %s772, 4
        %s774 = scalar_lea.vmem %s4, %s773
        %s775 = smul.u32 2, %s22
        %s776 = smul.u32 2, %s22
        %p777 = scmp.lt.s32.totalorder %s776, 3
        %s778 = scalar_select %p777, %s776, 3
        %s779 = smul.addr %s778, 4
        %s780 = scalar_lea.vmem %s5, %s779
        %s781 = smul.u32 2, %s22
        %s782 = smul.u32 2, %s22
        %v784 = vld [vmem:[%s681] sm:$0xf]
        %v785 = vld [vmem:[%s681 + $0x4] sm:$0xf]
        %v786 = vld [vmem:[%s681 + $0x8] sm:$0xf]
        %v787 = vld [vmem:[%s681 + $0xc] sm:$0xf]
        %v788 = vld [vmem:[%s681 + $0x10] sm:$0xf]
        %v789 = vld [vmem:[%s681 + $0x14] sm:$0xf]
        %v790 = vld [vmem:[%s681 + $0x18] sm:$0xf]
        %v791 = vld [vmem:[%s681 + $0x1c] sm:$0xf]
        %v792 = vld [vmem:[%s702] sm:$0xf]
        %v793 = vld [vmem:[%s702 + $0x4] sm:$0xf]
        %v794 = vld [vmem:[%s702 + $0x8] sm:$0xf]
        %v795 = vld [vmem:[%s702 + $0xc] sm:$0xf]
        %v796 = vld [vmem:[%s702 + $0x10] sm:$0xf]
        %v797 = vld [vmem:[%s702 + $0x14] sm:$0xf]
        %v798 = vld [vmem:[%s702 + $0x18] sm:$0xf]
        %v799 = vld [vmem:[%s702 + $0x1c] sm:$0xf]
        %v800 = vld [vmem:[%s774] sm:$0xf]
        %v801 = vld [vmem:[%s774 + $0x4] sm:$0xf]
        %v802 = vld [vmem:[%s780] sm:$0xf]
        %v803 = vld [vmem:[%s780 + $0x4] sm:$0xf]
        %v804 = vld [vmem:[%s688] sm:$0xf]
        %v805 = vld [vmem:[%s688 + $0x4] sm:$0xf]
        %v806 = vld [vmem:[%s688 + $0x8] sm:$0xf]
        %v807 = vld [vmem:[%s688 + $0xc] sm:$0xf]
        %v808 = vld [vmem:[%s688 + $0x10] sm:$0xf]
        %v809 = vld [vmem:[%s688 + $0x14] sm:$0xf]
        %v810 = vld [vmem:[%s688 + $0x18] sm:$0xf]
        %v811 = vld [vmem:[%s688 + $0x1c] sm:$0xf]
        %v814 = vunpack.c.l.b16 %v804
        %v815 = vunpack.c.l.b16 %v805
        %v816 = vpack.c.b16 %v815, %v814
        %v819 = vunpack.c.l.b16 %v800
        %v820 = vunpack.c.l.b16 %v801
        %v821 = vpack.c.b16 %v820, %v819
        %vm822 = vcmask 31744
        %v824 = vsel %vm822, %v816, 0
        %v827 = vsel %vm822, %v821, 0
        %829 = vmatprep.subr.bf16.mxu0 0
        %830 = vmatpush1.bf16.xpose.msra.mxu0 %v827
        %831 = vmatprep.subr.bf16.mxu0 0
        %832 = vmatpush1.bf16.xpose.msra.mxu0 0
        %833 = vmatprep.subr.bf16.mxu0 0
        %834 = vmatpush1.bf16.xpose.msra.mxu0 0
        %835 = vmatprep.subr.bf16.mxu0 0
        %836 = vmatpush1.bf16.xpose.msra.mxu0 0
        %837 = vmatprep.subr.bf16.mxu0 0
        %838 = vmatpush1.bf16.xpose.msra.mxu0 0
        %839 = vmatprep.subr.bf16.mxu0 0
        %840 = vmatpush1.bf16.xpose.msra.mxu0 0
        %841 = vmatprep.subr.bf16.mxu0 0
        %842 = vmatpush1.bf16.xpose.msra.mxu0 0
        %843 = vmatprep.subr.bf16.mxu0 0
        %844 = vmatpush1.bf16.xpose.msra.mxu0 0
        %845 = vmatprep.subr.bf16.mxu0 0
        %846 = vmatpush1.bf16.xpose.msra.mxu0 0
        %847 = vmatprep.subr.bf16.mxu0 0
        %848 = vmatpush1.bf16.xpose.msra.mxu0 0
        %849 = vmatprep.subr.bf16.mxu0 0
        %850 = vmatpush1.bf16.xpose.msra.mxu0 0
        %851 = vmatprep.subr.bf16.mxu0 0
        %852 = vmatpush1.bf16.xpose.msra.mxu0 0
        %853 = vmatprep.subr.bf16.mxu0 0
        %854 = vmatpush1.bf16.xpose.msra.mxu0 0
        %855 = vmatprep.subr.bf16.mxu0 0
        %856 = vmatpush1.bf16.xpose.msra.mxu0 0
        %857 = vmatprep.subr.bf16.mxu0 0
        %858 = vmatpush1.bf16.xpose.msra.mxu0 0
        %859 = vmatprep.subr.bf16.mxu0 0
        %860 = vmatpush1.bf16.xpose.msra.mxu0 0
        %861 = vmatprep.mubr.bf16.mxu0 0
        %862 = vmatmul.mubr.bf16.gmra.mrb[0].mxu0 %v824
        %v863 = vpop.f32.mrb[0].mxu0
        %v864 = vadd.f32 0.0, %v863
        %v865 = vpop.f32.mrb[0].mxu0
        %v866 = vpop.f32.mrb[0].mxu0
        %v867 = vadd.f32 0.0, %v866
        %v868 = vpop.f32.mrb[0].mxu0
        %869 = vdwg.mxu0
        %v872 = vunpack.c.l.b16 %v806
        %v873 = vunpack.c.l.b16 %v807
        %v874 = vpack.c.b16 %v873, %v872
        %v876 = vsel %vm822, %v874, 0
        %878 = vmatprep.subr.bf16.mxu0 0
        %879 = vmatpush1.bf16.xpose.msra.mxu0 %v827
        %880 = vmatprep.subr.bf16.mxu0 0
        %881 = vmatpush1.bf16.xpose.msra.mxu0 0
        %882 = vmatprep.subr.bf16.mxu0 0
        %883 = vmatpush1.bf16.xpose.msra.mxu0 0
        %884 = vmatprep.subr.bf16.mxu0 0
        %885 = vmatpush1.bf16.xpose.msra.mxu0 0
        %886 = vmatprep.subr.bf16.mxu0 0
        %887 = vmatpush1.bf16.xpose.msra.mxu0 0
        %888 = vmatprep.subr.bf16.mxu0 0
        %889 = vmatpush1.bf16.xpose.msra.mxu0 0
        %890 = vmatprep.subr.bf16.mxu0 0
        %891 = vmatpush1.bf16.xpose.msra.mxu0 0
        %892 = vmatprep.subr.bf16.mxu0 0
        %893 = vmatpush1.bf16.xpose.msra.mxu0 0
        %894 = vmatprep.subr.bf16.mxu0 0
        %895 = vmatpush1.bf16.xpose.msra.mxu0 0
        %896 = vmatprep.subr.bf16.mxu0 0
        %897 = vmatpush1.bf16.xpose.msra.mxu0 0
        %898 = vmatprep.subr.bf16.mxu0 0
        %899 = vmatpush1.bf16.xpose.msra.mxu0 0
        %900 = vmatprep.subr.bf16.mxu0 0
        %901 = vmatpush1.bf16.xpose.msra.mxu0 0
        %902 = vmatprep.subr.bf16.mxu0 0
        %903 = vmatpush1.bf16.xpose.msra.mxu0 0
        %904 = vmatprep.subr.bf16.mxu0 0
        %905 = vmatpush1.bf16.xpose.msra.mxu0 0
        %906 = vmatprep.subr.bf16.mxu0 0
        %907 = vmatpush1.bf16.xpose.msra.mxu0 0
        %908 = vmatprep.subr.bf16.mxu0 0
        %909 = vmatpush1.bf16.xpose.msra.mxu0 0
        %910 = vmatprep.mubr.bf16.mxu0 0
        %911 = vmatmul.mubr.bf16.gmra.mrb[0].mxu0 %v876
        %v912 = vpop.f32.mrb[0].mxu0
        %v913 = vadd.f32 0.0, %v912
        %v914 = vpop.f32.mrb[0].mxu0
        %v915 = vpop.f32.mrb[0].mxu0
        %v916 = vadd.f32 0.0, %v915
        %v917 = vpop.f32.mrb[0].mxu0
        %918 = vdwg.mxu0
        %v921 = vunpack.c.l.b16 %v808
        %v922 = vunpack.c.l.b16 %v809
        %v923 = vpack.c.b16 %v922, %v921
        %v925 = vsel %vm822, %v923, 0
        %927 = vmatprep.subr.bf16.mxu0 0
        %928 = vmatpush1.bf16.xpose.msra.mxu0 %v827
        %929 = vmatprep.subr.bf16.mxu0 0
        %930 = vmatpush1.bf16.xpose.msra.mxu0 0
        %931 = vmatprep.subr.bf16.mxu0 0
        %932 = vmatpush1.bf16.xpose.msra.mxu0 0
        %933 = vmatprep.subr.bf16.mxu0 0
        %934 = vmatpush1.bf16.xpose.msra.mxu0 0
        %935 = vmatprep.subr.bf16.mxu0 0
        %936 = vmatpush1.bf16.xpose.msra.mxu0 0
        %937 = vmatprep.subr.bf16.mxu0 0
        %938 = vmatpush1.bf16.xpose.msra.mxu0 0
        %939 = vmatprep.subr.bf16.mxu0 0
        %940 = vmatpush1.bf16.xpose.msra.mxu0 0
        %941 = vmatprep.subr.bf16.mxu0 0
        %942 = vmatpush1.bf16.xpose.msra.mxu0 0
        %943 = vmatprep.subr.bf16.mxu0 0
        %944 = vmatpush1.bf16.xpose.msra.mxu0 0
        %945 = vmatprep.subr.bf16.mxu0 0
        %946 = vmatpush1.bf16.xpose.msra.mxu0 0
        %947 = vmatprep.subr.bf16.mxu0 0
        %948 = vmatpush1.bf16.xpose.msra.mxu0 0
        %949 = vmatprep.subr.bf16.mxu0 0
        %950 = vmatpush1.bf16.xpose.msra.mxu0 0
        %951 = vmatprep.subr.bf16.mxu0 0
        %952 = vmatpush1.bf16.xpose.msra.mxu0 0
        %953 = vmatprep.subr.bf16.mxu0 0
        %954 = vmatpush1.bf16.xpose.msra.mxu0 0
        %955 = vmatprep.subr.bf16.mxu0 0
        %956 = vmatpush1.bf16.xpose.msra.mxu0 0
        %957 = vmatprep.subr.bf16.mxu0 0
        %958 = vmatpush1.bf16.xpose.msra.mxu0 0
        %959 = vmatprep.mubr.bf16.mxu0 0
        %960 = vmatmul.mubr.bf16.gmra.mrb[0].mxu0 %v925
        %v961 = vpop.f32.mrb[0].mxu0
        %v962 = vadd.f32 0.0, %v961
        %v963 = vpop.f32.mrb[0].mxu0
        %v964 = vpop.f32.mrb[0].mxu0
        %v965 = vadd.f32 0.0, %v964
        %v966 = vpop.f32.mrb[0].mxu0
        %967 = vdwg.mxu0
        %v970 = vunpack.c.l.b16 %v810
        %v971 = vunpack.c.l.b16 %v811
        %v972 = vpack.c.b16 %v971, %v970
        %v974 = vsel %vm822, %v972, 0
        %976 = vmatprep.subr.bf16.mxu0 0
        %977 = vmatpush1.bf16.xpose.msra.mxu0 %v827
        %978 = vmatprep.subr.bf16.mxu0 0
        %979 = vmatpush1.bf16.xpose.msra.mxu0 0
        %980 = vmatprep.subr.bf16.mxu0 0
        %981 = vmatpush1.bf16.xpose.msra.mxu0 0
        %982 = vmatprep.subr.bf16.mxu0 0
        %983 = vmatpush1.bf16.xpose.msra.mxu0 0
        %984 = vmatprep.subr.bf16.mxu0 0
        %985 = vmatpush1.bf16.xpose.msra.mxu0 0
        %986 = vmatprep.subr.bf16.mxu0 0
        %987 = vmatpush1.bf16.xpose.msra.mxu0 0
        %988 = vmatprep.subr.bf16.mxu0 0
        %989 = vmatpush1.bf16.xpose.msra.mxu0 0
        %990 = vmatprep.subr.bf16.mxu0 0
        %991 = vmatpush1.bf16.xpose.msra.mxu0 0
        %992 = vmatprep.subr.bf16.mxu0 0
        %993 = vmatpush1.bf16.xpose.msra.mxu0 0
        %994 = vmatprep.subr.bf16.mxu0 0
        %995 = vmatpush1.bf16.xpose.msra.mxu0 0
        %996 = vmatprep.subr.bf16.mxu0 0
        %997 = vmatpush1.bf16.xpose.msra.mxu0 0
        %998 = vmatprep.subr.bf16.mxu0 0
        %999 = vmatpush1.bf16.xpose.msra.mxu0 0
        %1000 = vmatprep.subr.bf16.mxu0 0
        %1001 = vmatpush1.bf16.xpose.msra.mxu0 0
        %1002 = vmatprep.subr.bf16.mxu0 0
        %1003 = vmatpush1.bf16.xpose.msra.mxu0 0
        %1004 = vmatprep.subr.bf16.mxu0 0
        %1005 = vmatpush1.bf16.xpose.msra.mxu0 0
        %1006 = vmatprep.subr.bf16.mxu0 0
        %1007 = vmatpush1.bf16.xpose.msra.mxu0 0
        %1008 = vmatprep.mubr.bf16.mxu0 0
        %1009 = vmatmul.mubr.bf16.gmra.mrb[0].mxu0 %v974
        %v1010 = vpop.f32.mrb[0].mxu0
        %v1011 = vadd.f32 0.0, %v1010
        %v1012 = vpop.f32.mrb[0].mxu0
        %v1013 = vpop.f32.mrb[0].mxu0
        %v1014 = vadd.f32 0.0, %v1013
        %v1015 = vpop.f32.mrb[0].mxu0
        %1016 = vdwg.mxu0
        %v1019 = vunpack.c.l.b16 %v784
        %v1020 = vunpack.c.l.b16 %v785
        %v1021 = vpack.c.b16 %v1020, %v1019
        %v1024 = vunpack.c.l.b16 %v792
        %v1025 = vunpack.c.l.b16 %v793
        %v1026 = vpack.c.b16 %v1025, %v1024
        %vm1027 = vcmask 130048
        %v1029 = vsel %vm1027, %v1021, 0
        %v1032 = vsel %vm1027, %v1026, 0
        %1034 = vmatprep.subr.bf16.mxu0 0
        %1035 = vmatpush1.bf16.xpose.msra.mxu0 %v1032
        %1036 = vmatprep.subr.bf16.mxu0 0
        %1037 = vmatpush1.bf16.xpose.msra.mxu0 0
        %1038 = vmatprep.subr.bf16.mxu0 0
        %1039 = vmatpush1.bf16.xpose.msra.mxu0 0
        %1040 = vmatprep.subr.bf16.mxu0 0
        %1041 = vmatpush1.bf16.xpose.msra.mxu0 0
        %1042 = vmatprep.subr.bf16.mxu0 0
        %1043 = vmatpush1.bf16.xpose.msra.mxu0 0
        %1044 = vmatprep.subr.bf16.mxu0 0
        %1045 = vmatpush1.bf16.xpose.msra.mxu0 0
        %1046 = vmatprep.subr.bf16.mxu0 0
        %1047 = vmatpush1.bf16.xpose.msra.mxu0 0
        %1048 = vmatprep.subr.bf16.mxu0 0
        %1049 = vmatpush1.bf16.xpose.msra.mxu0 0
        %1050 = vmatprep.subr.bf16.mxu0 0
        %1051 = vmatpush1.bf16.xpose.msra.mxu0 0
        %1052 = vmatprep.subr.bf16.mxu0 0
        %1053 = vmatpush1.bf16.xpose.msra.mxu0 0
        %1054 = vmatprep.subr.bf16.mxu0 0
        %1055 = vmatpush1.bf16.xpose.msra.mxu0 0
        %1056 = vmatprep.subr.bf16.mxu0 0
        %1057 = vmatpush1.bf16.xpose.msra.mxu0 0
        %1058 = vmatprep.subr.bf16.mxu0 0
        %1059 = vmatpush1.bf16.xpose.msra.mxu0 0
        %1060 = vmatprep.subr.bf16.mxu0 0
        %1061 = vmatpush1.bf16.xpose.msra.mxu0 0
        %1062 = vmatprep.subr.bf16.mxu0 0
        %1063 = vmatpush1.bf16.xpose.msra.mxu0 0
        %1064 = vmatprep.subr.bf16.mxu0 0
        %1065 = vmatpush1.bf16.xpose.msra.mxu0 0
        %1066 = vmatprep.mubr.bf16.mxu0 0
        %1067 = vmatmul.mubr.bf16.gmra.mrb[0].mxu0 %v1029
        %v1068 = vpop.f32.mrb[0].mxu0
        %v1069 = vadd.f32 %v864, %v1068
        %v1070 = vpop.f32.mrb[0].mxu0
        %v1071 = vpop.f32.mrb[0].mxu0
        %v1072 = vadd.f32 %v867, %v1071
        %v1073 = vpop.f32.mrb[0].mxu0
        %1074 = vdwg.mxu0
        %v1077 = vunpack.c.l.b16 %v786
        %v1078 = vunpack.c.l.b16 %v787
        %v1079 = vpack.c.b16 %v1078, %v1077
        %v1082 = vunpack.c.l.b16 %v794
        %v1083 = vunpack.c.l.b16 %v795
        %v1084 = vpack.c.b16 %v1083, %v1082
        %v1086 = vsel %vm1027, %v1079, 0
        %v1089 = vsel %vm1027, %v1084, 0
        %1091 = vmatprep.subr.bf16.mxu0 0
        %1092 = vmatpush1.bf16.xpose.msra.mxu0 %v1089
        %1093 = vmatprep.subr.bf16.mxu0 0
        %1094 = vmatpush1.bf16.xpose.msra.mxu0 0
        %1095 = vmatprep.subr.bf16.mxu0 0
        %1096 = vmatpush1.bf16.xpose.msra.mxu0 0
        %1097 = vmatprep.subr.bf16.mxu0 0
        %1098 = vmatpush1.bf16.xpose.msra.mxu0 0
        %1099 = vmatprep.subr.bf16.mxu0 0
        %1100 = vmatpush1.bf16.xpose.msra.mxu0 0
        %1101 = vmatprep.subr.bf16.mxu0 0
        %1102 = vmatpush1.bf16.xpose.msra.mxu0 0
        %1103 = vmatprep.subr.bf16.mxu0 0
        %1104 = vmatpush1.bf16.xpose.msra.mxu0 0
        %1105 = vmatprep.subr.bf16.mxu0 0
        %1106 = vmatpush1.bf16.xpose.msra.mxu0 0
        %1107 = vmatprep.subr.bf16.mxu0 0
        %1108 = vmatpush1.bf16.xpose.msra.mxu0 0
        %1109 = vmatprep.subr.bf16.mxu0 0
        %1110 = vmatpush1.bf16.xpose.msra.mxu0 0
        %1111 = vmatprep.subr.bf16.mxu0 0
        %1112 = vmatpush1.bf16.xpose.msra.mxu0 0
        %1113 = vmatprep.subr.bf16.mxu0 0
        %1114 = vmatpush1.bf16.xpose.msra.mxu0 0
        %1115 = vmatprep.subr.bf16.mxu0 0
        %1116 = vmatpush1.bf16.xpose.msra.mxu0 0
        %1117 = vmatprep.subr.bf16.mxu0 0
        %1118 = vmatpush1.bf16.xpose.msra.mxu0 0
        %1119 = vmatprep.subr.bf16.mxu0 0
        %1120 = vmatpush1.bf16.xpose.msra.mxu0 0
        %1121 = vmatprep.subr.bf16.mxu0 0
        %1122 = vmatpush1.bf16.xpose.msra.mxu0 0
        %1123 = vmatprep.mubr.bf16.mxu0 0
        %1124 = vmatmul.mubr.bf16.gmra.mrb[0].mxu0 %v1086
        %v1125 = vpop.f32.mrb[0].mxu0
        %v1126 = vadd.f32 %v913, %v1125
        %v1127 = vpop.f32.mrb[0].mxu0
        %v1128 = vpop.f32.mrb[0].mxu0
        %v1129 = vadd.f32 %v916, %v1128
        %v1130 = vpop.f32.mrb[0].mxu0
        %1131 = vdwg.mxu0
        %v1134 = vunpack.c.l.b16 %v788
        %v1135 = vunpack.c.l.b16 %v789
        %v1136 = vpack.c.b16 %v1135, %v1134
        %v1139 = vunpack.c.l.b16 %v796
        %v1140 = vunpack.c.l.b16 %v797
        %v1141 = vpack.c.b16 %v1140, %v1139
        %v1143 = vsel %vm1027, %v1136, 0
        %v1146 = vsel %vm1027, %v1141, 0
        %1148 = vmatprep.subr.bf16.mxu0 0
        %1149 = vmatpush1.bf16.xpose.msra.mxu0 %v1146
        %1150 = vmatprep.subr.bf16.mxu0 0
        %1151 = vmatpush1.bf16.xpose.msra.mxu0 0
        %1152 = vmatprep.subr.bf16.mxu0 0
        %1153 = vmatpush1.bf16.xpose.msra.mxu0 0
        %1154 = vmatprep.subr.bf16.mxu0 0
        %1155 = vmatpush1.bf16.xpose.msra.mxu0 0
        %1156 = vmatprep.subr.bf16.mxu0 0
        %1157 = vmatpush1.bf16.xpose.msra.mxu0 0
        %1158 = vmatprep.subr.bf16.mxu0 0
        %1159 = vmatpush1.bf16.xpose.msra.mxu0 0
        %1160 = vmatprep.subr.bf16.mxu0 0
        %1161 = vmatpush1.bf16.xpose.msra.mxu0 0
        %1162 = vmatprep.subr.bf16.mxu0 0
        %1163 = vmatpush1.bf16.xpose.msra.mxu0 0
        %1164 = vmatprep.subr.bf16.mxu0 0
        %1165 = vmatpush1.bf16.xpose.msra.mxu0 0
        %1166 = vmatprep.subr.bf16.mxu0 0
        %1167 = vmatpush1.bf16.xpose.msra.mxu0 0
        %1168 = vmatprep.subr.bf16.mxu0 0
        %1169 = vmatpush1.bf16.xpose.msra.mxu0 0
        %1170 = vmatprep.subr.bf16.mxu0 0
        %1171 = vmatpush1.bf16.xpose.msra.mxu0 0
        %1172 = vmatprep.subr.bf16.mxu0 0
        %1173 = vmatpush1.bf16.xpose.msra.mxu0 0
        %1174 = vmatprep.subr.bf16.mxu0 0
        %1175 = vmatpush1.bf16.xpose.msra.mxu0 0
        %1176 = vmatprep.subr.bf16.mxu0 0
        %1177 = vmatpush1.bf16.xpose.msra.mxu0 0
        %1178 = vmatprep.subr.bf16.mxu0 0
        %1179 = vmatpush1.bf16.xpose.msra.mxu0 0
        %1180 = vmatprep.mubr.bf16.mxu0 0
        %1181 = vmatmul.mubr.bf16.gmra.mrb[0].mxu0 %v1143
        %v1182 = vpop.f32.mrb[0].mxu0
        %v1183 = vadd.f32 %v962, %v1182
        %v1184 = vpop.f32.mrb[0].mxu0
        %v1185 = vpop.f32.mrb[0].mxu0
        %v1186 = vadd.f32 %v965, %v1185
        %v1187 = vpop.f32.mrb[0].mxu0
        %1188 = vdwg.mxu0
        %v1191 = vunpack.c.l.b16 %v790
        %v1192 = vunpack.c.l.b16 %v791
        %v1193 = vpack.c.b16 %v1192, %v1191
        %v1196 = vunpack.c.l.b16 %v798
        %v1197 = vunpack.c.l.b16 %v799
        %v1198 = vpack.c.b16 %v1197, %v1196
        %v1200 = vsel %vm1027, %v1193, 0
        %v1203 = vsel %vm1027, %v1198, 0
        %1205 = vmatprep.subr.bf16.mxu0 0
        %1206 = vmatpush1.bf16.xpose.msra.mxu0 %v1203
        %1207 = vmatprep.subr.bf16.mxu0 0
        %1208 = vmatpush1.bf16.xpose.msra.mxu0 0
        %1209 = vmatprep.subr.bf16.mxu0 0
        %1210 = vmatpush1.bf16.xpose.msra.mxu0 0
        %1211 = vmatprep.subr.bf16.mxu0 0
        %1212 = vmatpush1.bf16.xpose.msra.mxu0 0
        %1213 = vmatprep.subr.bf16.mxu0 0
        %1214 = vmatpush1.bf16.xpose.msra.mxu0 0
        %1215 = vmatprep.subr.bf16.mxu0 0
        %1216 = vmatpush1.bf16.xpose.msra.mxu0 0
        %1217 = vmatprep.subr.bf16.mxu0 0
        %1218 = vmatpush1.bf16.xpose.msra.mxu0 0
        %1219 = vmatprep.subr.bf16.mxu0 0
        %1220 = vmatpush1.bf16.xpose.msra.mxu0 0
        %1221 = vmatprep.subr.bf16.mxu0 0
        %1222 = vmatpush1.bf16.xpose.msra.mxu0 0
        %1223 = vmatprep.subr.bf16.mxu0 0
        %1224 = vmatpush1.bf16.xpose.msra.mxu0 0
        %1225 = vmatprep.subr.bf16.mxu0 0
        %1226 = vmatpush1.bf16.xpose.msra.mxu0 0
        %1227 = vmatprep.subr.bf16.mxu0 0
        %1228 = vmatpush1.bf16.xpose.msra.mxu0 0
        %1229 = vmatprep.subr.bf16.mxu0 0
        %1230 = vmatpush1.bf16.xpose.msra.mxu0 0
        %1231 = vmatprep.subr.bf16.mxu0 0
        %1232 = vmatpush1.bf16.xpose.msra.mxu0 0
        %1233 = vmatprep.subr.bf16.mxu0 0
        %1234 = vmatpush1.bf16.xpose.msra.mxu0 0
        %1235 = vmatprep.subr.bf16.mxu0 0
        %1236 = vmatpush1.bf16.xpose.msra.mxu0 0
        %1237 = vmatprep.mubr.bf16.mxu0 0
        %1238 = vmatmul.mubr.bf16.gmra.mrb[0].mxu0 %v1200
        %v1239 = vpop.f32.mrb[0].mxu0
        %v1240 = vadd.f32 %v1011, %v1239
        %v1241 = vpop.f32.mrb[0].mxu0
        %v1242 = vpop.f32.mrb[0].mxu0
        %v1243 = vadd.f32 %v1014, %v1242
        %v1244 = vpop.f32.mrb[0].mxu0
        %1245 = vdwg.mxu0
        %v1246 = vld [vmem:[%s695] sm:$0xf]
        %v1247 = vld [vmem:[%s695 + $0x4] sm:$0xf]
        %v1248 = vld [vmem:[%s695 + $0x8] sm:$0xf]
        %v1249 = vld [vmem:[%s695 + $0xc] sm:$0xf]
        %v1250 = vld [vmem:[%s695 + $0x10] sm:$0xf]
        %v1251 = vld [vmem:[%s695 + $0x14] sm:$0xf]
        %v1252 = vld [vmem:[%s695 + $0x18] sm:$0xf]
        %v1253 = vld [vmem:[%s695 + $0x1c] sm:$0xf]
        %v1256 = vunpack.c.l.b16 %v1246
        %v1257 = vunpack.c.l.b16 %v1247
        %v1258 = vpack.c.b16 %v1257, %v1256
        %v1261 = vunpack.c.l.b16 %v802
        %v1262 = vunpack.c.l.b16 %v803
        %v1263 = vpack.c.b16 %v1262, %v1261
        %v1265 = vsel %vm822, %v1258, 0
        %v1268 = vsel %vm822, %v1263, 0
        %1270 = vmatprep.subr.bf16.mxu0 0
        %1271 = vmatpush1.bf16.xpose.msra.mxu0 %v1268
        %1272 = vmatprep.subr.bf16.mxu0 0
        %1273 = vmatpush1.bf16.xpose.msra.mxu0 0
        %1274 = vmatprep.subr.bf16.mxu0 0
        %1275 = vmatpush1.bf16.xpose.msra.mxu0 0
        %1276 = vmatprep.subr.bf16.mxu0 0
        %1277 = vmatpush1.bf16.xpose.msra.mxu0 0
        %1278 = vmatprep.subr.bf16.mxu0 0
        %1279 = vmatpush1.bf16.xpose.msra.mxu0 0
        %1280 = vmatprep.subr.bf16.mxu0 0
        %1281 = vmatpush1.bf16.xpose.msra.mxu0 0
        %1282 = vmatprep.subr.bf16.mxu0 0
        %1283 = vmatpush1.bf16.xpose.msra.mxu0 0
        %1284 = vmatprep.subr.bf16.mxu0 0
        %1285 = vmatpush1.bf16.xpose.msra.mxu0 0
        %1286 = vmatprep.subr.bf16.mxu0 0
        %1287 = vmatpush1.bf16.xpose.msra.mxu0 0
        %1288 = vmatprep.subr.bf16.mxu0 0
        %1289 = vmatpush1.bf16.xpose.msra.mxu0 0
        %1290 = vmatprep.subr.bf16.mxu0 0
        %1291 = vmatpush1.bf16.xpose.msra.mxu0 0
        %1292 = vmatprep.subr.bf16.mxu0 0
        %1293 = vmatpush1.bf16.xpose.msra.mxu0 0
        %1294 = vmatprep.subr.bf16.mxu0 0
        %1295 = vmatpush1.bf16.xpose.msra.mxu0 0
        %1296 = vmatprep.subr.bf16.mxu0 0
        %1297 = vmatpush1.bf16.xpose.msra.mxu0 0
        %1298 = vmatprep.subr.bf16.mxu0 0
        %1299 = vmatpush1.bf16.xpose.msra.mxu0 0
        %1300 = vmatprep.subr.bf16.mxu0 0
        %1301 = vmatpush1.bf16.xpose.msra.mxu0 0
        %1302 = vmatprep.mubr.bf16.mxu0 0
        %1303 = vmatmul.mubr.bf16.gmra.mrb[0].mxu0 %v1265
        %v1304 = vpop.f32.mrb[0].mxu0
        %v1305 = vadd.f32 0.0, %v1304
        %v1306 = vpop.f32.mrb[0].mxu0
        %v1307 = vpop.f32.mrb[0].mxu0
        %v1308 = vadd.f32 0.0, %v1307
        %v1309 = vpop.f32.mrb[0].mxu0
        %1310 = vdwg.mxu0
        %v1313 = vunpack.c.l.b16 %v1248
        %v1314 = vunpack.c.l.b16 %v1249
        %v1315 = vpack.c.b16 %v1314, %v1313
        %v1317 = vsel %vm822, %v1315, 0
        %1319 = vmatprep.subr.bf16.mxu0 0
        %1320 = vmatpush1.bf16.xpose.msra.mxu0 %v1268
        %1321 = vmatprep.subr.bf16.mxu0 0
        %1322 = vmatpush1.bf16.xpose.msra.mxu0 0
        %1323 = vmatprep.subr.bf16.mxu0 0
        %1324 = vmatpush1.bf16.xpose.msra.mxu0 0
        %1325 = vmatprep.subr.bf16.mxu0 0
        %1326 = vmatpush1.bf16.xpose.msra.mxu0 0
        %1327 = vmatprep.subr.bf16.mxu0 0
        %1328 = vmatpush1.bf16.xpose.msra.mxu0 0
        %1329 = vmatprep.subr.bf16.mxu0 0
        %1330 = vmatpush1.bf16.xpose.msra.mxu0 0
        %1331 = vmatprep.subr.bf16.mxu0 0
        %1332 = vmatpush1.bf16.xpose.msra.mxu0 0
        %1333 = vmatprep.subr.bf16.mxu0 0
        %1334 = vmatpush1.bf16.xpose.msra.mxu0 0
        %1335 = vmatprep.subr.bf16.mxu0 0
        %1336 = vmatpush1.bf16.xpose.msra.mxu0 0
        %1337 = vmatprep.subr.bf16.mxu0 0
        %1338 = vmatpush1.bf16.xpose.msra.mxu0 0
        %1339 = vmatprep.subr.bf16.mxu0 0
        %1340 = vmatpush1.bf16.xpose.msra.mxu0 0
        %1341 = vmatprep.subr.bf16.mxu0 0
        %1342 = vmatpush1.bf16.xpose.msra.mxu0 0
        %1343 = vmatprep.subr.bf16.mxu0 0
        %1344 = vmatpush1.bf16.xpose.msra.mxu0 0
        %1345 = vmatprep.subr.bf16.mxu0 0
        %1346 = vmatpush1.bf16.xpose.msra.mxu0 0
        %1347 = vmatprep.subr.bf16.mxu0 0
        %1348 = vmatpush1.bf16.xpose.msra.mxu0 0
        %1349 = vmatprep.subr.bf16.mxu0 0
        %1350 = vmatpush1.bf16.xpose.msra.mxu0 0
        %1351 = vmatprep.mubr.bf16.mxu0 0
        %1352 = vmatmul.mubr.bf16.gmra.mrb[0].mxu0 %v1317
        %v1353 = vpop.f32.mrb[0].mxu0
        %v1354 = vadd.f32 0.0, %v1353
        %v1355 = vpop.f32.mrb[0].mxu0
        %v1356 = vpop.f32.mrb[0].mxu0
        %v1357 = vadd.f32 0.0, %v1356
        %v1358 = vpop.f32.mrb[0].mxu0
        %1359 = vdwg.mxu0
        %v1362 = vunpack.c.l.b16 %v1250
        %v1363 = vunpack.c.l.b16 %v1251
        %v1364 = vpack.c.b16 %v1363, %v1362
        %v1366 = vsel %vm822, %v1364, 0
        %1368 = vmatprep.subr.bf16.mxu0 0
        %1369 = vmatpush1.bf16.xpose.msra.mxu0 %v1268
        %1370 = vmatprep.subr.bf16.mxu0 0
        %1371 = vmatpush1.bf16.xpose.msra.mxu0 0
        %1372 = vmatprep.subr.bf16.mxu0 0
        %1373 = vmatpush1.bf16.xpose.msra.mxu0 0
        %1374 = vmatprep.subr.bf16.mxu0 0
        %1375 = vmatpush1.bf16.xpose.msra.mxu0 0
        %1376 = vmatprep.subr.bf16.mxu0 0
        %1377 = vmatpush1.bf16.xpose.msra.mxu0 0
        %1378 = vmatprep.subr.bf16.mxu0 0
        %1379 = vmatpush1.bf16.xpose.msra.mxu0 0
        %1380 = vmatprep.subr.bf16.mxu0 0
        %1381 = vmatpush1.bf16.xpose.msra.mxu0 0
        %1382 = vmatprep.subr.bf16.mxu0 0
        %1383 = vmatpush1.bf16.xpose.msra.mxu0 0
        %1384 = vmatprep.subr.bf16.mxu0 0
        %1385 = vmatpush1.bf16.xpose.msra.mxu0 0
        %1386 = vmatprep.subr.bf16.mxu0 0
        %1387 = vmatpush1.bf16.xpose.msra.mxu0 0
        %1388 = vmatprep.subr.bf16.mxu0 0
        %1389 = vmatpush1.bf16.xpose.msra.mxu0 0
        %1390 = vmatprep.subr.bf16.mxu0 0
        %1391 = vmatpush1.bf16.xpose.msra.mxu0 0
        %1392 = vmatprep.subr.bf16.mxu0 0
        %1393 = vmatpush1.bf16.xpose.msra.mxu0 0
        %1394 = vmatprep.subr.bf16.mxu0 0
        %1395 = vmatpush1.bf16.xpose.msra.mxu0 0
        %1396 = vmatprep.subr.bf16.mxu0 0
        %1397 = vmatpush1.bf16.xpose.msra.mxu0 0
        %1398 = vmatprep.subr.bf16.mxu0 0
        %1399 = vmatpush1.bf16.xpose.msra.mxu0 0
        %1400 = vmatprep.mubr.bf16.mxu0 0
        %1401 = vmatmul.mubr.bf16.gmra.mrb[0].mxu0 %v1366
        %v1402 = vpop.f32.mrb[0].mxu0
        %v1403 = vadd.f32 0.0, %v1402
        %v1404 = vpop.f32.mrb[0].mxu0
        %v1405 = vpop.f32.mrb[0].mxu0
        %v1406 = vadd.f32 0.0, %v1405
        %v1407 = vpop.f32.mrb[0].mxu0
        %1408 = vdwg.mxu0
        %v1411 = vunpack.c.l.b16 %v1252
        %v1412 = vunpack.c.l.b16 %v1253
        %v1413 = vpack.c.b16 %v1412, %v1411
        %v1415 = vsel %vm822, %v1413, 0
        %1417 = vmatprep.subr.bf16.mxu0 0
        %1418 = vmatpush1.bf16.xpose.msra.mxu0 %v1268
        %1419 = vmatprep.subr.bf16.mxu0 0
        %1420 = vmatpush1.bf16.xpose.msra.mxu0 0
        %1421 = vmatprep.subr.bf16.mxu0 0
        %1422 = vmatpush1.bf16.xpose.msra.mxu0 0
        %1423 = vmatprep.subr.bf16.mxu0 0
        %1424 = vmatpush1.bf16.xpose.msra.mxu0 0
        %1425 = vmatprep.subr.bf16.mxu0 0
        %1426 = vmatpush1.bf16.xpose.msra.mxu0 0
        %1427 = vmatprep.subr.bf16.mxu0 0
        %1428 = vmatpush1.bf16.xpose.msra.mxu0 0
        %1429 = vmatprep.subr.bf16.mxu0 0
        %1430 = vmatpush1.bf16.xpose.msra.mxu0 0
        %1431 = vmatprep.subr.bf16.mxu0 0
        %1432 = vmatpush1.bf16.xpose.msra.mxu0 0
        %1433 = vmatprep.subr.bf16.mxu0 0
        %1434 = vmatpush1.bf16.xpose.msra.mxu0 0
        %1435 = vmatprep.subr.bf16.mxu0 0
        %1436 = vmatpush1.bf16.xpose.msra.mxu0 0
        %1437 = vmatprep.subr.bf16.mxu0 0
        %1438 = vmatpush1.bf16.xpose.msra.mxu0 0
        %1439 = vmatprep.subr.bf16.mxu0 0
        %1440 = vmatpush1.bf16.xpose.msra.mxu0 0
        %1441 = vmatprep.subr.bf16.mxu0 0
        %1442 = vmatpush1.bf16.xpose.msra.mxu0 0
        %1443 = vmatprep.subr.bf16.mxu0 0
        %1444 = vmatpush1.bf16.xpose.msra.mxu0 0
        %1445 = vmatprep.subr.bf16.mxu0 0
        %1446 = vmatpush1.bf16.xpose.msra.mxu0 0
        %1447 = vmatprep.subr.bf16.mxu0 0
        %1448 = vmatpush1.bf16.xpose.msra.mxu0 0
        %1449 = vmatprep.mubr.bf16.mxu0 0
        %1450 = vmatmul.mubr.bf16.gmra.mrb[0].mxu0 %v1415
        %v1451 = vpop.f32.mrb[0].mxu0
        %v1452 = vadd.f32 0.0, %v1451
        %v1453 = vpop.f32.mrb[0].mxu0
        %v1454 = vpop.f32.mrb[0].mxu0
        %v1455 = vadd.f32 0.0, %v1454
        %v1456 = vpop.f32.mrb[0].mxu0
        %1457 = vdwg.mxu0
        %v1458 = vadd.f32 %v1069, %v1305
        %v1459 = vadd.f32 %v1072, %v1308
        %v1460 = vadd.f32 %v1126, %v1354
        %v1461 = vadd.f32 %v1129, %v1357
        %v1462 = vadd.f32 %v1183, %v1403
        %v1463 = vadd.f32 %v1186, %v1406
        %v1464 = vadd.f32 %v1240, %v1452
        %v1465 = vadd.f32 %v1243, %v1455
        %v1466 = vmul.f32 %v1458, 0.20412415
        %v1467 = vmul.f32 %v1459, 0.20412415
        %v1468 = vmul.f32 %v1460, 0.20412415
        %v1469 = vmul.f32 %v1461, 0.20412415
        %v1470 = vmul.f32 %v1462, 0.20412415
        %v1471 = vmul.f32 %v1463, 0.20412415
        %v1472 = vmul.f32 %v1464, 0.20412415
        %v1473 = vmul.f32 %v1465, 0.20412415
        %v1474 = vsel %vm1027, %v1466, -inf
        %v1475 = vsel %vm1027, %v1468, -inf
        %v1476 = vsel %vm1027, %v1470, -inf
        %v1477 = vmax.f32 %v1474, %v1476
        %v1478 = vsel %vm1027, %v1472, -inf
        %v1479 = vmax.f32 %v1475, %v1478
        %v1480 = vmax.f32 %v1477, %v1479
        %v1481 = vsel %vm1027, %v1467, -inf
        %v1482 = vsel %vm1027, %v1469, -inf
        %v1483 = vsel %vm1027, %v1471, -inf
        %v1484 = vmax.f32 %v1481, %v1483
        %v1485 = vsel %vm1027, %v1473, -inf
        %v1486 = vmax.f32 %v1482, %v1485
        %v1487 = vmax.f32 %v1484, %v1486
        %v1488 = vsub.f32 %v1466, %v1480
        %v1489 = vsub.f32 %v1467, %v1487
        %v1490 = vsub.f32 %v1468, %v1480
        %v1491 = vsub.f32 %v1469, %v1487
        %v1492 = vsub.f32 %v1470, %v1480
        %v1493 = vsub.f32 %v1471, %v1487
        %v1494 = vsub.f32 %v1472, %v1480
        %v1495 = vsub.f32 %v1473, %v1487
        %v1496 = vmul.f32 %v1488, 1.442695
        %v1497 = vpow.pop %v1496
        %v1498 = vmul.f32 %v1489, 1.442695
        %v1499 = vpow.pop %v1498
        %v1500 = vmul.f32 %v1490, 1.442695
        %v1501 = vpow.pop %v1500
        %v1502 = vmul.f32 %v1491, 1.442695
        %v1503 = vpow.pop %v1502
        %v1504 = vmul.f32 %v1492, 1.442695
        %v1505 = vpow.pop %v1504
        %v1506 = vmul.f32 %v1493, 1.442695
        %v1507 = vpow.pop %v1506
        %v1508 = vmul.f32 %v1494, 1.442695
        %v1509 = vpow.pop %v1508
        %v1510 = vmul.f32 %v1495, 1.442695
        %v1511 = vpow.pop %v1510
        %v1512 = vsel %vm1027, %v1497, 0.0
        %v1513 = vsel %vm1027, %v1501, 0.0
        %v1514 = vadd.f32 %v1512, %v1513
        %v1515 = vsel %vm1027, %v1505, 0.0
        %v1516 = vadd.f32 %v1514, %v1515
        %v1517 = vsel %vm1027, %v1509, 0.0
        %v1518 = vadd.f32 %v1516, %v1517
        %v1519 = vsel %vm1027, %v1499, 0.0
        %v1520 = vsel %vm1027, %v1503, 0.0
        %v1521 = vadd.f32 %v1519, %v1520
        %v1522 = vsel %vm1027, %v1507, 0.0
        %v1523 = vadd.f32 %v1521, %v1522
        %v1524 = vsel %vm1027, %v1511, 0.0
        %v1525 = vadd.f32 %v1523, %v1524
        %v1526 = vrcp.pop %v1518
        %v1527 = vmul.f32 %v1497, %v1526
        %v1528 = vrcp.pop %v1525
        %v1529 = vmul.f32 %v1499, %v1528
        %v1530 = vmul.f32 %v1501, %v1526
        %v1531 = vmul.f32 %v1503, %v1528
        %v1532 = vmul.f32 %v1505, %v1526
        %v1533 = vmul.f32 %v1507, %v1528
        %v1534 = vmul.f32 %v1509, %v1526
        %v1535 = vmul.f32 %v1511, %v1528
        %v1536 = vpack.c.bf16 %v1529, %v1527
        %v1537 = vpack.c.bf16 %v1531, %v1530
        %v1538 = vpack.c.bf16 %v1533, %v1532
        %v1539 = vpack.c.bf16 %v1535, %v1534
        %v1540 = vld [vmem:[%s709] sm:$0xf]
        %v1541 = vld [vmem:[%s709 + $0x4] sm:$0xf]
        %v1542 = vld [vmem:[%s709 + $0x8] sm:$0xf]
        %v1543 = vld [vmem:[%s709 + $0xc] sm:$0xf]
        %v1544 = vld [vmem:[%s709 + $0x10] sm:$0xf]
        %v1545 = vld [vmem:[%s709 + $0x14] sm:$0xf]
        %v1546 = vld [vmem:[%s709 + $0x18] sm:$0xf]
        %v1547 = vld [vmem:[%s709 + $0x1c] sm:$0xf]
        %v1550 = vunpack.c.l.b16 %v1540
        %v1551 = vunpack.c.l.b16 %v1541
        %v1552 = vpack.c.b16 %v1551, %v1550
        %v1555 = vsel %vm1027, %v1536, 0
        %1557 = vmatprep.subr.bf16.mxu0 0
        %1558 = vmatpush1.bf16.msra.mxu0 %v1552
        %1559 = vmatprep.subr.bf16.mxu0 0
        %1560 = vmatpush1.bf16.msra.mxu0 0
        %1561 = vmatprep.subr.bf16.mxu0 0
        %1562 = vmatpush1.bf16.msra.mxu0 0
        %1563 = vmatprep.subr.bf16.mxu0 0
        %1564 = vmatpush1.bf16.msra.mxu0 0
        %1565 = vmatprep.subr.bf16.mxu0 0
        %1566 = vmatpush1.bf16.msra.mxu0 0
        %1567 = vmatprep.subr.bf16.mxu0 0
        %1568 = vmatpush1.bf16.msra.mxu0 0
        %1569 = vmatprep.subr.bf16.mxu0 0
        %1570 = vmatpush1.bf16.msra.mxu0 0
        %1571 = vmatprep.subr.bf16.mxu0 0
        %1572 = vmatpush1.bf16.msra.mxu0 0
        %1573 = vmatprep.subr.bf16.mxu0 0
        %1574 = vmatpush1.bf16.msra.mxu0 0
        %1575 = vmatprep.subr.bf16.mxu0 0
        %1576 = vmatpush1.bf16.msra.mxu0 0
        %1577 = vmatprep.subr.bf16.mxu0 0
        %1578 = vmatpush1.bf16.msra.mxu0 0
        %1579 = vmatprep.subr.bf16.mxu0 0
        %1580 = vmatpush1.bf16.msra.mxu0 0
        %1581 = vmatprep.subr.bf16.mxu0 0
        %1582 = vmatpush1.bf16.msra.mxu0 0
        %1583 = vmatprep.subr.bf16.mxu0 0
        %1584 = vmatpush1.bf16.msra.mxu0 0
        %1585 = vmatprep.subr.bf16.mxu0 0
        %1586 = vmatpush1.bf16.msra.mxu0 0
        %1587 = vmatprep.subr.bf16.mxu0 0
        %1588 = vmatpush1.bf16.msra.mxu0 0
        %1589 = vmatprep.mubr.bf16.mxu0 0
        %1590 = vmatmul.mubr.bf16.gmra.mrb[0].mxu0 %v1555
        %v1591 = vpop.f32.mrb[0].mxu0
        %v1592 = vadd.f32 0.0, %v1591
        %v1593 = vpop.f32.mrb[0].mxu0
        %v1594 = vpop.f32.mrb[0].mxu0
        %v1595 = vadd.f32 0.0, %v1594
        %v1596 = vpop.f32.mrb[0].mxu0
        %1597 = vdwg.mxu0
        %v1600 = vunpack.c.l.b16 %v1542
        %v1601 = vunpack.c.l.b16 %v1543
        %v1602 = vpack.c.b16 %v1601, %v1600
        %v1605 = vsel %vm1027, %v1537, 0
        %1607 = vmatprep.subr.bf16.mxu0 0
        %1608 = vmatpush1.bf16.msra.mxu0 %v1602
        %1609 = vmatprep.subr.bf16.mxu0 0
        %1610 = vmatpush1.bf16.msra.mxu0 0
        %1611 = vmatprep.subr.bf16.mxu0 0
        %1612 = vmatpush1.bf16.msra.mxu0 0
        %1613 = vmatprep.subr.bf16.mxu0 0
        %1614 = vmatpush1.bf16.msra.mxu0 0
        %1615 = vmatprep.subr.bf16.mxu0 0
        %1616 = vmatpush1.bf16.msra.mxu0 0
        %1617 = vmatprep.subr.bf16.mxu0 0
        %1618 = vmatpush1.bf16.msra.mxu0 0
        %1619 = vmatprep.subr.bf16.mxu0 0
        %1620 = vmatpush1.bf16.msra.mxu0 0
        %1621 = vmatprep.subr.bf16.mxu0 0
        %1622 = vmatpush1.bf16.msra.mxu0 0
        %1623 = vmatprep.subr.bf16.mxu0 0
        %1624 = vmatpush1.bf16.msra.mxu0 0
        %1625 = vmatprep.subr.bf16.mxu0 0
        %1626 = vmatpush1.bf16.msra.mxu0 0
        %1627 = vmatprep.subr.bf16.mxu0 0
        %1628 = vmatpush1.bf16.msra.mxu0 0
        %1629 = vmatprep.subr.bf16.mxu0 0
        %1630 = vmatpush1.bf16.msra.mxu0 0
        %1631 = vmatprep.subr.bf16.mxu0 0
        %1632 = vmatpush1.bf16.msra.mxu0 0
        %1633 = vmatprep.subr.bf16.mxu0 0
        %1634 = vmatpush1.bf16.msra.mxu0 0
        %1635 = vmatprep.subr.bf16.mxu0 0
        %1636 = vmatpush1.bf16.msra.mxu0 0
        %1637 = vmatprep.subr.bf16.mxu0 0
        %1638 = vmatpush1.bf16.msra.mxu0 0
        %1639 = vmatprep.mubr.bf16.mxu0 0
        %1640 = vmatmul.mubr.bf16.gmra.mrb[0].mxu0 %v1605
        %v1641 = vpop.f32.mrb[0].mxu0
        %v1642 = vadd.f32 0.0, %v1641
        %v1643 = vpop.f32.mrb[0].mxu0
        %v1644 = vpop.f32.mrb[0].mxu0
        %v1645 = vadd.f32 0.0, %v1644
        %v1646 = vpop.f32.mrb[0].mxu0
        %1647 = vdwg.mxu0
        %v1650 = vunpack.c.l.b16 %v1544
        %v1651 = vunpack.c.l.b16 %v1545
        %v1652 = vpack.c.b16 %v1651, %v1650
        %v1655 = vsel %vm1027, %v1538, 0
        %1657 = vmatprep.subr.bf16.mxu0 0
        %1658 = vmatpush1.bf16.msra.mxu0 %v1652
        %1659 = vmatprep.subr.bf16.mxu0 0
        %1660 = vmatpush1.bf16.msra.mxu0 0
        %1661 = vmatprep.subr.bf16.mxu0 0
        %1662 = vmatpush1.bf16.msra.mxu0 0
        %1663 = vmatprep.subr.bf16.mxu0 0
        %1664 = vmatpush1.bf16.msra.mxu0 0
        %1665 = vmatprep.subr.bf16.mxu0 0
        %1666 = vmatpush1.bf16.msra.mxu0 0
        %1667 = vmatprep.subr.bf16.mxu0 0
        %1668 = vmatpush1.bf16.msra.mxu0 0
        %1669 = vmatprep.subr.bf16.mxu0 0
        %1670 = vmatpush1.bf16.msra.mxu0 0
        %1671 = vmatprep.subr.bf16.mxu0 0
        %1672 = vmatpush1.bf16.msra.mxu0 0
        %1673 = vmatprep.subr.bf16.mxu0 0
        %1674 = vmatpush1.bf16.msra.mxu0 0
        %1675 = vmatprep.subr.bf16.mxu0 0
        %1676 = vmatpush1.bf16.msra.mxu0 0
        %1677 = vmatprep.subr.bf16.mxu0 0
        %1678 = vmatpush1.bf16.msra.mxu0 0
        %1679 = vmatprep.subr.bf16.mxu0 0
        %1680 = vmatpush1.bf16.msra.mxu0 0
        %1681 = vmatprep.subr.bf16.mxu0 0
        %1682 = vmatpush1.bf16.msra.mxu0 0
        %1683 = vmatprep.subr.bf16.mxu0 0
        %1684 = vmatpush1.bf16.msra.mxu0 0
        %1685 = vmatprep.subr.bf16.mxu0 0
        %1686 = vmatpush1.bf16.msra.mxu0 0
        %1687 = vmatprep.subr.bf16.mxu0 0
        %1688 = vmatpush1.bf16.msra.mxu0 0
        %1689 = vmatprep.mubr.bf16.mxu0 0
        %1690 = vmatmul.mubr.bf16.gmra.mrb[0].mxu0 %v1655
        %v1691 = vpop.f32.mrb[0].mxu0
        %v1692 = vadd.f32 0.0, %v1691
        %v1693 = vpop.f32.mrb[0].mxu0
        %v1694 = vpop.f32.mrb[0].mxu0
        %v1695 = vadd.f32 0.0, %v1694
        %v1696 = vpop.f32.mrb[0].mxu0
        %1697 = vdwg.mxu0
        %v1700 = vunpack.c.l.b16 %v1546
        %v1701 = vunpack.c.l.b16 %v1547
        %v1702 = vpack.c.b16 %v1701, %v1700
        %v1705 = vsel %vm1027, %v1539, 0
        %1707 = vmatprep.subr.bf16.mxu0 0
        %1708 = vmatpush1.bf16.msra.mxu0 %v1702
        %1709 = vmatprep.subr.bf16.mxu0 0
        %1710 = vmatpush1.bf16.msra.mxu0 0
        %1711 = vmatprep.subr.bf16.mxu0 0
        %1712 = vmatpush1.bf16.msra.mxu0 0
        %1713 = vmatprep.subr.bf16.mxu0 0
        %1714 = vmatpush1.bf16.msra.mxu0 0
        %1715 = vmatprep.subr.bf16.mxu0 0
        %1716 = vmatpush1.bf16.msra.mxu0 0
        %1717 = vmatprep.subr.bf16.mxu0 0
        %1718 = vmatpush1.bf16.msra.mxu0 0
        %1719 = vmatprep.subr.bf16.mxu0 0
        %1720 = vmatpush1.bf16.msra.mxu0 0
        %1721 = vmatprep.subr.bf16.mxu0 0
        %1722 = vmatpush1.bf16.msra.mxu0 0
        %1723 = vmatprep.subr.bf16.mxu0 0
        %1724 = vmatpush1.bf16.msra.mxu0 0
        %1725 = vmatprep.subr.bf16.mxu0 0
        %1726 = vmatpush1.bf16.msra.mxu0 0
        %1727 = vmatprep.subr.bf16.mxu0 0
        %1728 = vmatpush1.bf16.msra.mxu0 0
        %1729 = vmatprep.subr.bf16.mxu0 0
        %1730 = vmatpush1.bf16.msra.mxu0 0
        %1731 = vmatprep.subr.bf16.mxu0 0
        %1732 = vmatpush1.bf16.msra.mxu0 0
        %1733 = vmatprep.subr.bf16.mxu0 0
        %1734 = vmatpush1.bf16.msra.mxu0 0
        %1735 = vmatprep.subr.bf16.mxu0 0
        %1736 = vmatpush1.bf16.msra.mxu0 0
        %1737 = vmatprep.subr.bf16.mxu0 0
        %1738 = vmatpush1.bf16.msra.mxu0 0
        %1739 = vmatprep.mubr.bf16.mxu0 0
        %1740 = vmatmul.mubr.bf16.gmra.mrb[0].mxu0 %v1705
        %v1741 = vpop.f32.mrb[0].mxu0
        %v1742 = vadd.f32 0.0, %v1741
        %v1743 = vpop.f32.mrb[0].mxu0
        %v1744 = vpop.f32.mrb[0].mxu0
        %v1745 = vadd.f32 0.0, %v1744
        %v1746 = vpop.f32.mrb[0].mxu0
        %1747 = vdwg.mxu0
        %v1748 = vpack.c.bf16 %v1595, %v1592
        %v1749 = vpack.c.bf16 %v1645, %v1642
        %v1750 = vpack.c.bf16 %v1695, %v1692
        %v1751 = vpack.c.bf16 %v1745, %v1742
        %v1752 = vld [vmem:[%s7] sm:$0xf]
        %v1753 = vld [vmem:[%s7 + $0x4] sm:$0xf]
        %v1754 = vld [vmem:[%s7 + $0x8] sm:$0xf]
        %v1755 = vld [vmem:[%s7 + $0xc] sm:$0xf]
        %v1756 = vld [vmem:[%s7 + $0x10] sm:$0xf]
        %v1757 = vld [vmem:[%s7 + $0x14] sm:$0xf]
        %v1758 = vld [vmem:[%s7 + $0x18] sm:$0xf]
        %v1759 = vld [vmem:[%s7 + $0x1c] sm:$0xf]
        %v1762 = vunpack.c.l.b16 %v1752
        %v1763 = vunpack.c.l.b16 %v1753
        %v1764 = vpack.c.b16 %v1763, %v1762
        %v1767 = vsel %vm1027, %v1748, 0
        %1769 = vmatprep.subr.bf16.mxu0 0
        %1770 = vmatpush1.bf16.msra.mxu0 %v1764
        %1771 = vmatprep.subr.bf16.mxu0 0
        %1772 = vmatpush1.bf16.msra.mxu0 0
        %1773 = vmatprep.subr.bf16.mxu0 0
        %1774 = vmatpush1.bf16.msra.mxu0 0
        %1775 = vmatprep.subr.bf16.mxu0 0
        %1776 = vmatpush1.bf16.msra.mxu0 0
        %1777 = vmatprep.subr.bf16.mxu0 0
        %1778 = vmatpush1.bf16.msra.mxu0 0
        %1779 = vmatprep.subr.bf16.mxu0 0
        %1780 = vmatpush1.bf16.msra.mxu0 0
        %1781 = vmatprep.subr.bf16.mxu0 0
        %1782 = vmatpush1.bf16.msra.mxu0 0
        %1783 = vmatprep.subr.bf16.mxu0 0
        %1784 = vmatpush1.bf16.msra.mxu0 0
        %1785 = vmatprep.subr.bf16.mxu0 0
        %1786 = vmatpush1.bf16.msra.mxu0 0
        %1787 = vmatprep.subr.bf16.mxu0 0
        %1788 = vmatpush1.bf16.msra.mxu0 0
        %1789 = vmatprep.subr.bf16.mxu0 0
        %1790 = vmatpush1.bf16.msra.mxu0 0
        %1791 = vmatprep.subr.bf16.mxu0 0
        %1792 = vmatpush1.bf16.msra.mxu0 0
        %1793 = vmatprep.subr.bf16.mxu0 0
        %1794 = vmatpush1.bf16.msra.mxu0 0
        %1795 = vmatprep.subr.bf16.mxu0 0
        %1796 = vmatpush1.bf16.msra.mxu0 0
        %1797 = vmatprep.subr.bf16.mxu0 0
        %1798 = vmatpush1.bf16.msra.mxu0 0
        %1799 = vmatprep.subr.bf16.mxu0 0
        %1800 = vmatpush1.bf16.msra.mxu0 0
        %1801 = vmatprep.mubr.bf16.mxu0 0
        %1802 = vmatmul.mubr.bf16.gmra.mrb[0].mxu0 %v1767
        %v1803 = vpop.f32.mrb[0].mxu0
        %v1804 = vadd.f32 0.0, %v1803
        %v1805 = vpop.f32.mrb[0].mxu0
        %v1806 = vpop.f32.mrb[0].mxu0
        %v1807 = vadd.f32 0.0, %v1806
        %v1808 = vpop.f32.mrb[0].mxu0
        %1809 = vdwg.mxu0
        %v1812 = vunpack.c.l.b16 %v1754
        %v1813 = vunpack.c.l.b16 %v1755
        %v1814 = vpack.c.b16 %v1813, %v1812
        %v1817 = vsel %vm1027, %v1749, 0
        %1819 = vmatprep.subr.bf16.mxu0 0
        %1820 = vmatpush1.bf16.msra.mxu0 %v1814
        %1821 = vmatprep.subr.bf16.mxu0 0
        %1822 = vmatpush1.bf16.msra.mxu0 0
        %1823 = vmatprep.subr.bf16.mxu0 0
        %1824 = vmatpush1.bf16.msra.mxu0 0
        %1825 = vmatprep.subr.bf16.mxu0 0
        %1826 = vmatpush1.bf16.msra.mxu0 0
        %1827 = vmatprep.subr.bf16.mxu0 0
        %1828 = vmatpush1.bf16.msra.mxu0 0
        %1829 = vmatprep.subr.bf16.mxu0 0
        %1830 = vmatpush1.bf16.msra.mxu0 0
        %1831 = vmatprep.subr.bf16.mxu0 0
        %1832 = vmatpush1.bf16.msra.mxu0 0
        %1833 = vmatprep.subr.bf16.mxu0 0
        %1834 = vmatpush1.bf16.msra.mxu0 0
        %1835 = vmatprep.subr.bf16.mxu0 0
        %1836 = vmatpush1.bf16.msra.mxu0 0
        %1837 = vmatprep.subr.bf16.mxu0 0
        %1838 = vmatpush1.bf16.msra.mxu0 0
        %1839 = vmatprep.subr.bf16.mxu0 0
        %1840 = vmatpush1.bf16.msra.mxu0 0
        %1841 = vmatprep.subr.bf16.mxu0 0
        %1842 = vmatpush1.bf16.msra.mxu0 0
        %1843 = vmatprep.subr.bf16.mxu0 0
        %1844 = vmatpush1.bf16.msra.mxu0 0
        %1845 = vmatprep.subr.bf16.mxu0 0
        %1846 = vmatpush1.bf16.msra.mxu0 0
        %1847 = vmatprep.subr.bf16.mxu0 0
        %1848 = vmatpush1.bf16.msra.mxu0 0
        %1849 = vmatprep.subr.bf16.mxu0 0
        %1850 = vmatpush1.bf16.msra.mxu0 0
        %1851 = vmatprep.mubr.bf16.mxu0 0
        %1852 = vmatmul.mubr.bf16.gmra.mrb[0].mxu0 %v1817
        %v1853 = vpop.f32.mrb[0].mxu0
        %v1854 = vadd.f32 0.0, %v1853
        %v1855 = vpop.f32.mrb[0].mxu0
        %v1856 = vpop.f32.mrb[0].mxu0
        %v1857 = vadd.f32 0.0, %v1856
        %v1858 = vpop.f32.mrb[0].mxu0
        %1859 = vdwg.mxu0
        %v1862 = vunpack.c.l.b16 %v1756
        %v1863 = vunpack.c.l.b16 %v1757
        %v1864 = vpack.c.b16 %v1863, %v1862
        %v1867 = vsel %vm1027, %v1750, 0
        %1869 = vmatprep.subr.bf16.mxu0 0
        %1870 = vmatpush1.bf16.msra.mxu0 %v1864
        %1871 = vmatprep.subr.bf16.mxu0 0
        %1872 = vmatpush1.bf16.msra.mxu0 0
        %1873 = vmatprep.subr.bf16.mxu0 0
        %1874 = vmatpush1.bf16.msra.mxu0 0
        %1875 = vmatprep.subr.bf16.mxu0 0
        %1876 = vmatpush1.bf16.msra.mxu0 0
        %1877 = vmatprep.subr.bf16.mxu0 0
        %1878 = vmatpush1.bf16.msra.mxu0 0
        %1879 = vmatprep.subr.bf16.mxu0 0
        %1880 = vmatpush1.bf16.msra.mxu0 0
        %1881 = vmatprep.subr.bf16.mxu0 0
        %1882 = vmatpush1.bf16.msra.mxu0 0
        %1883 = vmatprep.subr.bf16.mxu0 0
        %1884 = vmatpush1.bf16.msra.mxu0 0
        %1885 = vmatprep.subr.bf16.mxu0 0
        %1886 = vmatpush1.bf16.msra.mxu0 0
        %1887 = vmatprep.subr.bf16.mxu0 0
        %1888 = vmatpush1.bf16.msra.mxu0 0
        %1889 = vmatprep.subr.bf16.mxu0 0
        %1890 = vmatpush1.bf16.msra.mxu0 0
        %1891 = vmatprep.subr.bf16.mxu0 0
        %1892 = vmatpush1.bf16.msra.mxu0 0
        %1893 = vmatprep.subr.bf16.mxu0 0
        %1894 = vmatpush1.bf16.msra.mxu0 0
        %1895 = vmatprep.subr.bf16.mxu0 0
        %1896 = vmatpush1.bf16.msra.mxu0 0
        %1897 = vmatprep.subr.bf16.mxu0 0
        %1898 = vmatpush1.bf16.msra.mxu0 0
        %1899 = vmatprep.subr.bf16.mxu0 0
        %1900 = vmatpush1.bf16.msra.mxu0 0
        %1901 = vmatprep.mubr.bf16.mxu0 0
        %1902 = vmatmul.mubr.bf16.gmra.mrb[0].mxu0 %v1867
        %v1903 = vpop.f32.mrb[0].mxu0
        %v1904 = vadd.f32 0.0, %v1903
        %v1905 = vpop.f32.mrb[0].mxu0
        %v1906 = vpop.f32.mrb[0].mxu0
        %v1907 = vadd.f32 0.0, %v1906
        %v1908 = vpop.f32.mrb[0].mxu0
        %1909 = vdwg.mxu0
        %v1912 = vunpack.c.l.b16 %v1758
        %v1913 = vunpack.c.l.b16 %v1759
        %v1914 = vpack.c.b16 %v1913, %v1912
        %v1917 = vsel %vm1027, %v1751, 0
        %1919 = vmatprep.subr.bf16.mxu0 0
        %1920 = vmatpush1.bf16.msra.mxu0 %v1914
        %1921 = vmatprep.subr.bf16.mxu0 0
        %1922 = vmatpush1.bf16.msra.mxu0 0
        %1923 = vmatprep.subr.bf16.mxu0 0
        %1924 = vmatpush1.bf16.msra.mxu0 0
        %1925 = vmatprep.subr.bf16.mxu0 0
        %1926 = vmatpush1.bf16.msra.mxu0 0
        %1927 = vmatprep.subr.bf16.mxu0 0
        %1928 = vmatpush1.bf16.msra.mxu0 0
        %1929 = vmatprep.subr.bf16.mxu0 0
        %1930 = vmatpush1.bf16.msra.mxu0 0
        %1931 = vmatprep.subr.bf16.mxu0 0
        %1932 = vmatpush1.bf16.msra.mxu0 0
        %1933 = vmatprep.subr.bf16.mxu0 0
        %1934 = vmatpush1.bf16.msra.mxu0 0
        %1935 = vmatprep.subr.bf16.mxu0 0
        %1936 = vmatpush1.bf16.msra.mxu0 0
        %1937 = vmatprep.subr.bf16.mxu0 0
        %1938 = vmatpush1.bf16.msra.mxu0 0
        %1939 = vmatprep.subr.bf16.mxu0 0
        %1940 = vmatpush1.bf16.msra.mxu0 0
        %1941 = vmatprep.subr.bf16.mxu0 0
        %1942 = vmatpush1.bf16.msra.mxu0 0
        %1943 = vmatprep.subr.bf16.mxu0 0
        %1944 = vmatpush1.bf16.msra.mxu0 0
        %1945 = vmatprep.subr.bf16.mxu0 0
        %1946 = vmatpush1.bf16.msra.mxu0 0
        %1947 = vmatprep.subr.bf16.mxu0 0
        %1948 = vmatpush1.bf16.msra.mxu0 0
        %1949 = vmatprep.subr.bf16.mxu0 0
        %1950 = vmatpush1.bf16.msra.mxu0 0
        %1951 = vmatprep.mubr.bf16.mxu0 0
        %1952 = vmatmul.mubr.bf16.gmra.mrb[0].mxu0 %v1917
        %v1953 = vpop.f32.mrb[0].mxu0
        %v1954 = vadd.f32 0.0, %v1953
        %v1955 = vpop.f32.mrb[0].mxu0
        %v1956 = vpop.f32.mrb[0].mxu0
        %v1957 = vadd.f32 0.0, %v1956
        %v1958 = vpop.f32.mrb[0].mxu0
        %1959 = vdwg.mxu0
        %vm1960 = vcmask 523264
        %v1961 = vsel %vm1960, %v1804, 0.0
        %v1962 = vsel %vm1960, %v1854, 0.0
        %v1963 = vadd.f32 %v1961, %v1962
        %v1964 = vsel %vm1960, %v1904, 0.0
        %v1965 = vadd.f32 %v1963, %v1964
        %v1966 = vsel %vm1960, %v1954, 0.0
        %v1967 = vadd.f32 %v1965, %v1966
        %v1968 = vsel %vm1960, %v1807, 0.0
        %v1969 = vsel %vm1960, %v1857, 0.0
        %v1970 = vadd.f32 %v1968, %v1969
        %v1971 = vsel %vm1960, %v1907, 0.0
        %v1972 = vadd.f32 %v1970, %v1971
        %v1973 = vsel %vm1960, %v1957, 0.0
        %v1974 = vadd.f32 %v1972, %v1973
        %1975 = vst.msk [vmem:[%s765] sm:$0xff] %vm1960, %v1967
        %1976 = vst.msk [vmem:[%s765 + $0x8] sm:$0xff] %vm1960, %v1974
        %s1977 = sand.u32 %s233, 1
        %s1978 = scalar_lea.sflag [#allocation8], %s1977
        %s1979 = sand.u32 %s233, 1
        %s1980 = smul.addr %s1979, 16
        %s1981 = scalar_lea.vmem [#allocation7], %s1980
        // Predicated region
        $region258: #{mla_forward.3} parent=236 // pred_check
          %p1982 = pneg %p243
        $region259: #{mla_forward.3} parent=236 // pred_check_branch
          %1984 = sbr.rel (%p1982) target = $region261
        $region260: #{mla_forward.3} parent=236 // pred_region
          %s1986 = ssub.s32 256, 256
          %1987 = vsyncadd %s1978, %s1986
          %s1988 = smul.addr %s22, 2
          %s1989 = smul.addr %s1988, 128
          %s1990 = scalar_lea.hbm %s8, %s1989
          %s1991 = sshll.u32 %s1981, 4
          %s1992 = int_to_ptr.vmem [resolvable:$true] %s1991
          %1997 = dma.vmem_to_hbm [thread:$0]  %s1992, 256, %s1990, %s1978, 128, 128, 8
        $region261: #{mla_forward.3} parent=236 // pred_fallthru
          _
      $region237: #{mla_forward.3} parent=5 // pred_fallthru
        _
      %p1998 = scmp.le.s32.totalorder 2, %s17
      // Predicated region
      $region262: #{mla_forward.3} parent=5 // pred_check
        %p1999 = pneg %p1998
      $region263: #{mla_forward.3} parent=5 // pred_check_branch
        %2001 = sbr.rel (%p1999) target = $region265
      $region264: #{mla_forward.3} parent=5 // pred_region
        %s2002 = ssub.s32 %s17, 2
        // Predicated region
        $region266: #{mla_forward.3} parent=264 // pred_check
          %p2003 = pneg %p249
        $region267: #{mla_forward.3} parent=264 // pred_check_branch
          %2005 = sbr.rel (%p2003) target = $region269
        $region268: #{mla_forward.3} parent=264 // pred_region
          %s2006 = sand.u32 %s234, 1
          %s2007 = scalar_lea.sflag [#allocation8], %s2006
          %s2008 = sand.u32 %s234, 1
          %s2009 = smul.addr %s2008, 16
          %s2010 = scalar_lea.vmem [#allocation7], %s2009
          %2011 = dma.done %s2007, 256
        $region269: #{mla_forward.3} parent=264 // pred_fallthru
          _
      $region265: #{mla_forward.3} parent=5 // pred_fallthru
        _
    $region6: #{mla_forward.3} parent=1 // loop_footer
      %s21 = sadd.s32 1, %s17
    $region7: #{mla_forward.3} parent=1 // loop_footer_branch
      %16 = sbr.rel target = $region3
    $region8: #{mla_forward.3} parent=1 // loop_exit
      _
    %2012 = vsyncpa [#allocation8], 1
    %s2013 = scalar_lea.sflag [#allocation8], 1
    %2014 = vsyncpa %s2013, 1

</llo_original>
